<compile_context>
chip_gen: v6e
topology: v6e:2x2x1
jax: 0.10.0
libtpu: 0.0.40
codegen_flags: <defaults>
</compile_context>

<pallas_src>
import jax
import jax.numpy as jnp
from jax.experimental import pallas as pl
from jax.experimental.pallas import tpu as pltpu

BN_EPS = 1e-5
LANE = 128
GUARD = 8          # zero guard rows so every 3x3 tap slice stays in-bounds


def _round_up(a, b):
    return (a + b - 1) // b * b


def _pick_tm(m, cp):
    """M tile: largest tile whose f32 accumulator + double-buffered out /
    residual stays under ~8 MiB (fits v5e's 16 MiB default scoped VMEM with
    headroom, leaves room on v7x), while keeping >=2 M blocks when possible so
    the 'parallel' axis can shard across TensorCores."""
    tm = 512
    while tm > 128 and tm * cp * 16 > (8 << 20):
        tm //= 2
    while tm > 128 and m <= tm:
        tm //= 2
    return min(tm, _round_up(m, 8))


def _pick_tk(k):
    """K tile: whole (padded) axis when small; otherwise a multiple of 128
    that is >=256 deep (v6e/v7x MXU depth) and minimizes zero padding."""
    if k <= 256:
        return _round_up(k, 8)
    best_tk, best_pad = None, None
    for tk in (512, 384, 256):
        pad = _round_up(k, tk) - k
        if best_pad is None or pad < best_pad:
            best_tk, best_pad = tk, pad
    return best_tk


# ---------------------------------------------------------------------------
# Kernel 1: K-tiled matmul with fused bias / residual / stacked-K / ReLU.
# ---------------------------------------------------------------------------
def _make_matmul_kernel(apply_relu, has_residual, has_extra):
    def kernel(*refs):
        x_ref, w_ref, b_ref = refs[:3]
        idx = 3
        r_ref = None
        if has_residual:
            r_ref = refs[idx]
            idx += 1
        if has_extra:
            x2_ref, w2_ref = refs[idx], refs[idx + 1]
            idx += 2
        o_ref, acc_ref = refs[idx], refs[idx + 1]

        k = pl.program_id(1)

        if has_extra:
            # Fold the downsample 1x1 conv into the accumulator at the first
            # K step -- no HBM concat of activations is ever materialized.
            @pl.when(k == 0)
            def _():
                acc_ref[...] = jnp.dot(x2_ref[...], w2_ref[...],
                                       preferred_element_type=jnp.float32)
        else:
            @pl.when(k == 0)
            def _():
                acc_ref[...] = jnp.zeros_like(acc_ref)

        acc_ref[...] += jnp.dot(x_ref[...], w_ref[...],
                                preferred_element_type=jnp.float32)

        @pl.when(k == pl.num_programs(1) - 1)
        def _():
            r = acc_ref[...] + b_ref[...]
            if has_residual:
                r = r + r_ref[...].astype(jnp.float32)
            if apply_relu:
                r = jnp.maximum(r, 0.0)
            o_ref[...] = r.astype(o_ref.dtype)

    return kernel


def fused_matmul(x, w, bias, residual=None, extra=None, apply_relu=True,
                 out_dtype=jnp.float32, keep_padded_c=False):
    """relu?((x @ w) [+ x2 @ w2] + bias [+ residual]).

    bf16 MXU inputs, f32 accumulation.  Output channels are padded to a
    multiple of 128 (lane-dense stores); `keep_padded_c=True` returns the
    zero-padded channels so the consumer stays lane-aligned.
    """
    M, K = x.shape
    C = w.shape[1]
    Cp = _round_up(C, LANE)
    TM = _pick_tm(M, Cp)
    TK = _pick_tk(K)
    Mp = _round_up(M, TM)
    Kp = _round_up(K, TK)

    xb = jnp.pad(x.astype(jnp.bfloat16), ((0, Mp - M), (0, Kp - K)))
    wb = jnp.pad(w.astype(jnp.bfloat16), ((0, Kp - K), (0, Cp - C)))
    bb = jnp.pad(bias.astype(jnp.float32), (0, Cp - C)).reshape(1, Cp)

    inputs = [xb, wb, bb]
    in_specs = [
        pl.BlockSpec((TM, TK), lambda i, k: (i, k)),
        pl.BlockSpec((TK, Cp), lambda i, k: (k, 0)),
        pl.BlockSpec((1, Cp), lambda i, k: (0, 0)),
    ]
    if residual is not None:
        # residual travels as bf16 (half the DMA/VMEM) but is added in f32.
        rb = jnp.pad(residual.astype(jnp.bfloat16), ((0, Mp - M), (0, Cp - C)))
        inputs.append(rb)
        in_specs.append(pl.BlockSpec((TM, Cp), lambda i, k: (i, 0)))
    if extra is not None:
        x2, w2 = extra
        K2 = x2.shape[1]
        K2p = _round_up(K2, LANE)
        inputs.append(jnp.pad(x2.astype(jnp.bfloat16),
                              ((0, Mp - M), (0, K2p - K2))))
        inputs.append(jnp.pad(w2.astype(jnp.bfloat16),
                              ((0, K2p - K2), (0, Cp - C))))
        in_specs.append(pl.BlockSpec((TM, K2p), lambda i, k: (i, 0)))
        in_specs.append(pl.BlockSpec((K2p, Cp), lambda i, k: (0, 0)))

    out = pl.pallas_call(
        _make_matmul_kernel(apply_relu, residual is not None, extra is not None),
        out_shape=jax.ShapeDtypeStruct((Mp, Cp), out_dtype),
        grid_spec=pltpu.PrefetchScalarGridSpec(
            num_scalar_prefetch=0,
            grid=(Mp // TM, Kp // TK),
            in_specs=in_specs,
            out_specs=pl.BlockSpec((TM, Cp), lambda i, k: (i, 0)),
            scratch_shapes=[pltpu.VMEM((TM, Cp), jnp.float32)],
        ),
        compiler_params=pltpu.CompilerParams(
            dimension_semantics=("parallel", "arbitrary")),
    )(*inputs)

    out = out[:M]
    return out if keep_padded_c else out[:, :C]


# ---------------------------------------------------------------------------
# Kernel 2: 3x3 conv (pad=1) + folded BN + ReLU as 3 deep (K = 3*Cin) matmuls.
# ---------------------------------------------------------------------------
def _make_conv3x3_kernel(H, W, Wp):
    M = H * Wp  # output rows laid out on the padded-width grid

    def kernel(x_ref, w_ref, b_ref, o_ref):
        acc = None
        for ky in range(3):
            r0 = ky * Wp  # 8-aligned (Wp % 8 == 0)
            # Merge the three kx taps into one K = 3*Cin contraction so the
            # 256-deep MXU (v6e/v7x) runs at much higher depth utilization.
            lhs = jnp.concatenate(
                [x_ref[0, r0 + kx:r0 + kx + M, :] for kx in range(3)], axis=-1)
            d = jnp.dot(lhs, w_ref[ky], preferred_element_type=jnp.float32)
            acc = d if acc is None else acc + d       # init from first dot
        y = jnp.maximum(acc + b_ref[...], 0.0)        # (M, Cout_p) f32
        # keep only the H*W valid output rows (drop the width-pad columns)
        y = y.reshape(H, Wp, y.shape[-1])[:, :W, :]
        o_ref[0] = y.astype(o_ref.dtype)

    return kernel


def conv3x3_bn_relu(x_nhwc, w_taps, bias, out_dtype=jnp.bfloat16):
    """3x3 conv (pad=1, stride=1) + folded BN + ReLU, no HBM im2col.

    x_nhwc : (N, H, W, Cin_p) bf16, channel axis already zero-padded to a lane
             multiple (padded channels are exactly zero).
    w_taps : (3, 3, Cin, Cout) = (ky, kx, cin, cout) with BN scale folded in.
    Returns (N, H, W, Cout_p) with Cout zero-padded to a multiple of 128.
    """
    # TODO(synk): for very large H*W*C, tile over output-row blocks with a halo
    # (memory_space=pl.ANY + manual make_async_copy) instead of whole images.
    N, H, W, cin_p = x_nhwc.shape
    _, _, cin, cout = w_taps.shape
    cout_p = _round_up(cout, LANE)
    Wp = _round_up(W + 2, 8)       # sublane-aligned padded width
    Hp = H + 2
    rows = Hp * Wp + GUARD

    # merged per-ky weights: rows ordered [kx=0 | kx=1 | kx=2], each group
    # zero-padded to cin_p rows so it lines up with the in-kernel tap concat.
    wk = jnp.pad(w_taps, ((0, 0), (0, 0), (0, cin_p - cin), (0, cout_p - cout)))
    wk = wk.reshape(3, 3 * cin_p, cout_p).astype(jnp.bfloat16)
    bb = jnp.pad(bias.astype(jnp.float32), (0, cout_p - cout)).reshape(1, cout_p)

    # bf16 end-to-end: the padded image is never upcast to f32.
    xp = jnp.pad(x_nhwc.astype(jnp.bfloat16),
                 ((0, 0), (1, 1), (1, Wp - W - 1), (0, 0)))
    xp = xp.reshape(N, Hp * Wp, cin_p)
    xp = jnp.pad(xp, ((0, 0), (0, GUARD), (0, 0)))

    return pl.pallas_call(
        _make_conv3x3_kernel(H, W, Wp),
        out_shape=jax.ShapeDtypeStruct((N, H, W, cout_p), out_dtype),
        grid_spec=pltpu.PrefetchScalarGridSpec(
            num_scalar_prefetch=0,
            grid=(N,),
            in_specs=[
                pl.BlockSpec((1, rows, cin_p), lambda n: (n, 0, 0)),
                pl.BlockSpec((3, 3 * cin_p, cout_p), lambda n: (0, 0, 0)),
                pl.BlockSpec((1, cout_p), lambda n: (0, 0)),
            ],
            out_specs=pl.BlockSpec((1, H, W, cout_p), lambda n: (n, 0, 0, 0)),
        ),
        compiler_params=pltpu.CompilerParams(
            dimension_semantics=("parallel",)),
    )(xp, wk, bb)


# ---------------------------------------------------------------------------
# JAX glue
# ---------------------------------------------------------------------------
def avg_pool(x_nhwc, s):
    if s == 1:
        return x_nhwc
    # TODO(synk): fold the stride-s pooling into the conv3x3 epilogue to save
    # the extra HBM round trip of y2 in downsample blocks.
    N, H, W, C = x_nhwc.shape
    p = x_nhwc.astype(jnp.float32).reshape(N, H // s, s, W // s, s, C)
    return p.mean(axis=(2, 4)).astype(x_nhwc.dtype)


def _bn_scale_bias(bn):
    s = bn["gamma"] / jnp.sqrt(bn["var"] + BN_EPS)
    return s, bn["beta"] - bn["mean"] * s


def _fold_1x1(w_oihw, bn):
    s, b = _bn_scale_bias(bn)
    return w_oihw[:, :, 0, 0].T * s[None, :], b           # (Cin, Cout), (Cout,)


def _fold_3x3(w_oihw, bn):
    s, b = _bn_scale_bias(bn)
    taps = jnp.transpose(w_oihw, (2, 3, 1, 0)) * s[None, None, None, :]
    return taps, b                                         # (3,3,Cin,Cout), (Cout,)


def bottleneck_forward_nhwc(x_nhwc, params, stride):
    """NHWC forward.  When stacking blocks, call this directly so activations
    stay NHWC end-to-end (no per-block layout transposes)."""
    N, H, W, cin = x_nhwc.shape
    x_flat = x_nhwc.reshape(N * H * W, cin)

    # conv1 (1x1) + bn1 + relu1 -> bf16, lane-padded channels
    w1, b1 = _fold_1x1(params["conv1_w"], params["bn1"])
    planes = w1.shape[1]
    y1 = fused_matmul(x_flat, w1, b1, apply_relu=True,
                      out_dtype=jnp.bfloat16, keep_padded_c=True)
    y1 = y1.reshape(N, H, W, y1.shape[-1])

    # conv2 (3x3, pad=1) + bn2 + relu2 -- merged-tap MXU matmuls, bf16 image
    w2, b2 = _fold_3x3(params["conv2_w"], params["bn2"])
    y2 = conv3x3_bn_relu(y1, w2, b2, out_dtype=jnp.bfloat16)

    # AvgPool2d(stride) (identity when stride == 1), f32 accumulation
    y2p = avg_pool(y2, stride)
    Ho, Wo, cp2 = y2p.shape[1], y2p.shape[2], y2p.shape[3]
    M2 = N * Ho * Wo

    # conv3 (1x1) + bn3, shortcut, residual add, relu3 -- one fused matmul
    w3, b3 = _fold_1x1(params["conv3_w"], params["bn3"])
    cexp = w3.shape[1]
    w3p = jnp.pad(w3, ((0, cp2 - planes), (0, 0)))         # rows follow y2p pad
    if "down_w" in params:
        # identity = bn_d(conv_d(avgpool(x))): the downsample 1x1 conv is folded
        # into the same accumulator as a second stacked-K operand (no concat).
        wd, bd = _fold_1x1(params["down_w"], params["bn_d"])
        xs = avg_pool(x_nhwc, stride).reshape(M2, cin)
        out = fused_matmul(y2p.reshape(M2, cp2), w3p, b3 + bd,
                           extra=(xs, wd), apply_relu=True,
                           out_dtype=jnp.float32)
    else:
        out = fused_matmul(y2p.reshape(M2, cp2), w3p, b3,
                           residual=x_flat, apply_relu=True,
                           out_dtype=jnp.float32)
    return out.reshape(N, Ho, Wo, cexp)


def bottleneck_forward(x_nchw, params, stride):
    # NCHW <-> NHWC only at the module boundary (PyTorch API compatibility).
    x_nhwc = jnp.transpose(x_nchw, (0, 2, 3, 1))
    out = bottleneck_forward_nhwc(x_nhwc, params, stride)
    return jnp.transpose(out, (0, 3, 1, 2))


# ---------------------------------------------------------------------------
# Parameter init (PyTorch-layout raw params) + pure-JAX reference
# ---------------------------------------------------------------------------
def init_params(key, inplanes, planes, stride):
    keys = jax.random.split(key, 8)

    def conv_w(k, cout, cin, ksz):
        return 0.1 * jax.random.normal(k, (cout, cin, ksz, ksz), jnp.float32)

    def bn_p(k, c):
        k1, k2, k3, k4 = jax.random.split(k, 4)
        return dict(gamma=1.0 + 0.1 * jax.random.normal(k1, (c,), jnp.float32),
                    beta=0.1 * jax.random.normal(k2, (c,), jnp.float32),
                    mean=0.1 * jax.random.normal(k3, (c,), jnp.float32),
                    var=0.5 + jax.random.uniform(k4, (c,), jnp.float32))

    p = {"conv1_w": conv_w(keys[0], planes, inplanes, 1),
         "bn1": bn_p(keys[1], planes),
         "conv2_w": conv_w(keys[2], planes, planes, 3),
         "bn2": bn_p(keys[3], planes),
         "conv3_w": conv_w(keys[4], planes * 4, planes, 1),
         "bn3": bn_p(keys[5], planes * 4)}
    if stride > 1 or inplanes != planes * 4:
        p["down_w"] = conv_w(keys[6], planes * 4, inplanes, 1)
        p["bn_d"] = bn_p(keys[7], planes * 4)
    return p


def bottleneck_reference(x, p, stride):
    hi = jax.lax.Precision.HIGHEST

    def conv(inp, w, pad=0):
        return jax.lax.conv_general_dilated(
            inp, w, window_strides=(1, 1), padding=((pad, pad), (pad, pad)),
            dimension_numbers=("NCHW", "OIHW", "NCHW"), precision=hi)

    def bn(y, b):
        s = b["gamma"] / jnp.sqrt(b["var"] + BN_EPS)
        return (y * s[None, :, None, None]
                + (b["beta"] - b["mean"] * s)[None, :, None, None])

    def pool(y, s):
        if s == 1:
            return y
        N, C, H, W = y.shape
        return y.reshape(N, C, H // s, s, W // s, s).mean(axis=(3, 5))

    out = jnp.maximum(bn(conv(x, p["conv1_w"]), p["bn1"]), 0.0)
    out = jnp.maximum(bn(conv(out, p["conv2_w"], pad=1), p["bn2"]), 0.0)
    out = pool(out, stride)
    out = bn(conv(out, p["conv3_w"]), p["bn3"])
    if "down_w" in p:
        identity = bn(conv(pool(x, stride), p["down_w"]), p["bn_d"])
    else:
        identity = x
    return jnp.maximum(out + identity, 0.0)


if __name__ == "__main__":
    N, H, W = 2, 16, 16
    configs = [
        dict(inplanes=32, planes=16, stride=2),   # downsample shortcut path
        dict(inplanes=64, planes=16, stride=1),   # identity shortcut path
    ]
    fwd = jax.jit(bottleneck_forward, static_argnames=("stride",))

    key = jax.random.PRNGKey(0)
    for cfg in configs:
        key, kx, kp = jax.random.split(key, 3)
        x = jax.random.normal(kx, (N, cfg["inplanes"], H, W), jnp.float32)
        params = init_params(kp, cfg["inplanes"], cfg["planes"], cfg["stride"])

        out = jax.block_until_ready(fwd(x, params, stride=cfg["stride"]))
        ref = bottleneck_reference(x, params, cfg["stride"])

        Ho, Wo = H // cfg["stride"], W // cfg["stride"]
        assert out.shape == (N, cfg["planes"] * 4, Ho, Wo), out.shape
        err = float(jnp.max(jnp.abs(out - ref)))
        assert jnp.allclose(out, ref, rtol=2e-2, atol=2e-2), err

    print("KERNEL_OK")
</pallas_src>

<mosaic_0001>
module attributes {stable_mosaic.version = 11 : i64} {
  func.func @kernel(%arg0: i32, %arg1: i32, %arg2: memref<256x32xbf16, #tpu.memory_space<vmem>>, %arg3: memref<32x128xbf16, #tpu.memory_space<vmem>>, %arg4: memref<1x128xf32, #tpu.memory_space<vmem>>, %arg5: memref<256x128xbf16, #tpu.memory_space<vmem>>, %arg6: memref<256x128xf32, #tpu.memory_space<vmem>>) attributes {dimension_semantics = [#tpu.dimension_semantics<parallel>, #tpu.dimension_semantics<arbitrary>], iteration_bounds = array<i64: 2, 1>, scalar_prefetch = 0 : i64, scratch_operands = 1 : i64, tpu.core_type = #tpu.core_type<tc>, window_params = [{transform_indices = @transform_0, window_bounds = array<i64: 256, 32>}, {transform_indices = @transform_1, window_bounds = array<i64: 32, 128>}, {pipeline_mode = #tpu.pipeline_mode<synchronous>, transform_indices = @transform_2, window_bounds = array<i64: 1, 128>}, {transform_indices = @transform_3, window_bounds = array<i64: 256, 128>}]} {
    %c0_i32 = arith.constant 0 : i32
    %0 = arith.cmpi eq, %arg1, %c0_i32 : i32
    %1 = arith.extui %0 : i1 to i32
    %c0_i32_0 = arith.constant 0 : i32
    %2 = arith.cmpi ne, %1, %c0_i32_0 : i32
    scf.if %2 {
      %cst_10 = arith.constant 0.000000e+00 : f32
      %12 = vector.broadcast %cst_10 : f32 to vector<256x128xf32>
      %c0_11 = arith.constant 0 : index
      %c0_12 = arith.constant 0 : index
      %13 = vector.load %arg6[%c0_11, %c0_12] : memref<256x128xf32, #tpu.memory_space<vmem>>, vector<256x128xf32>
      tpu.vector_store %arg6[%c0_11, %c0_12], %12 {strides = array<i32>} : memref<256x128xf32, #tpu.memory_space<vmem>>, vector<256x128xf32>,
    } else {
    }
    %c0 = arith.constant 0 : index
    %c0_1 = arith.constant 0 : index
    %3 = vector.load %arg6[%c0, %c0_1] : memref<256x128xf32, #tpu.memory_space<vmem>>, vector<256x128xf32>
    %c0_2 = arith.constant 0 : index
    %c0_3 = arith.constant 0 : index
    %4 = vector.load %arg2[%c0_2, %c0_3] : memref<256x32xbf16, #tpu.memory_space<vmem>>, vector<256x32xbf16>
    %c0_4 = arith.constant 0 : index
    %c0_5 = arith.constant 0 : index
    %5 = vector.load %arg3[%c0_4, %c0_5] : memref<32x128xbf16, #tpu.memory_space<vmem>>, vector<32x128xbf16>
    %cst = arith.constant dense<0.000000e+00> : vector<256x128xf32>
    %6 = tpu.matmul %4, %5, %cst {dimension_numbers = #tpu.dot_dimension_numbers<[1], [0], [0], [1], [0, 0, 1, 1], [], []>} : vector<256x32xbf16>, vector<32x128xbf16>, vector<256x128xf32> -> vector<256x128xf32>
    %7 = arith.addf %3, %6 : vector<256x128xf32>
    %c0_6 = arith.constant 0 : index
    %c0_7 = arith.constant 0 : index
    %8 = vector.load %arg6[%c0_6, %c0_7] : memref<256x128xf32, #tpu.memory_space<vmem>>, vector<256x128xf32>
    tpu.vector_store %arg6[%c0_6, %c0_7], %7 {strides = array<i32>} : memref<256x128xf32, #tpu.memory_space<vmem>>, vector<256x128xf32>,
    %c0_i32_8 = arith.constant 0 : i32
    %9 = arith.cmpi eq, %arg1, %c0_i32_8 : i32
    %10 = arith.extui %9 : i1 to i32
    %c0_i32_9 = arith.constant 0 : i32
    %11 = arith.cmpi ne, %10, %c0_i32_9 : i32
    scf.if %11 {
      %c0_10 = arith.constant 0 : index
      %c0_11 = arith.constant 0 : index
      %12 = vector.load %arg6[%c0_10, %c0_11] : memref<256x128xf32, #tpu.memory_space<vmem>>, vector<256x128xf32>
      %c0_12 = arith.constant 0 : index
      %c0_13 = arith.constant 0 : index
      %13 = vector.load %arg4[%c0_12, %c0_13] : memref<1x128xf32, #tpu.memory_space<vmem>>, vector<1x128xf32>
      %14 = vector.broadcast %13 : vector<1x128xf32> to vector<256x128xf32>
      %15 = arith.addf %12, %14 : vector<256x128xf32>
      %cst_14 = arith.constant 0.000000e+00 : f32
      %16 = vector.broadcast %cst_14 : f32 to vector<256x128xf32>
      %17 = arith.maximumf %15, %16 : vector<256x128xf32>
      %18 = arith.truncf %17 : vector<256x128xf32> to vector<256x128xbf16>
      %c0_15 = arith.constant 0 : index
      %c0_16 = arith.constant 0 : index
      %19 = vector.load %arg5[%c0_15, %c0_16] : memref<256x128xbf16, #tpu.memory_space<vmem>>, vector<256x128xbf16>
      tpu.vector_store %arg5[%c0_15, %c0_16], %18 {strides = array<i32>} : memref<256x128xbf16, #tpu.memory_space<vmem>>, vector<256x128xbf16>,
    } else {
    }
    return
  }
  func.func @transform_0(%arg0: i32, %arg1: i32) -> (i32, i32) {
    %c0_i32 = arith.constant 0 : i32
    return %arg0, %arg1 : i32, i32
  }
  func.func @transform_1(%arg0: i32, %arg1: i32) -> (i32, i32) {
    %c0_i32 = arith.constant 0 : i32
    %c0_i32_0 = arith.constant 0 : i32
    return %arg1, %c0_i32 : i32, i32
  }
  func.func @transform_2(%arg0: i32, %arg1: i32) -> (i32, i32) {
    %c0_i32 = arith.constant 0 : i32
    %c0_i32_0 = arith.constant 0 : i32
    %c0_i32_1 = arith.constant 0 : i32
    return %c0_i32, %c0_i32_0 : i32, i32
  }
  func.func @transform_3(%arg0: i32, %arg1: i32) -> (i32, i32) {
    %c0_i32 = arith.constant 0 : i32
    %c0_i32_0 = arith.constant 0 : i32
    return %arg0, %c0_i32 : i32, i32
  }
}

module attributes {stable_mosaic.version = 11 : i64} {
  func.func @kernel(%arg0: i32, %arg1: memref<1x440x128xbf16, #tpu.memory_space<vmem>>, %arg2: memref<3x384x128xbf16, #tpu.memory_space<vmem>>, %arg3: memref<1x128xf32, #tpu.memory_space<vmem>>, %arg4: memref<1x16x16x128xbf16, #tpu.memory_space<vmem>>) attributes {dimension_semantics = [#tpu.dimension_semantics<parallel>], iteration_bounds = array<i64: 2>, scalar_prefetch = 0 : i64, scratch_operands = 0 : i64, tpu.core_type = #tpu.core_type<tc>, window_params = [{transform_indices = @transform_0, window_bounds = array<i64: 1, 440, 128>}, {pipeline_mode = #tpu.pipeline_mode<synchronous>, transform_indices = @transform_1, window_bounds = array<i64: 3, 384, 128>}, {pipeline_mode = #tpu.pipeline_mode<synchronous>, transform_indices = @transform_2, window_bounds = array<i64: 1, 128>}, {transform_indices = @transform_3, window_bounds = array<i64: 1, 16, 16, 128>}]} {
    %c0 = arith.constant 0 : index
    %c0_0 = arith.constant 0 : index
    %c0_1 = arith.constant 0 : index
    %0 = vector.load %arg1[%c0, %c0_0, %c0_1] : memref<1x440x128xbf16, #tpu.memory_space<vmem>>, vector<1x384x128xbf16>
    %1 = vector.shape_cast %0 : vector<1x384x128xbf16> to vector<384x128xbf16>
    %c0_2 = arith.constant 0 : index
    %c1 = arith.constant 1 : index
    %c0_3 = arith.constant 0 : index
    %2 = vector.load %arg1[%c0_2, %c1, %c0_3] : memref<1x440x128xbf16, #tpu.memory_space<vmem>>, vector<1x384x128xbf16>
    %3 = vector.shape_cast %2 : vector<1x384x128xbf16> to vector<384x128xbf16>
    %c0_4 = arith.constant 0 : index
    %c2 = arith.constant 2 : index
    %c0_5 = arith.constant 0 : index
    %4 = vector.load %arg1[%c0_4, %c2, %c0_5] : memref<1x440x128xbf16, #tpu.memory_space<vmem>>, vector<1x384x128xbf16>
    %5 = vector.shape_cast %4 : vector<1x384x128xbf16> to vector<384x128xbf16>
    %6 = tpu.concatenate %1, %3, %5 in 1 : vector<384x128xbf16>, vector<384x128xbf16>, vector<384x128xbf16> -> vector<384x384xbf16>
    %c0_6 = arith.constant 0 : index
    %c0_7 = arith.constant 0 : index
    %c0_8 = arith.constant 0 : index
    %7 = vector.load %arg2[%c0_6, %c0_7, %c0_8] : memref<3x384x128xbf16, #tpu.memory_space<vmem>>, vector<1x384x128xbf16>
    %8 = vector.shape_cast %7 : vector<1x384x128xbf16> to vector<384x128xbf16>
    %cst = arith.constant dense<0.000000e+00> : vector<384x128xf32>
    %9 = tpu.matmul %6, %8, %cst {dimension_numbers = #tpu.dot_dimension_numbers<[1], [0], [0], [1], [0, 0, 1, 1], [], []>} : vector<384x384xbf16>, vector<384x128xbf16>, vector<384x128xf32> -> vector<384x128xf32>
    %c0_9 = arith.constant 0 : index
    %c24 = arith.constant 24 : index
    %c0_10 = arith.constant 0 : index
    %10 = vector.load %arg1[%c0_9, %c24, %c0_10] : memref<1x440x128xbf16, #tpu.memory_space<vmem>>, vector<1x384x128xbf16>
    %11 = vector.shape_cast %10 : vector<1x384x128xbf16> to vector<384x128xbf16>
    %c0_11 = arith.constant 0 : index
    %c25 = arith.constant 25 : index
    %c0_12 = arith.constant 0 : index
    %12 = vector.load %arg1[%c0_11, %c25, %c0_12] : memref<1x440x128xbf16, #tpu.memory_space<vmem>>, vector<1x384x128xbf16>
    %13 = vector.shape_cast %12 : vector<1x384x128xbf16> to vector<384x128xbf16>
    %c0_13 = arith.constant 0 : index
    %c26 = arith.constant 26 : index
    %c0_14 = arith.constant 0 : index
    %14 = vector.load %arg1[%c0_13, %c26, %c0_14] : memref<1x440x128xbf16, #tpu.memory_space<vmem>>, vector<1x384x128xbf16>
    %15 = vector.shape_cast %14 : vector<1x384x128xbf16> to vector<384x128xbf16>
    %16 = tpu.concatenate %11, %13, %15 in 1 : vector<384x128xbf16>, vector<384x128xbf16>, vector<384x128xbf16> -> vector<384x384xbf16>
    %c1_15 = arith.constant 1 : index
    %c0_16 = arith.constant 0 : index
    %c0_17 = arith.constant 0 : index
    %17 = vector.load %arg2[%c1_15, %c0_16, %c0_17] : memref<3x384x128xbf16, #tpu.memory_space<vmem>>, vector<1x384x128xbf16>
    %18 = vector.shape_cast %17 : vector<1x384x128xbf16> to vector<384x128xbf16>
    %cst_18 = arith.constant dense<0.000000e+00> : vector<384x128xf32>
    %19 = tpu.matmul %16, %18, %cst_18 {dimension_numbers = #tpu.dot_dimension_numbers<[1], [0], [0], [1], [0, 0, 1, 1], [], []>} : vector<384x384xbf16>, vector<384x128xbf16>, vector<384x128xf32> -> vector<384x128xf32>
    %20 = arith.addf %9, %19 : vector<384x128xf32>
    %c0_19 = arith.constant 0 : index
    %c48 = arith.constant 48 : index
    %c0_20 = arith.constant 0 : index
    %21 = vector.load %arg1[%c0_19, %c48, %c0_20] : memref<1x440x128xbf16, #tpu.memory_space<vmem>>, vector<1x384x128xbf16>
    %22 = vector.shape_cast %21 : vector<1x384x128xbf16> to vector<384x128xbf16>
    %c0_21 = arith.constant 0 : index
    %c49 = arith.constant 49 : index
    %c0_22 = arith.constant 0 : index
    %23 = vector.load %arg1[%c0_21, %c49, %c0_22] : memref<1x440x128xbf16, #tpu.memory_space<vmem>>, vector<1x384x128xbf16>
    %24 = vector.shape_cast %23 : vector<1x384x128xbf16> to vector<384x128xbf16>
    %c0_23 = arith.constant 0 : index
    %c50 = arith.constant 50 : index
    %c0_24 = arith.constant 0 : index
    %25 = vector.load %arg1[%c0_23, %c50, %c0_24] : memref<1x440x128xbf16, #tpu.memory_space<vmem>>, vector<1x384x128xbf16>
    %26 = vector.shape_cast %25 : vector<1x384x128xbf16> to vector<384x128xbf16>
    %27 = tpu.concatenate %22, %24, %26 in 1 : vector<384x128xbf16>, vector<384x128xbf16>, vector<384x128xbf16> -> vector<384x384xbf16>
    %c2_25 = arith.constant 2 : index
    %c0_26 = arith.constant 0 : index
    %c0_27 = arith.constant 0 : index
    %28 = vector.load %arg2[%c2_25, %c0_26, %c0_27] : memref<3x384x128xbf16, #tpu.memory_space<vmem>>, vector<1x384x128xbf16>
    %29 = vector.shape_cast %28 : vector<1x384x128xbf16> to vector<384x128xbf16>
    %cst_28 = arith.constant dense<0.000000e+00> : vector<384x128xf32>
    %30 = tpu.matmul %27, %29, %cst_28 {dimension_numbers = #tpu.dot_dimension_numbers<[1], [0], [0], [1], [0, 0, 1, 1], [], []>} : vector<384x384xbf16>, vector<384x128xbf16>, vector<384x128xf32> -> vector<384x128xf32>
    %31 = arith.addf %20, %30 : vector<384x128xf32>
    %c0_29 = arith.constant 0 : index
    %c0_30 = arith.constant 0 : index
    %32 = vector.load %arg3[%c0_29, %c0_30] : memref<1x128xf32, #tpu.memory_space<vmem>>, vector<1x128xf32>
    %33 = vector.broadcast %32 : vector<1x128xf32> to vector<384x128xf32>
    %34 = arith.addf %31, %33 : vector<384x128xf32>
    %cst_31 = arith.constant 0.000000e+00 : f32
    %35 = vector.broadcast %cst_31 : f32 to vector<384x128xf32>
    %36 = arith.maximumf %34, %35 : vector<384x128xf32>
    %37 = vector.shape_cast %36 : vector<384x128xf32> to vector<16x24x128xf32>
    %38 = vector.extract_strided_slice %37 {offsets = [0, 0, 0], sizes = [16, 16, 128], strides = [1, 1, 1]} : vector<16x24x128xf32> to vector<16x16x128xf32>
    %39 = arith.truncf %38 : vector<16x16x128xf32> to vector<16x16x128xbf16>
    %c0_32 = arith.constant 0 : index
    %c0_33 = arith.constant 0 : index
    %c0_34 = arith.constant 0 : index
    %c0_35 = arith.constant 0 : index
    %40 = vector.load %arg4[%c0_32, %c0_33, %c0_34, %c0_35] : memref<1x16x16x128xbf16, #tpu.memory_space<vmem>>, vector<1x16x16x128xbf16>
    %41 = vector.shape_cast %40 : vector<1x16x16x128xbf16> to vector<16x16x128xbf16>
    %42 = vector.shape_cast %39 : vector<16x16x128xbf16> to vector<1x16x16x128xbf16>
    tpu.vector_store %arg4[%c0_32, %c0_33, %c0_34, %c0_35], %42 {strides = array<i32>} : memref<1x16x16x128xbf16, #tpu.memory_space<vmem>>, vector<1x16x16x128xbf16>,
    return
  }
  func.func @transform_0(%arg0: i32) -> (i32, i32, i32) {
    %c0_i32 = arith.constant 0 : i32
    %c0_i32_0 = arith.constant 0 : i32
    %c0_i32_1 = arith.constant 0 : i32
    return %arg0, %c0_i32, %c0_i32_0 : i32, i32, i32
  }
  func.func @transform_1(%arg0: i32) -> (i32, i32, i32) {
    %c0_i32 = arith.constant 0 : i32
    %c0_i32_0 = arith.constant 0 : i32
    %c0_i32_1 = arith.constant 0 : i32
    %c0_i32_2 = arith.constant 0 : i32
    return %c0_i32, %c0_i32_0, %c0_i32_1 : i32, i32, i32
  }
  func.func @transform_2(%arg0: i32) -> (i32, i32) {
    %c0_i32 = arith.constant 0 : i32
    %c0_i32_0 = arith.constant 0 : i32
    %c0_i32_1 = arith.constant 0 : i32
    return %c0_i32, %c0_i32_0 : i32, i32
  }
  func.func @transform_3(%arg0: i32) -> (i32, i32, i32, i32) {
    %c0_i32 = arith.constant 0 : i32
    %c0_i32_0 = arith.constant 0 : i32
    %c0_i32_1 = arith.constant 0 : i32
    %c0_i32_2 = arith.constant 0 : i32
    return %arg0, %c0_i32, %c0_i32_0, %c0_i32_1 : i32, i32, i32, i32
  }
}

module attributes {stable_mosaic.version = 11 : i64} {
  func.func @kernel(%arg0: i32, %arg1: i32, %arg2: memref<128x128xbf16, #tpu.memory_space<vmem>>, %arg3: memref<128x128xbf16, #tpu.memory_space<vmem>>, %arg4: memref<1x128xf32, #tpu.memory_space<vmem>>, %arg5: memref<128x128xbf16, #tpu.memory_space<vmem>>, %arg6: memref<128x128xbf16, #tpu.memory_space<vmem>>, %arg7: memref<128x128xf32, #tpu.memory_space<vmem>>, %arg8: memref<128x128xf32, #tpu.memory_space<vmem>>) attributes {dimension_semantics = [#tpu.dimension_semantics<parallel>, #tpu.dimension_semantics<arbitrary>], iteration_bounds = array<i64: 1, 1>, scalar_prefetch = 0 : i64, scratch_operands = 1 : i64, tpu.core_type = #tpu.core_type<tc>, window_params = [{transform_indices = @transform_0, window_bounds = array<i64: 128, 128>}, {transform_indices = @transform_1, window_bounds = array<i64: 128, 128>}, {pipeline_mode = #tpu.pipeline_mode<synchronous>, transform_indices = @transform_2, window_bounds = array<i64: 1, 128>}, {transform_indices = @transform_3, window_bounds = array<i64: 128, 128>}, {pipeline_mode = #tpu.pipeline_mode<synchronous>, transform_indices = @transform_4, window_bounds = array<i64: 128, 128>}, {transform_indices = @transform_5, window_bounds = array<i64: 128, 128>}]} {
    %c0_i32 = arith.constant 0 : i32
    %0 = arith.cmpi eq, %arg1, %c0_i32 : i32
    %1 = arith.extui %0 : i1 to i32
    %c0_i32_0 = arith.constant 0 : i32
    %2 = arith.cmpi ne, %1, %c0_i32_0 : i32
    scf.if %2 {
      %c0_10 = arith.constant 0 : index
      %c0_11 = arith.constant 0 : index
      %12 = vector.load %arg5[%c0_10, %c0_11] : memref<128x128xbf16, #tpu.memory_space<vmem>>, vector<128x128xbf16>
      %c0_12 = arith.constant 0 : index
      %c0_13 = arith.constant 0 : index
      %13 = vector.load %arg6[%c0_12, %c0_13] : memref<128x128xbf16, #tpu.memory_space<vmem>>, vector<128x128xbf16>
      %cst_14 = arith.constant dense<0.000000e+00> : vector<128x128xf32>
      %14 = tpu.matmul %12, %13, %cst_14 {dimension_numbers = #tpu.dot_dimension_numbers<[1], [0], [0], [1], [0, 0, 1, 1], [], []>} : vector<128x128xbf16>, vector<128x128xbf16>, vector<128x128xf32> -> vector<128x128xf32>
      %c0_15 = arith.constant 0 : index
      %c0_16 = arith.constant 0 : index
      %15 = vector.load %arg8[%c0_15, %c0_16] : memref<128x128xf32, #tpu.memory_space<vmem>>, vector<128x128xf32>
      tpu.vector_store %arg8[%c0_15, %c0_16], %14 {strides = array<i32>} : memref<128x128xf32, #tpu.memory_space<vmem>>, vector<128x128xf32>,
    } else {
    }
    %c0 = arith.constant 0 : index
    %c0_1 = arith.constant 0 : index
    %3 = vector.load %arg8[%c0, %c0_1] : memref<128x128xf32, #tpu.memory_space<vmem>>, vector<128x128xf32>
    %c0_2 = arith.constant 0 : index
    %c0_3 = arith.constant 0 : index
    %4 = vector.load %arg2[%c0_2, %c0_3] : memref<128x128xbf16, #tpu.memory_space<vmem>>, vector<128x128xbf16>
    %c0_4 = arith.constant 0 : index
    %c0_5 = arith.constant 0 : index
    %5 = vector.load %arg3[%c0_4, %c0_5] : memref<128x128xbf16, #tpu.memory_space<vmem>>, vector<128x128xbf16>
    %cst = arith.constant dense<0.000000e+00> : vector<128x128xf32>
    %6 = tpu.matmul %4, %5, %cst {dimension_numbers = #tpu.dot_dimension_numbers<[1], [0], [0], [1], [0, 0, 1, 1], [], []>} : vector<128x128xbf16>, vector<128x128xbf16>, vector<128x128xf32> -> vector<128x128xf32>
    %7 = arith.addf %3, %6 : vector<128x128xf32>
    %c0_6 = arith.constant 0 : index
    %c0_7 = arith.constant 0 : index
    %8 = vector.load %arg8[%c0_6, %c0_7] : memref<128x128xf32, #tpu.memory_space<vmem>>, vector<128x128xf32>
    tpu.vector_store %arg8[%c0_6, %c0_7], %7 {strides = array<i32>} : memref<128x128xf32, #tpu.memory_space<vmem>>, vector<128x128xf32>,
    %c0_i32_8 = arith.constant 0 : i32
    %9 = arith.cmpi eq, %arg1, %c0_i32_8 : i32
    %10 = arith.extui %9 : i1 to i32
    %c0_i32_9 = arith.constant 0 : i32
    %11 = arith.cmpi ne, %10, %c0_i32_9 : i32
    scf.if %11 {
      %c0_10 = arith.constant 0 : index
      %c0_11 = arith.constant 0 : index
      %12 = vector.load %arg8[%c0_10, %c0_11] : memref<128x128xf32, #tpu.memory_space<vmem>>, vector<128x128xf32>
      %c0_12 = arith.constant 0 : index
      %c0_13 = arith.constant 0 : index
      %13 = vector.load %arg4[%c0_12, %c0_13] : memref<1x128xf32, #tpu.memory_space<vmem>>, vector<1x128xf32>
      %14 = vector.broadcast %13 : vector<1x128xf32> to vector<128x128xf32>
      %15 = arith.addf %12, %14 : vector<128x128xf32>
      %cst_14 = arith.constant 0.000000e+00 : f32
      %16 = vector.broadcast %cst_14 : f32 to vector<128x128xf32>
      %17 = arith.maximumf %15, %16 : vector<128x128xf32>
      %c0_15 = arith.constant 0 : index
      %c0_16 = arith.constant 0 : index
      %18 = vector.load %arg7[%c0_15, %c0_16] : memref<128x128xf32, #tpu.memory_space<vmem>>, vector<128x128xf32>
      tpu.vector_store %arg7[%c0_15, %c0_16], %17 {strides = array<i32>} : memref<128x128xf32, #tpu.memory_space<vmem>>, vector<128x128xf32>,
    } else {
    }
    return
  }
  func.func @transform_0(%arg0: i32, %arg1: i32) -> (i32, i32) {
    %c0_i32 = arith.constant 0 : i32
    return %arg0, %arg1 : i32, i32
  }
  func.func @transform_1(%arg0: i32, %arg1: i32) -> (i32, i32) {
    %c0_i32 = arith.constant 0 : i32
    %c0_i32_0 = arith.constant 0 : i32
    return %arg1, %c0_i32 : i32, i32
  }
  func.func @transform_2(%arg0: i32, %arg1: i32) -> (i32, i32) {
    %c0_i32 = arith.constant 0 : i32
    %c0_i32_0 = arith.constant 0 : i32
    %c0_i32_1 = arith.constant 0 : i32
    return %c0_i32, %c0_i32_0 : i32, i32
  }
  func.func @transform_3(%arg0: i32, %arg1: i32) -> (i32, i32) {
    %c0_i32 = arith.constant 0 : i32
    %c0_i32_0 = arith.constant 0 : i32
    return %arg0, %c0_i32 : i32, i32
  }
  func.func @transform_4(%arg0: i32, %arg1: i32) -> (i32, i32) {
    %c0_i32 = arith.constant 0 : i32
    %c0_i32_0 = arith.constant 0 : i32
    %c0_i32_1 = arith.constant 0 : i32
    return %c0_i32, %c0_i32_0 : i32, i32
  }
  func.func @transform_5(%arg0: i32, %arg1: i32) -> (i32, i32) {
    %c0_i32 = arith.constant 0 : i32
    %c0_i32_0 = arith.constant 0 : i32
    return %arg0, %c0_i32 : i32, i32
  }
}

</mosaic_0001>

<llo_original>
// kernel: bottleneck_forward.3
$region0: #{bottleneck_forward.3}
  #allocation0 [shape = 'u32[]', space=smem, size = 0x4, offset = 0x4, fixed_abs, tag = 'smem constant byte address 0x4 - core index']
  #allocation1 [shape = 'u32[144,128]{1,0:T(1,128)}', space=vmem, size = 0x12000, scoped, tag = 'internal scratch']
  #allocation2 [shape = 'f32[256,128]{1,0:T(8,128)}', space=vmem, size = 0x20000, scoped, tag = 'scratch operand']
  %s0 = inlined_call_operand.vmem [shape: bf16[512,32], index: 0, kind: input, shape index: {}]
  %s1 = inlined_call_operand.vmem [shape: bf16[32,128], index: 1, kind: input, shape index: {}]
  %s2 = inlined_call_operand.vmem [shape: f32[1,128], index: 2, kind: input, shape index: {}]
  %s3 = inlined_call_operand.vmem [shape: bf16[512,128], index: 3, kind: output, shape index: {}]
  %s4 = sld [smem:[#allocation0]]
  $region53: #{bottleneck_forward.3} parent=0
    _
  %s6 = ssub.s32 1, %s4
  %s7 = scalar_select 0, %s6, %s4
  loop: start=0, step=1, limit=4
  $region2: #{bottleneck_forward.3} parent=0 // loop_pre_header
    _
  $region3: #{bottleneck_forward.3} parent=0 // loop_header
    %s9 = sphi 0, %s13
    %p10 = scmp.ge.s32.totalorder %s9, 4
    %s16 = sphi 0, %s28
    %s17 = sphi 0, %s24
    %s18 = sphi 0, %s16
    %s19 = sphi 0, %s17
    %s20 = sphi 0, %s18
    %s21 = sphi 0, %s19
    %s33 = sphi 0, %s35
    %s36 = sphi 0, %s33
    %s37 = sphi 0, %s36
    %s53 = sphi 0, %s37
    %s59 = sphi 0, %s61
    %s62 = sphi 0, %s59
    %s63 = sphi 0, %s62
    %s79 = sphi 0, %s63
    %s83 = sphi 0, %s83
    %s85 = sphi 0, %s83
    %s86 = sphi 0, %s85
    %s100 = sphi 0, %s86
    %s106 = sphi 0, %s108
    %s109 = sphi 0, %s106
    %s110 = sphi 0, %s109
    %s126 = sphi 0, %s110
  $region4: #{bottleneck_forward.3} parent=0 // loop_header_branch
    %12 = sbr.rel (%p10) target = $region8
  $region5: #{bottleneck_forward.3} parent=0 // loop_body
    %s14 = ssub.s32 %s9, 1
    %s15 = ssub.s32 %s9, 2
    %s22 = sadd.s32 1, %s17
    %p23 = scmp.ge.s32.totalorder %s22, 1
    %s24 = scalar_select %p23, 0, %s22
    %s25 = sadd.s32 1, %s16
    %s26 = scalar_select %p23, %s25, %s16
    %p27 = scmp.ge.s32.totalorder %s26, 2
    %s28 = scalar_select %p27, 0, %s26
    %s29 = ssub.s32 %s16, %s28
    %s30 = ssub.s32 %s17, %s24
    %s31 = sor.u32 %s29, %s30
    %p32 = scmp.eq.s32.totalorder %s31, 0
    %s34 = sadd.s32 %s33, 1
    %s35 = scalar_select %p32, %s33, %s34
    %p38 = pneg %p32
    %p39 = scmp.eq.s32.totalorder %s9, 1
    %p40 = por %p38, %p39
    %p41 = scmp.ne.s32.totalorder %s33, %s36
    %p42 = scmp.eq.s32.totalorder %s9, 0
    %p43 = por %p41, %p42
    %p44 = scmp.ne.s32.totalorder %s33, %s36
    %p45 = scmp.eq.s32.totalorder %s14, 1
    %p46 = por %p44, %p45
    %p47 = scmp.ne.s32.totalorder %s36, %s37
    %p48 = scmp.eq.s32.totalorder %s14, 0
    %p49 = por %p47, %p48
    %p50 = scmp.ne.s32.totalorder %s36, %s37
    %p51 = scmp.eq.s32.totalorder %s15, 1
    %p52 = por %p50, %p51
    %p54 = scmp.ne.s32.totalorder %s37, %s53
    %p55 = scmp.eq.s32.totalorder %s15, 0
    %p56 = por %p54, %p55
    %s57 = ssub.s32 %s17, %s24
    %p58 = scmp.eq.s32.totalorder %s57, 0
    %s60 = sadd.s32 %s59, 1
    %s61 = scalar_select %p58, %s59, %s60
    %p64 = pneg %p58
    %p65 = scmp.eq.s32.totalorder %s9, 1
    %p66 = por %p64, %p65
    %p67 = scmp.ne.s32.totalorder %s59, %s62
    %p68 = scmp.eq.s32.totalorder %s9, 0
    %p69 = por %p67, %p68
    %p70 = scmp.ne.s32.totalorder %s59, %s62
    %p71 = scmp.eq.s32.totalorder %s14, 1
    %p72 = por %p70, %p71
    %p73 = scmp.ne.s32.totalorder %s62, %s63
    %p74 = scmp.eq.s32.totalorder %s14, 0
    %p75 = por %p73, %p74
    %p76 = scmp.ne.s32.totalorder %s62, %s63
    %p77 = scmp.eq.s32.totalorder %s15, 1
    %p78 = por %p76, %p77
    %p80 = scmp.ne.s32.totalorder %s63, %s79
    %p81 = scmp.eq.s32.totalorder %s15, 0
    %p82 = por %p80, %p81
    %s84 = sadd.s32 %s83, 1
    %p87 = scmp.eq.s32.totalorder %s9, 1
    %p88 = scmp.ne.s32.totalorder %s83, %s85
    %p89 = scmp.eq.s32.totalorder %s9, 0
    %p90 = por %p88, %p89
    %p91 = scmp.ne.s32.totalorder %s83, %s85
    %p92 = scmp.eq.s32.totalorder %s14, 1
    %p93 = por %p91, %p92
    %p94 = scmp.ne.s32.totalorder %s85, %s86
    %p95 = scmp.eq.s32.totalorder %s14, 0
    %p96 = por %p94, %p95
    %p97 = scmp.ne.s32.totalorder %s85, %s86
    %p98 = scmp.eq.s32.totalorder %s15, 1
    %p99 = por %p97, %p98
    %p101 = scmp.ne.s32.totalorder %s86, %s100
    %p102 = scmp.eq.s32.totalorder %s15, 0
    %p103 = por %p101, %p102
    %s104 = ssub.s32 %s16, %s28
    %p105 = scmp.eq.s32.totalorder %s104, 0
    %s107 = sadd.s32 %s106, 1
    %s108 = scalar_select %p105, %s106, %s107
    %p111 = pneg %p105
    %p112 = scmp.eq.s32.totalorder %s9, 1
    %p113 = por %p111, %p112
    %p114 = scmp.ne.s32.totalorder %s106, %s109
    %p115 = scmp.eq.s32.totalorder %s9, 0
    %p116 = por %p114, %p115
    %p117 = scmp.ne.s32.totalorder %s106, %s109
    %p118 = scmp.eq.s32.totalorder %s14, 1
    %p119 = por %p117, %p118
    %p120 = scmp.ne.s32.totalorder %s109, %s110
    %p121 = scmp.eq.s32.totalorder %s14, 0
    %p122 = por %p120, %p121
    %p123 = scmp.ne.s32.totalorder %s109, %s110
    %p124 = scmp.eq.s32.totalorder %s15, 1
    %p125 = por %p123, %p124
    %p127 = scmp.ne.s32.totalorder %s110, %s126
    %p128 = scmp.eq.s32.totalorder %s15, 0
    %p129 = por %p127, %p128
    %p130 = scmp.le.s32.totalorder 1, %s9
    %p131 = scmp.lt.s32.totalorder %s9, 3
    %p132 = pnand %p130, %p131
    %p133 = pneg %p132
    // Predicated region
    $region9: #{bottleneck_forward.3} parent=5 // pred_check
      _
    $region10: #{bottleneck_forward.3} parent=5 // pred_check_branch
      %135 = sbr.rel (%p132) target = $region12
    $region11: #{bottleneck_forward.3} parent=5 // pred_region
      %s136 = ssub.s32 %s9, 1
      // Predicated region
      $region13: #{bottleneck_forward.3} parent=11 // pred_check
        %p137 = pneg %p75
      $region14: #{bottleneck_forward.3} parent=11 // pred_check_branch
        %139 = sbr.rel (%p137) target = $region16
      $region15: #{bottleneck_forward.3} parent=11 // pred_region
        %s140 = smul.u32 4, %s19
        %p141 = scmp.lt.s32.totalorder %s140, 3
        %s142 = scalar_select %p141, %s140, 3
        %s143 = smul.addr %s142, 4
        %s144 = scalar_lea.vmem %s1, %s143
        %s145 = smul.u32 4, %s19
      $region16: #{bottleneck_forward.3} parent=11 // pred_fallthru
        _
      // Predicated region
      $region17: #{bottleneck_forward.3} parent=11 // pred_check
        %p146 = pneg %p96
      $region18: #{bottleneck_forward.3} parent=11 // pred_check_branch
        %148 = sbr.rel (%p146) target = $region20
      $region19: #{bottleneck_forward.3} parent=11 // pred_region
        _
      $region20: #{bottleneck_forward.3} parent=11 // pred_fallthru
        _
    $region12: #{bottleneck_forward.3} parent=5 // pred_fallthru
      _
    %p149 = scmp.lt.s32.totalorder %s9, 2
    // Predicated region
    $region21: #{bottleneck_forward.3} parent=5 // pred_check
      %p150 = pneg %p149
    $region22: #{bottleneck_forward.3} parent=5 // pred_check_branch
      %152 = sbr.rel (%p150) target = $region24
    $region23: #{bottleneck_forward.3} parent=5 // pred_region
      // Predicated region
      $region25: #{bottleneck_forward.3} parent=23 // pred_check
        %p153 = pneg %p43
      $region26: #{bottleneck_forward.3} parent=23 // pred_check_branch
        %155 = sbr.rel (%p153) target = $region28
      $region27: #{bottleneck_forward.3} parent=23 // pred_region
        %s156 = smul.u32 32, %s16
        %p157 = scmp.lt.s32.totalorder %s156, 63
        %s158 = scalar_select %p157, %s156, 63
        %p159 = scmp.lt.s32.totalorder %s17, 0
        %s160 = scalar_select %p159, %s17, 0
        %s161 = sadd.s32 %s160, %s158
        %s162 = smul.addr %s161, 4
        %s163 = scalar_lea.vmem %s0, %s162
        %s164 = smul.u32 32, %s16
      $region28: #{bottleneck_forward.3} parent=23 // pred_fallthru
        _
    $region24: #{bottleneck_forward.3} parent=5 // pred_fallthru
      _
    %p165 = scmp.le.s32.totalorder 1, %s9
    %p166 = scmp.lt.s32.totalorder %s9, 3
    %p167 = pnand %p165, %p166
    %p168 = pneg %p167
    // Predicated region
    $region29: #{bottleneck_forward.3} parent=5 // pred_check
      _
    $region30: #{bottleneck_forward.3} parent=5 // pred_check_branch
      %170 = sbr.rel (%p167) target = $region32
    $region31: #{bottleneck_forward.3} parent=5 // pred_region
      %s171 = ssub.s32 %s9, 1
      %s172 = smul.u32 32, %s18
      %p173 = scmp.lt.s32.totalorder %s172, 63
      %s174 = scalar_select %p173, %s172, 63
      %p175 = scmp.lt.s32.totalorder %s19, 0
      %s176 = scalar_select %p175, %s19, 0
      %s177 = sadd.s32 %s176, %s174
      %s178 = smul.addr %s177, 4
      %s179 = scalar_lea.vmem %s0, %s178
      %p180 = pneg %p49
      %p181 = pneg %p46
      %s182 = smul.u32 4, %s19
      %p183 = scmp.lt.s32.totalorder %s182, 3
      %s184 = scalar_select %p183, %s182, 3
      %s185 = smul.addr %s184, 4
      %s186 = scalar_lea.vmem %s1, %s185
      %p187 = pneg %p75
      %p188 = pneg %p72
      %p189 = pneg %p96
      %p190 = pneg %p93
      %p191 = pneg %p122
      %p192 = pneg %p119
      %s193 = smul.u32 32, %s18
      %p194 = scmp.lt.s32.totalorder %s193, 63
      %s195 = scalar_select %p194, %s193, 63
      %s196 = smul.addr %s195, 4
      %s197 = scalar_lea.vmem %s3, %s196
      %s198 = smul.u32 32, %s18
      %p199 = scmp.lt.s32.totalorder %s198, 63
      %s200 = scalar_select %p199, %s198, 63
      %p201 = scmp.lt.s32.totalorder %s19, 0
      %s202 = scalar_select %p201, %s19, 0
      %s203 = sadd.s32 %s202, %s200
      %s204 = smul.addr %s203, 4
      %s205 = scalar_lea.vmem %s0, %s204
      %s206 = smul.u32 32, %s18
      %s207 = smul.u32 4, %s19
      %p208 = scmp.lt.s32.totalorder %s207, 3
      %s209 = scalar_select %p208, %s207, 3
      %s210 = smul.addr %s209, 4
      %s211 = scalar_lea.vmem %s1, %s210
      %s212 = smul.u32 4, %s19
      %s213 = smul.u32 32, %s18
      %p214 = scmp.lt.s32.totalorder %s213, 63
      %s215 = scalar_select %p214, %s213, 63
      %s216 = smul.addr %s215, 4
      %s217 = scalar_lea.vmem %s3, %s216
      %s218 = smul.u32 32, %s18
      %p220 = scmp.eq.s32.totalorder %s19, 0
      // Predicated region
      $region33: #{bottleneck_forward.3} parent=31 // pred_check
        %p221 = pneg %p220
      $region34: #{bottleneck_forward.3} parent=31 // pred_check_branch
        %223 = sbr.rel (%p221) target = $region36
      $region35: #{bottleneck_forward.3} parent=31 // pred_region
        %224 = vst [vmem:[#allocation2] sm:$0xff] 0.0
        %225 = vst [vmem:[#allocation2 + $0x8] sm:$0xff] 0.0
        %226 = vst [vmem:[#allocation2 + $0x10] sm:$0xff] 0.0
        %227 = vst [vmem:[#allocation2 + $0x18] sm:$0xff] 0.0
        %228 = vst [vmem:[#allocation2 + $0x20] sm:$0xff] 0.0
        %229 = vst [vmem:[#allocation2 + $0x28] sm:$0xff] 0.0
        %230 = vst [vmem:[#allocation2 + $0x30] sm:$0xff] 0.0
        %231 = vst [vmem:[#allocation2 + $0x38] sm:$0xff] 0.0
        %232 = vst [vmem:[#allocation2 + $0x40] sm:$0xff] 0.0
        %233 = vst [vmem:[#allocation2 + $0x48] sm:$0xff] 0.0
        %234 = vst [vmem:[#allocation2 + $0x50] sm:$0xff] 0.0
        %235 = vst [vmem:[#allocation2 + $0x58] sm:$0xff] 0.0
        %236 = vst [vmem:[#allocation2 + $0x60] sm:$0xff] 0.0
        %237 = vst [vmem:[#allocation2 + $0x68] sm:$0xff] 0.0
        %238 = vst [vmem:[#allocation2 + $0x70] sm:$0xff] 0.0
        %239 = vst [vmem:[#allocation2 + $0x78] sm:$0xff] 0.0
        %240 = vst [vmem:[#allocation2 + $0x80] sm:$0xff] 0.0
        %241 = vst [vmem:[#allocation2 + $0x88] sm:$0xff] 0.0
        %242 = vst [vmem:[#allocation2 + $0x90] sm:$0xff] 0.0
        %243 = vst [vmem:[#allocation2 + $0x98] sm:$0xff] 0.0
        %244 = vst [vmem:[#allocation2 + $0xa0] sm:$0xff] 0.0
        %245 = vst [vmem:[#allocation2 + $0xa8] sm:$0xff] 0.0
        %246 = vst [vmem:[#allocation2 + $0xb0] sm:$0xff] 0.0
        %247 = vst [vmem:[#allocation2 + $0xb8] sm:$0xff] 0.0
        %248 = vst [vmem:[#allocation2 + $0xc0] sm:$0xff] 0.0
        %249 = vst [vmem:[#allocation2 + $0xc8] sm:$0xff] 0.0
        %250 = vst [vmem:[#allocation2 + $0xd0] sm:$0xff] 0.0
        %251 = vst [vmem:[#allocation2 + $0xd8] sm:$0xff] 0.0
        %252 = vst [vmem:[#allocation2 + $0xe0] sm:$0xff] 0.0
        %253 = vst [vmem:[#allocation2 + $0xe8] sm:$0xff] 0.0
        %254 = vst [vmem:[#allocation2 + $0xf0] sm:$0xff] 0.0
        %255 = vst [vmem:[#allocation2 + $0xf8] sm:$0xff] 0.0
      $region36: #{bottleneck_forward.3} parent=31 // pred_fallthru
        _
      %v256 = vld [vmem:[#allocation2] sm:$0xff]
      %v257 = vld [vmem:[#allocation2 + $0x8] sm:$0xff]
      %v258 = vld [vmem:[#allocation2 + $0x10] sm:$0xff]
      %v259 = vld [vmem:[#allocation2 + $0x18] sm:$0xff]
      %v260 = vld [vmem:[#allocation2 + $0x20] sm:$0xff]
      %v261 = vld [vmem:[#allocation2 + $0x28] sm:$0xff]
      %v262 = vld [vmem:[#allocation2 + $0x30] sm:$0xff]
      %v263 = vld [vmem:[#allocation2 + $0x38] sm:$0xff]
      %v264 = vld [vmem:[#allocation2 + $0x40] sm:$0xff]
      %v265 = vld [vmem:[#allocation2 + $0x48] sm:$0xff]
      %v266 = vld [vmem:[#allocation2 + $0x50] sm:$0xff]
      %v267 = vld [vmem:[#allocation2 + $0x58] sm:$0xff]
      %v268 = vld [vmem:[#allocation2 + $0x60] sm:$0xff]
      %v269 = vld [vmem:[#allocation2 + $0x68] sm:$0xff]
      %v270 = vld [vmem:[#allocation2 + $0x70] sm:$0xff]
      %v271 = vld [vmem:[#allocation2 + $0x78] sm:$0xff]
      %v272 = vld [vmem:[#allocation2 + $0x80] sm:$0xff]
      %v273 = vld [vmem:[#allocation2 + $0x88] sm:$0xff]
      %v274 = vld [vmem:[#allocation2 + $0x90] sm:$0xff]
      %v275 = vld [vmem:[#allocation2 + $0x98] sm:$0xff]
      %v276 = vld [vmem:[#allocation2 + $0xa0] sm:$0xff]
      %v277 = vld [vmem:[#allocation2 + $0xa8] sm:$0xff]
      %v278 = vld [vmem:[#allocation2 + $0xb0] sm:$0xff]
      %v279 = vld [vmem:[#allocation2 + $0xb8] sm:$0xff]
      %v280 = vld [vmem:[#allocation2 + $0xc0] sm:$0xff]
      %v281 = vld [vmem:[#allocation2 + $0xc8] sm:$0xff]
      %v282 = vld [vmem:[#allocation2 + $0xd0] sm:$0xff]
      %v283 = vld [vmem:[#allocation2 + $0xd8] sm:$0xff]
      %v284 = vld [vmem:[#allocation2 + $0xe0] sm:$0xff]
      %v285 = vld [vmem:[#allocation2 + $0xe8] sm:$0xff]
      %v286 = vld [vmem:[#allocation2 + $0xf0] sm:$0xff]
      %v287 = vld [vmem:[#allocation2 + $0xf8] sm:$0xff]
      %v288 = vld [vmem:[%s205] sm:$0xf]
      %v289 = vld [vmem:[%s205 + $0x4] sm:$0xf]
      %v290 = vld [vmem:[%s205 + $0x8] sm:$0xf]
      %v291 = vld [vmem:[%s205 + $0xc] sm:$0xf]
      %v292 = vld [vmem:[%s205 + $0x10] sm:$0xf]
      %v293 = vld [vmem:[%s205 + $0x14] sm:$0xf]
      %v294 = vld [vmem:[%s205 + $0x18] sm:$0xf]
      %v295 = vld [vmem:[%s205 + $0x1c] sm:$0xf]
      %v296 = vld [vmem:[%s205 + $0x20] sm:$0xf]
      %v297 = vld [vmem:[%s205 + $0x24] sm:$0xf]
      %v298 = vld [vmem:[%s205 + $0x28] sm:$0xf]
      %v299 = vld [vmem:[%s205 + $0x2c] sm:$0xf]
      %v300 = vld [vmem:[%s205 + $0x30] sm:$0xf]
      %v301 = vld [vmem:[%s205 + $0x34] sm:$0xf]
      %v302 = vld [vmem:[%s205 + $0x38] sm:$0xf]
      %v303 = vld [vmem:[%s205 + $0x3c] sm:$0xf]
      %v304 = vld [vmem:[%s205 + $0x40] sm:$0xf]
      %v305 = vld [vmem:[%s205 + $0x44] sm:$0xf]
      %v306 = vld [vmem:[%s205 + $0x48] sm:$0xf]
      %v307 = vld [vmem:[%s205 + $0x4c] sm:$0xf]
      %v308 = vld [vmem:[%s205 + $0x50] sm:$0xf]
      %v309 = vld [vmem:[%s205 + $0x54] sm:$0xf]
      %v310 = vld [vmem:[%s205 + $0x58] sm:$0xf]
      %v311 = vld [vmem:[%s205 + $0x5c] sm:$0xf]
      %v312 = vld [vmem:[%s205 + $0x60] sm:$0xf]
      %v313 = vld [vmem:[%s205 + $0x64] sm:$0xf]
      %v314 = vld [vmem:[%s205 + $0x68] sm:$0xf]
      %v315 = vld [vmem:[%s205 + $0x6c] sm:$0xf]
      %v316 = vld [vmem:[%s205 + $0x70] sm:$0xf]
      %v317 = vld [vmem:[%s205 + $0x74] sm:$0xf]
      %v318 = vld [vmem:[%s205 + $0x78] sm:$0xf]
      %v319 = vld [vmem:[%s205 + $0x7c] sm:$0xf]
      %v320 = vld [vmem:[%s211] sm:$0xf]
      %v321 = vld [vmem:[%s211 + $0x4] sm:$0xf]
      %v322 = vld [vmem:[%s211 + $0x8] sm:$0xf]
      %v323 = vld [vmem:[%s211 + $0xc] sm:$0xf]
      %v356 = vunpack.c.l.b16 %v288
      %v357 = vunpack.c.l.b16 %v289
      %v358 = vunpack.c.l.b16 %v290
      %v359 = vunpack.c.l.b16 %v291
      %v360 = vunpack.c.l.b16 %v292
      %v361 = vunpack.c.l.b16 %v293
      %v362 = vunpack.c.l.b16 %v294
      %v363 = vunpack.c.l.b16 %v295
      %v364 = vunpack.c.l.b16 %v296
      %v365 = vunpack.c.l.b16 %v297
      %v366 = vunpack.c.l.b16 %v298
      %v367 = vunpack.c.l.b16 %v299
      %v368 = vunpack.c.l.b16 %v300
      %v369 = vunpack.c.l.b16 %v301
      %v370 = vunpack.c.l.b16 %v302
      %v371 = vunpack.c.l.b16 %v303
      %v372 = vunpack.c.l.b16 %v304
      %v373 = vunpack.c.l.b16 %v305
      %v374 = vunpack.c.l.b16 %v306
      %v375 = vunpack.c.l.b16 %v307
      %v376 = vunpack.c.l.b16 %v308
      %v377 = vunpack.c.l.b16 %v309
      %v378 = vunpack.c.l.b16 %v310
      %v379 = vunpack.c.l.b16 %v311
      %v380 = vunpack.c.l.b16 %v312
      %v381 = vunpack.c.l.b16 %v313
      %v382 = vunpack.c.l.b16 %v314
      %v383 = vunpack.c.l.b16 %v315
      %v384 = vunpack.c.l.b16 %v316
      %v385 = vunpack.c.l.b16 %v317
      %v386 = vunpack.c.l.b16 %v318
      %v387 = vunpack.c.l.b16 %v319
      %v388 = vpack.c.b16 %v357, %v356
      %v389 = vpack.c.b16 %v359, %v358
      %v390 = vpack.c.b16 %v361, %v360
      %v391 = vpack.c.b16 %v363, %v362
      %v392 = vpack.c.b16 %v365, %v364
      %v393 = vpack.c.b16 %v367, %v366
      %v394 = vpack.c.b16 %v369, %v368
      %v395 = vpack.c.b16 %v371, %v370
      %v396 = vpack.c.b16 %v373, %v372
      %v397 = vpack.c.b16 %v375, %v374
      %v398 = vpack.c.b16 %v377, %v376
      %v399 = vpack.c.b16 %v379, %v378
      %v400 = vpack.c.b16 %v381, %v380
      %v401 = vpack.c.b16 %v383, %v382
      %v402 = vpack.c.b16 %v385, %v384
      %v403 = vpack.c.b16 %v387, %v386
      %v408 = vunpack.c.l.b16 %v320
      %v409 = vunpack.c.l.b16 %v321
      %v410 = vunpack.c.l.b16 %v322
      %v411 = vunpack.c.l.b16 %v323
      %v412 = vpack.c.b16 %v409, %v408
      %v413 = vpack.c.b16 %v411, %v410
      %vm416 = vcmask 261120
      %v418 = vsel %vm416, %v388, 0
      %v421 = vsel %vm416, %v389, 0
      %v424 = vsel %vm416, %v390, 0
      %v427 = vsel %vm416, %v391, 0
      %v430 = vsel %vm416, %v392, 0
      %v433 = vsel %vm416, %v393, 0
      %v436 = vsel %vm416, %v394, 0
      %v439 = vsel %vm416, %v395, 0
      %v442 = vsel %vm416, %v396, 0
      %v445 = vsel %vm416, %v397, 0
      %v448 = vsel %vm416, %v398, 0
      %v451 = vsel %vm416, %v399, 0
      %v454 = vsel %vm416, %v400, 0
      %v457 = vsel %vm416, %v401, 0
      %v460 = vsel %vm416, %v402, 0
      %v463 = vsel %vm416, %v403, 0
      %465 = vmatprep.subr.bf16.mxu0 0
      %466 = vmatpush1.bf16.msra.mxu0 0
      %467 = vmatprep.subr.bf16.mxu0 0
      %468 = vmatpush1.bf16.msra.mxu0 0
      %469 = vmatprep.subr.bf16.mxu0 0
      %470 = vmatpush1.bf16.msra.mxu0 0
      %471 = vmatprep.subr.bf16.mxu0 0
      %472 = vmatpush1.bf16.msra.mxu0 0
      %473 = vmatprep.subr.bf16.mxu0 0
      %474 = vmatpush1.bf16.msra.mxu0 0
      %475 = vmatprep.subr.bf16.mxu0 0
      %476 = vmatpush1.bf16.msra.mxu0 0
      %477 = vmatprep.subr.bf16.mxu0 0
      %478 = vmatpush1.bf16.msra.mxu0 %v413
      %479 = vmatprep.subr.bf16.mxu0 0
      %480 = vmatpush1.bf16.msra.mxu0 %v412
      %481 = vmatprep.subr.bf16.mxu0 0
      %482 = vmatpush2.bf16.msra.mxu0 0
      %483 = vmatprep.subr.bf16.mxu0 0
      %484 = vmatpush2.bf16.msra.mxu0 0
      %485 = vmatprep.subr.bf16.mxu0 0
      %486 = vmatpush2.bf16.msra.mxu0 0
      %487 = vmatprep.subr.bf16.mxu0 0
      %488 = vmatpush2.bf16.msra.mxu0 0
      %489 = vmatprep.subr.bf16.mxu0 0
      %490 = vmatpush2.bf16.msra.mxu0 0
      %491 = vmatprep.subr.bf16.mxu0 0
      %492 = vmatpush2.bf16.msra.mxu0 0
      %493 = vmatprep.subr.bf16.mxu0 0
      %494 = vmatpush2.bf16.msra.mxu0 0
      %495 = vmatprep.subr.bf16.mxu0 0
      %496 = vmatpush2.bf16.msra.mxu0 0
      %497 = vmatprep.mubr.bf16.mxu0 0
      %498 = vmatmul.mubr.bf16.gmra.mxu0 %v418
      %v499 = vpop.f32.mrf.mxu0
      %v500 = vadd.f32 0.0, %v499
      %v501 = vpop.f32.mrf.mxu0
      %v502 = vpop.f32.mrf.mxu0
      %v503 = vadd.f32 0.0, %v502
      %v504 = vpop.f32.mrf.mxu0
      %505 = vmatprep.mubr.bf16.mxu0 0
      %506 = vmatmul.mubr.bf16.gmra.mxu0 %v421
      %v507 = vpop.f32.mrf.mxu0
      %v508 = vadd.f32 0.0, %v507
      %v509 = vpop.f32.mrf.mxu0
      %v510 = vpop.f32.mrf.mxu0
      %v511 = vadd.f32 0.0, %v510
      %v512 = vpop.f32.mrf.mxu0
      %513 = vmatprep.mubr.bf16.mxu0 0
      %514 = vmatmul.mubr.bf16.gmra.mxu0 %v424
      %v515 = vpop.f32.mrf.mxu0
      %v516 = vadd.f32 0.0, %v515
      %v517 = vpop.f32.mrf.mxu0
      %v518 = vpop.f32.mrf.mxu0
      %v519 = vadd.f32 0.0, %v518
      %v520 = vpop.f32.mrf.mxu0
      %521 = vmatprep.mubr.bf16.mxu0 0
      %522 = vmatmul.mubr.bf16.gmra.mxu0 %v427
      %v523 = vpop.f32.mrf.mxu0
      %v524 = vadd.f32 0.0, %v523
      %v525 = vpop.f32.mrf.mxu0
      %v526 = vpop.f32.mrf.mxu0
      %v527 = vadd.f32 0.0, %v526
      %v528 = vpop.f32.mrf.mxu0
      %529 = vmatprep.mubr.bf16.mxu0 0
      %530 = vmatmul.mubr.bf16.gmra.mxu0 %v430
      %v531 = vpop.f32.mrf.mxu0
      %v532 = vadd.f32 0.0, %v531
      %v533 = vpop.f32.mrf.mxu0
      %v534 = vpop.f32.mrf.mxu0
      %v535 = vadd.f32 0.0, %v534
      %v536 = vpop.f32.mrf.mxu0
      %537 = vmatprep.mubr.bf16.mxu0 0
      %538 = vmatmul.mubr.bf16.gmra.mxu0 %v433
      %v539 = vpop.f32.mrf.mxu0
      %v540 = vadd.f32 0.0, %v539
      %v541 = vpop.f32.mrf.mxu0
      %v542 = vpop.f32.mrf.mxu0
      %v543 = vadd.f32 0.0, %v542
      %v544 = vpop.f32.mrf.mxu0
      %545 = vmatprep.mubr.bf16.mxu0 0
      %546 = vmatmul.mubr.bf16.gmra.mxu0 %v436
      %v547 = vpop.f32.mrf.mxu0
      %v548 = vadd.f32 0.0, %v547
      %v549 = vpop.f32.mrf.mxu0
      %v550 = vpop.f32.mrf.mxu0
      %v551 = vadd.f32 0.0, %v550
      %v552 = vpop.f32.mrf.mxu0
      %553 = vmatprep.mubr.bf16.mxu0 0
      %554 = vmatmul.mubr.bf16.gmra.mxu0 %v439
      %v555 = vpop.f32.mrf.mxu0
      %v556 = vadd.f32 0.0, %v555
      %v557 = vpop.f32.mrf.mxu0
      %v558 = vpop.f32.mrf.mxu0
      %v559 = vadd.f32 0.0, %v558
      %v560 = vpop.f32.mrf.mxu0
      %561 = vmatprep.mubr.bf16.mxu0 0
      %562 = vmatmul.mubr.bf16.gmra.mxu0 %v442
      %v563 = vpop.f32.mrf.mxu0
      %v564 = vadd.f32 0.0, %v563
      %v565 = vpop.f32.mrf.mxu0
      %v566 = vpop.f32.mrf.mxu0
      %v567 = vadd.f32 0.0, %v566
      %v568 = vpop.f32.mrf.mxu0
      %569 = vmatprep.mubr.bf16.mxu0 0
      %570 = vmatmul.mubr.bf16.gmra.mxu0 %v445
      %v571 = vpop.f32.mrf.mxu0
      %v572 = vadd.f32 0.0, %v571
      %v573 = vpop.f32.mrf.mxu0
      %v574 = vpop.f32.mrf.mxu0
      %v575 = vadd.f32 0.0, %v574
      %v576 = vpop.f32.mrf.mxu0
      %577 = vmatprep.mubr.bf16.mxu0 0
      %578 = vmatmul.mubr.bf16.gmra.mxu0 %v448
      %v579 = vpop.f32.mrf.mxu0
      %v580 = vadd.f32 0.0, %v579
      %v581 = vpop.f32.mrf.mxu0
      %v582 = vpop.f32.mrf.mxu0
      %v583 = vadd.f32 0.0, %v582
      %v584 = vpop.f32.mrf.mxu0
      %585 = vmatprep.mubr.bf16.mxu0 0
      %586 = vmatmul.mubr.bf16.gmra.mxu0 %v451
      %v587 = vpop.f32.mrf.mxu0
      %v588 = vadd.f32 0.0, %v587
      %v589 = vpop.f32.mrf.mxu0
      %v590 = vpop.f32.mrf.mxu0
      %v591 = vadd.f32 0.0, %v590
      %v592 = vpop.f32.mrf.mxu0
      %593 = vmatprep.mubr.bf16.mxu0 0
      %594 = vmatmul.mubr.bf16.gmra.mxu0 %v454
      %v595 = vpop.f32.mrf.mxu0
      %v596 = vadd.f32 0.0, %v595
      %v597 = vpop.f32.mrf.mxu0
      %v598 = vpop.f32.mrf.mxu0
      %v599 = vadd.f32 0.0, %v598
      %v600 = vpop.f32.mrf.mxu0
      %601 = vmatprep.mubr.bf16.mxu0 0
      %602 = vmatmul.mubr.bf16.gmra.mxu0 %v457
      %v603 = vpop.f32.mrf.mxu0
      %v604 = vadd.f32 0.0, %v603
      %v605 = vpop.f32.mrf.mxu0
      %v606 = vpop.f32.mrf.mxu0
      %v607 = vadd.f32 0.0, %v606
      %v608 = vpop.f32.mrf.mxu0
      %609 = vmatprep.mubr.bf16.mxu0 0
      %610 = vmatmul.mubr.bf16.gmra.mxu0 %v460
      %v611 = vpop.f32.mrf.mxu0
      %v612 = vadd.f32 0.0, %v611
      %v613 = vpop.f32.mrf.mxu0
      %v614 = vpop.f32.mrf.mxu0
      %v615 = vadd.f32 0.0, %v614
      %v616 = vpop.f32.mrf.mxu0
      %617 = vmatprep.mubr.bf16.mxu0 0
      %618 = vmatmul.mubr.bf16.gmra.mxu0 %v463
      %v619 = vpop.f32.mrf.mxu0
      %v620 = vadd.f32 0.0, %v619
      %v621 = vpop.f32.mrf.mxu0
      %v622 = vpop.f32.mrf.mxu0
      %v623 = vadd.f32 0.0, %v622
      %v624 = vpop.f32.mrf.mxu0
      %625 = vdwg.mxu0
      %v626 = vadd.f32 %v256, %v500
      %v627 = vadd.f32 %v257, %v503
      %v628 = vadd.f32 %v258, %v508
      %v629 = vadd.f32 %v259, %v511
      %v630 = vadd.f32 %v260, %v516
      %v631 = vadd.f32 %v261, %v519
      %v632 = vadd.f32 %v262, %v524
      %v633 = vadd.f32 %v263, %v527
      %v634 = vadd.f32 %v264, %v532
      %v635 = vadd.f32 %v265, %v535
      %v636 = vadd.f32 %v266, %v540
      %v637 = vadd.f32 %v267, %v543
      %v638 = vadd.f32 %v268, %v548
      %v639 = vadd.f32 %v269, %v551
      %v640 = vadd.f32 %v270, %v556
      %v641 = vadd.f32 %v271, %v559
      %v642 = vadd.f32 %v272, %v564
      %v643 = vadd.f32 %v273, %v567
      %v644 = vadd.f32 %v274, %v572
      %v645 = vadd.f32 %v275, %v575
      %v646 = vadd.f32 %v276, %v580
      %v647 = vadd.f32 %v277, %v583
      %v648 = vadd.f32 %v278, %v588
      %v649 = vadd.f32 %v279, %v591
      %v650 = vadd.f32 %v280, %v596
      %v651 = vadd.f32 %v281, %v599
      %v652 = vadd.f32 %v282, %v604
      %v653 = vadd.f32 %v283, %v607
      %v654 = vadd.f32 %v284, %v612
      %v655 = vadd.f32 %v285, %v615
      %v656 = vadd.f32 %v286, %v620
      %v657 = vadd.f32 %v287, %v623
      %658 = vst [vmem:[#allocation2] sm:$0xff] %v626
      %659 = vst [vmem:[#allocation2 + $0x8] sm:$0xff] %v627
      %660 = vst [vmem:[#allocation2 + $0x10] sm:$0xff] %v628
      %661 = vst [vmem:[#allocation2 + $0x18] sm:$0xff] %v629
      %662 = vst [vmem:[#allocation2 + $0x20] sm:$0xff] %v630
      %663 = vst [vmem:[#allocation2 + $0x28] sm:$0xff] %v631
      %664 = vst [vmem:[#allocation2 + $0x30] sm:$0xff] %v632
      %665 = vst [vmem:[#allocation2 + $0x38] sm:$0xff] %v633
      %666 = vst [vmem:[#allocation2 + $0x40] sm:$0xff] %v634
      %667 = vst [vmem:[#allocation2 + $0x48] sm:$0xff] %v635
      %668 = vst [vmem:[#allocation2 + $0x50] sm:$0xff] %v636
      %669 = vst [vmem:[#allocation2 + $0x58] sm:$0xff] %v637
      %670 = vst [vmem:[#allocation2 + $0x60] sm:$0xff] %v638
      %671 = vst [vmem:[#allocation2 + $0x68] sm:$0xff] %v639
      %672 = vst [vmem:[#allocation2 + $0x70] sm:$0xff] %v640
      %673 = vst [vmem:[#allocation2 + $0x78] sm:$0xff] %v641
      %674 = vst [vmem:[#allocation2 + $0x80] sm:$0xff] %v642
      %675 = vst [vmem:[#allocation2 + $0x88] sm:$0xff] %v643
      %676 = vst [vmem:[#allocation2 + $0x90] sm:$0xff] %v644
      %677 = vst [vmem:[#allocation2 + $0x98] sm:$0xff] %v645
      %678 = vst [vmem:[#allocation2 + $0xa0] sm:$0xff] %v646
      %679 = vst [vmem:[#allocation2 + $0xa8] sm:$0xff] %v647
      %680 = vst [vmem:[#allocation2 + $0xb0] sm:$0xff] %v648
      %681 = vst [vmem:[#allocation2 + $0xb8] sm:$0xff] %v649
      %682 = vst [vmem:[#allocation2 + $0xc0] sm:$0xff] %v650
      %683 = vst [vmem:[#allocation2 + $0xc8] sm:$0xff] %v651
      %684 = vst [vmem:[#allocation2 + $0xd0] sm:$0xff] %v652
      %685 = vst [vmem:[#allocation2 + $0xd8] sm:$0xff] %v653
      %686 = vst [vmem:[#allocation2 + $0xe0] sm:$0xff] %v654
      %687 = vst [vmem:[#allocation2 + $0xe8] sm:$0xff] %v655
      %688 = vst [vmem:[#allocation2 + $0xf0] sm:$0xff] %v656
      %689 = vst [vmem:[#allocation2 + $0xf8] sm:$0xff] %v657
      // Predicated region
      $region37: #{bottleneck_forward.3} parent=31 // pred_check
        %p690 = pneg %p220
      $region38: #{bottleneck_forward.3} parent=31 // pred_check_branch
        %692 = sbr.rel (%p690) target = $region40
      $region39: #{bottleneck_forward.3} parent=31 // pred_region
        %v693 = vld [vmem:[#allocation2] sm:$0xff]
        %v694 = vld [vmem:[#allocation2 + $0x8] sm:$0xff]
        %v695 = vld [vmem:[#allocation2 + $0x10] sm:$0xff]
        %v696 = vld [vmem:[#allocation2 + $0x18] sm:$0xff]
        %v697 = vld [vmem:[#allocation2 + $0x20] sm:$0xff]
        %v698 = vld [vmem:[#allocation2 + $0x28] sm:$0xff]
        %v699 = vld [vmem:[#allocation2 + $0x30] sm:$0xff]
        %v700 = vld [vmem:[#allocation2 + $0x38] sm:$0xff]
        %v701 = vld [vmem:[#allocation2 + $0x40] sm:$0xff]
        %v702 = vld [vmem:[#allocation2 + $0x48] sm:$0xff]
        %v703 = vld [vmem:[#allocation2 + $0x50] sm:$0xff]
        %v704 = vld [vmem:[#allocation2 + $0x58] sm:$0xff]
        %v705 = vld [vmem:[#allocation2 + $0x60] sm:$0xff]
        %v706 = vld [vmem:[#allocation2 + $0x68] sm:$0xff]
        %v707 = vld [vmem:[#allocation2 + $0x70] sm:$0xff]
        %v708 = vld [vmem:[#allocation2 + $0x78] sm:$0xff]
        %v709 = vld [vmem:[#allocation2 + $0x80] sm:$0xff]
        %v710 = vld [vmem:[#allocation2 + $0x88] sm:$0xff]
        %v711 = vld [vmem:[#allocation2 + $0x90] sm:$0xff]
        %v712 = vld [vmem:[#allocation2 + $0x98] sm:$0xff]
        %v713 = vld [vmem:[#allocation2 + $0xa0] sm:$0xff]
        %v714 = vld [vmem:[#allocation2 + $0xa8] sm:$0xff]
        %v715 = vld [vmem:[#allocation2 + $0xb0] sm:$0xff]
        %v716 = vld [vmem:[#allocation2 + $0xb8] sm:$0xff]
        %v717 = vld [vmem:[#allocation2 + $0xc0] sm:$0xff]
        %v718 = vld [vmem:[#allocation2 + $0xc8] sm:$0xff]
        %v719 = vld [vmem:[#allocation2 + $0xd0] sm:$0xff]
        %v720 = vld [vmem:[#allocation2 + $0xd8] sm:$0xff]
        %v721 = vld [vmem:[#allocation2 + $0xe0] sm:$0xff]
        %v722 = vld [vmem:[#allocation2 + $0xe8] sm:$0xff]
        %v723 = vld [vmem:[#allocation2 + $0xf0] sm:$0xff]
        %v724 = vld [vmem:[#allocation2 + $0xf8] sm:$0xff]
        %v725 = vld [vmem:[%s2] sm:$0x1]
        %v727 = vlaneseq
        %v728 = vshrl.u32 %v727, 7
        %v729 = vsub.s32 0, %v728
        %v730 = vrot.slane %v725, %v729
        %v732 = vadd.f32 %v693, %v730
        %v733 = vadd.f32 %v694, %v730
        %v734 = vadd.f32 %v695, %v730
        %v735 = vadd.f32 %v696, %v730
        %v736 = vadd.f32 %v697, %v730
        %v737 = vadd.f32 %v698, %v730
        %v738 = vadd.f32 %v699, %v730
        %v739 = vadd.f32 %v700, %v730
        %v740 = vadd.f32 %v701, %v730
        %v741 = vadd.f32 %v702, %v730
        %v742 = vadd.f32 %v703, %v730
        %v743 = vadd.f32 %v704, %v730
        %v744 = vadd.f32 %v705, %v730
        %v745 = vadd.f32 %v706, %v730
        %v746 = vadd.f32 %v707, %v730
        %v747 = vadd.f32 %v708, %v730
        %v748 = vadd.f32 %v709, %v730
        %v749 = vadd.f32 %v710, %v730
        %v750 = vadd.f32 %v711, %v730
        %v751 = vadd.f32 %v712, %v730
        %v752 = vadd.f32 %v713, %v730
        %v753 = vadd.f32 %v714, %v730
        %v754 = vadd.f32 %v715, %v730
        %v755 = vadd.f32 %v716, %v730
        %v756 = vadd.f32 %v717, %v730
        %v757 = vadd.f32 %v718, %v730
        %v758 = vadd.f32 %v719, %v730
        %v759 = vadd.f32 %v720, %v730
        %v760 = vadd.f32 %v721, %v730
        %v761 = vadd.f32 %v722, %v730
        %v762 = vadd.f32 %v723, %v730
        %v763 = vadd.f32 %v724, %v730
        %v764 = vmax.f32 %v732, 0.0
        %v765 = vmax.f32 %v733, 0.0
        %v766 = vmax.f32 %v734, 0.0
        %v767 = vmax.f32 %v735, 0.0
        %v768 = vmax.f32 %v736, 0.0
        %v769 = vmax.f32 %v737, 0.0
        %v770 = vmax.f32 %v738, 0.0
        %v771 = vmax.f32 %v739, 0.0
        %v772 = vmax.f32 %v740, 0.0
        %v773 = vmax.f32 %v741, 0.0
        %v774 = vmax.f32 %v742, 0.0
        %v775 = vmax.f32 %v743, 0.0
        %v776 = vmax.f32 %v744, 0.0
        %v777 = vmax.f32 %v745, 0.0
        %v778 = vmax.f32 %v746, 0.0
        %v779 = vmax.f32 %v747, 0.0
        %v780 = vmax.f32 %v748, 0.0
        %v781 = vmax.f32 %v749, 0.0
        %v782 = vmax.f32 %v750, 0.0
        %v783 = vmax.f32 %v751, 0.0
        %v784 = vmax.f32 %v752, 0.0
        %v785 = vmax.f32 %v753, 0.0
        %v786 = vmax.f32 %v754, 0.0
        %v787 = vmax.f32 %v755, 0.0
        %v788 = vmax.f32 %v756, 0.0
        %v789 = vmax.f32 %v757, 0.0
        %v790 = vmax.f32 %v758, 0.0
        %v791 = vmax.f32 %v759, 0.0
        %v792 = vmax.f32 %v760, 0.0
        %v793 = vmax.f32 %v761, 0.0
        %v794 = vmax.f32 %v762, 0.0
        %v795 = vmax.f32 %v763, 0.0
        %v796 = vpack.c.bf16 %v765, %v764
        %v797 = vpack.c.bf16 %v767, %v766
        %v798 = vpack.c.bf16 %v769, %v768
        %v799 = vpack.c.bf16 %v771, %v770
        %v800 = vpack.c.bf16 %v773, %v772
        %v801 = vpack.c.bf16 %v775, %v774
        %v802 = vpack.c.bf16 %v777, %v776
        %v803 = vpack.c.bf16 %v779, %v778
        %v804 = vpack.c.bf16 %v781, %v780
        %v805 = vpack.c.bf16 %v783, %v782
        %v806 = vpack.c.bf16 %v785, %v784
        %v807 = vpack.c.bf16 %v787, %v786
        %v808 = vpack.c.bf16 %v789, %v788
        %v809 = vpack.c.bf16 %v791, %v790
        %v810 = vpack.c.bf16 %v793, %v792
        %v811 = vpack.c.bf16 %v795, %v794
        %v828 = vunpack.c.l.b16 %v796
        %v829 = vunpack.c.h.b16 %v796
        %v830 = vunpack.c.l.b16 %v797
        %v831 = vunpack.c.h.b16 %v797
        %v832 = vunpack.c.l.b16 %v798
        %v833 = vunpack.c.h.b16 %v798
        %v834 = vunpack.c.l.b16 %v799
        %v835 = vunpack.c.h.b16 %v799
        %v836 = vunpack.c.l.b16 %v800
        %v837 = vunpack.c.h.b16 %v800
        %v838 = vunpack.c.l.b16 %v801
        %v839 = vunpack.c.h.b16 %v801
        %v840 = vunpack.c.l.b16 %v802
        %v841 = vunpack.c.h.b16 %v802
        %v842 = vunpack.c.l.b16 %v803
        %v843 = vunpack.c.h.b16 %v803
        %v844 = vunpack.c.l.b16 %v804
        %v845 = vunpack.c.h.b16 %v804
        %v846 = vunpack.c.l.b16 %v805
        %v847 = vunpack.c.h.b16 %v805
        %v848 = vunpack.c.l.b16 %v806
        %v849 = vunpack.c.h.b16 %v806
        %v850 = vunpack.c.l.b16 %v807
        %v851 = vunpack.c.h.b16 %v807
        %v852 = vunpack.c.l.b16 %v808
        %v853 = vunpack.c.h.b16 %v808
        %v854 = vunpack.c.l.b16 %v809
        %v855 = vunpack.c.h.b16 %v809
        %v856 = vunpack.c.l.b16 %v810
        %v857 = vunpack.c.h.b16 %v810
        %v858 = vunpack.c.l.b16 %v811
        %v859 = vunpack.c.h.b16 %v811
        %v860 = vpack.c.b16 %v828, %v828
        %v861 = vpack.c.b16 %v829, %v829
        %v862 = vpack.c.b16 %v830, %v830
        %v863 = vpack.c.b16 %v831, %v831
        %v864 = vpack.c.b16 %v832, %v832
        %v865 = vpack.c.b16 %v833, %v833
        %v866 = vpack.c.b16 %v834, %v834
        %v867 = vpack.c.b16 %v835, %v835
        %v868 = vpack.c.b16 %v836, %v836
        %v869 = vpack.c.b16 %v837, %v837
        %v870 = vpack.c.b16 %v838, %v838
        %v871 = vpack.c.b16 %v839, %v839
        %v872 = vpack.c.b16 %v840, %v840
        %v873 = vpack.c.b16 %v841, %v841
        %v874 = vpack.c.b16 %v842, %v842
        %v875 = vpack.c.b16 %v843, %v843
        %v876 = vpack.c.b16 %v844, %v844
        %v877 = vpack.c.b16 %v845, %v845
        %v878 = vpack.c.b16 %v846, %v846
        %v879 = vpack.c.b16 %v847, %v847
        %v880 = vpack.c.b16 %v848, %v848
        %v881 = vpack.c.b16 %v849, %v849
        %v882 = vpack.c.b16 %v850, %v850
        %v883 = vpack.c.b16 %v851, %v851
        %v884 = vpack.c.b16 %v852, %v852
        %v885 = vpack.c.b16 %v853, %v853
        %v886 = vpack.c.b16 %v854, %v854
        %v887 = vpack.c.b16 %v855, %v855
        %v888 = vpack.c.b16 %v856, %v856
        %v889 = vpack.c.b16 %v857, %v857
        %v890 = vpack.c.b16 %v858, %v858
        %v891 = vpack.c.b16 %v859, %v859
        %924 = vst [vmem:[%s217] sm:$0xf] %v860
        %925 = vst [vmem:[%s217 + $0x4] sm:$0xf] %v861
        %926 = vst [vmem:[%s217 + $0x8] sm:$0xf] %v862
        %927 = vst [vmem:[%s217 + $0xc] sm:$0xf] %v863
        %928 = vst [vmem:[%s217 + $0x10] sm:$0xf] %v864
        %929 = vst [vmem:[%s217 + $0x14] sm:$0xf] %v865
        %930 = vst [vmem:[%s217 + $0x18] sm:$0xf] %v866
        %931 = vst [vmem:[%s217 + $0x1c] sm:$0xf] %v867
        %932 = vst [vmem:[%s217 + $0x20] sm:$0xf] %v868
        %933 = vst [vmem:[%s217 + $0x24] sm:$0xf] %v869
        %934 = vst [vmem:[%s217 + $0x28] sm:$0xf] %v870
        %935 = vst [vmem:[%s217 + $0x2c] sm:$0xf] %v871
        %936 = vst [vmem:[%s217 + $0x30] sm:$0xf] %v872
        %937 = vst [vmem:[%s217 + $0x34] sm:$0xf] %v873
        %938 = vst [vmem:[%s217 + $0x38] sm:$0xf] %v874
        %939 = vst [vmem:[%s217 + $0x3c] sm:$0xf] %v875
        %940 = vst [vmem:[%s217 + $0x40] sm:$0xf] %v876
        %941 = vst [vmem:[%s217 + $0x44] sm:$0xf] %v877
        %942 = vst [vmem:[%s217 + $0x48] sm:$0xf] %v878
        %943 = vst [vmem:[%s217 + $0x4c] sm:$0xf] %v879
        %944 = vst [vmem:[%s217 + $0x50] sm:$0xf] %v880
        %945 = vst [vmem:[%s217 + $0x54] sm:$0xf] %v881
        %946 = vst [vmem:[%s217 + $0x58] sm:$0xf] %v882
        %947 = vst [vmem:[%s217 + $0x5c] sm:$0xf] %v883
        %948 = vst [vmem:[%s217 + $0x60] sm:$0xf] %v884
        %949 = vst [vmem:[%s217 + $0x64] sm:$0xf] %v885
        %950 = vst [vmem:[%s217 + $0x68] sm:$0xf] %v886
        %951 = vst [vmem:[%s217 + $0x6c] sm:$0xf] %v887
        %952 = vst [vmem:[%s217 + $0x70] sm:$0xf] %v888
        %953 = vst [vmem:[%s217 + $0x74] sm:$0xf] %v889
        %954 = vst [vmem:[%s217 + $0x78] sm:$0xf] %v890
        %955 = vst [vmem:[%s217 + $0x7c] sm:$0xf] %v891
      $region40: #{bottleneck_forward.3} parent=31 // pred_fallthru
        _
      %s956 = smul.u32 32, %s18
      %p957 = scmp.lt.s32.totalorder %s956, 63
      %s958 = scalar_select %p957, %s956, 63
      %s959 = smul.addr %s958, 4
      %s960 = scalar_lea.vmem %s3, %s959
      // Predicated region
      $region41: #{bottleneck_forward.3} parent=31 // pred_check
        %p961 = pneg %p119
      $region42: #{bottleneck_forward.3} parent=31 // pred_check_branch
        %963 = sbr.rel (%p961) target = $region44
      $region43: #{bottleneck_forward.3} parent=31 // pred_region
        %s964 = smul.u32 32, %s18
      $region44: #{bottleneck_forward.3} parent=31 // pred_fallthru
        _
    $region32: #{bottleneck_forward.3} parent=5 // pred_fallthru
      _
    %p965 = scmp.le.s32.totalorder 2, %s9
    // Predicated region
    $region45: #{bottleneck_forward.3} parent=5 // pred_check
      %p966 = pneg %p965
    $region46: #{bottleneck_forward.3} parent=5 // pred_check_branch
      %968 = sbr.rel (%p966) target = $region48
    $region47: #{bottleneck_forward.3} parent=5 // pred_region
      %s969 = ssub.s32 %s9, 2
      // Predicated region
      $region49: #{bottleneck_forward.3} parent=47 // pred_check
        %p970 = pneg %p125
      $region50: #{bottleneck_forward.3} parent=47 // pred_check_branch
        %972 = sbr.rel (%p970) target = $region52
      $region51: #{bottleneck_forward.3} parent=47 // pred_region
        %s973 = smul.u32 32, %s20
        %p974 = scmp.lt.s32.totalorder %s973, 63
        %s975 = scalar_select %p974, %s973, 63
        %s976 = smul.addr %s975, 4
        %s977 = scalar_lea.vmem %s3, %s976
      $region52: #{bottleneck_forward.3} parent=47 // pred_fallthru
        _
    $region48: #{bottleneck_forward.3} parent=5 // pred_fallthru
      _
  $region6: #{bottleneck_forward.3} parent=0 // loop_footer
    %s13 = sadd.s32 1, %s9
  $region7: #{bottleneck_forward.3} parent=0 // loop_footer_branch
    %8 = sbr.rel target = $region3
  $region8: #{bottleneck_forward.3} parent=0 // loop_exit
    _

// kernel: bottleneck_forward.5
$region0: #{bottleneck_forward.5}
  #allocation0 [shape = 'u32[]', space=smem, size = 0x4, offset = 0x4, fixed_abs, tag = 'smem constant byte address 0x4 - core index']
  #allocation1 [shape = 'u32[144,128]{1,0:T(1,128)}', space=vmem, size = 0x12000, scoped, tag = 'internal scratch']
  #allocation2 [shape = 'f32[128,128]{1,0:T(8,128)}', space=vmem, size = 0x10000, scoped, tag = 'scratch operand']
  %s0 = inlined_call_operand.vmem [shape: bf16[128,128], index: 0, kind: input, shape index: {}]
  %s1 = inlined_call_operand.vmem [shape: bf16[128,128], index: 1, kind: input, shape index: {}]
  %s2 = inlined_call_operand.vmem [shape: f32[1,128], index: 2, kind: input, shape index: {}]
  %s3 = inlined_call_operand.vmem [shape: bf16[128,128], index: 3, kind: input, shape index: {}]
  %s4 = inlined_call_operand.vmem [shape: bf16[128,128], index: 4, kind: input, shape index: {}]
  %s5 = inlined_call_operand.hbm [shape: f32[128,128], index: 5, kind: output, shape index: {}]
  %s6 = sld [smem:[#allocation0]]
  $region38: #{bottleneck_forward.5} parent=0
    _
  %s8 = ssub.s32 1, %s6
  %s9 = scalar_select 0, %s8, %s6
  $region1: #{bottleneck_forward.5} parent=0
    #allocation3 [shape = 'u8[65536]{0}', space=vmem, size = 0x10000, scoped, tag = 'output window, operand 0, single buffered']
    #allocation4 [shape = 's32[1]{0}', space=sflag, size = 0x4, scoped, tag = 'scoped memory for bottleneck_forward.5']
    %10 = vsyncpa [#allocation4], 0
    // Predicated region
    $region2: #{bottleneck_forward.5} parent=1 // pred_check
      _
    $region3: #{bottleneck_forward.5} parent=1 // pred_check_branch
      %12 = sbr.rel (0) target = $region5
    $region4: #{bottleneck_forward.5} parent=1 // pred_region
      _
    $region5: #{bottleneck_forward.5} parent=1 // pred_fallthru
      _
    // Predicated region
    $region6: #{bottleneck_forward.5} parent=1 // pred_check
      _
    $region7: #{bottleneck_forward.5} parent=1 // pred_check_branch
      %14 = sbr.rel (0) target = $region9
    $region8: #{bottleneck_forward.5} parent=1 // pred_region
      _
    $region9: #{bottleneck_forward.5} parent=1 // pred_fallthru
      _
    // Predicated region
    $region10: #{bottleneck_forward.5} parent=1 // pred_check
      _
    $region11: #{bottleneck_forward.5} parent=1 // pred_check_branch
      %16 = sbr.rel (0) target = $region13
    $region12: #{bottleneck_forward.5} parent=1 // pred_region
      _
    $region13: #{bottleneck_forward.5} parent=1 // pred_fallthru
      _
    // Predicated region
    $region14: #{bottleneck_forward.5} parent=1 // pred_check
      _
    $region15: #{bottleneck_forward.5} parent=1 // pred_check_branch
      %18 = sbr.rel (0) target = $region17
    $region16: #{bottleneck_forward.5} parent=1 // pred_region
      _
    $region17: #{bottleneck_forward.5} parent=1 // pred_fallthru
      _
    // Predicated region
    $region18: #{bottleneck_forward.5} parent=1 // pred_check
      _
    $region19: #{bottleneck_forward.5} parent=1 // pred_check_branch
      %20 = sbr.rel (0) target = $region21
    $region20: #{bottleneck_forward.5} parent=1 // pred_region
      _
    $region21: #{bottleneck_forward.5} parent=1 // pred_fallthru
      _
    %p22 = scmp.eq.s32.totalorder 0, 0
    // Predicated region
    $region22: #{bottleneck_forward.5} parent=1 // pred_check
      %p23 = pneg %p22
    $region23: #{bottleneck_forward.5} parent=1 // pred_check_branch
      %25 = sbr.rel (%p23) target = $region25
    $region24: #{bottleneck_forward.5} parent=1 // pred_region
      %v26 = vld [vmem:[%s3] sm:$0xf]
      %v27 = vld [vmem:[%s3 + $0x4] sm:$0xf]
      %v28 = vld [vmem:[%s3 + $0x8] sm:$0xf]
      %v29 = vld [vmem:[%s3 + $0xc] sm:$0xf]
      %v30 = vld [vmem:[%s3 + $0x10] sm:$0xf]
      %v31 = vld [vmem:[%s3 + $0x14] sm:$0xf]
      %v32 = vld [vmem:[%s3 + $0x18] sm:$0xf]
      %v33 = vld [vmem:[%s3 + $0x1c] sm:$0xf]
      %v34 = vld [vmem:[%s3 + $0x20] sm:$0xf]
      %v35 = vld [vmem:[%s3 + $0x24] sm:$0xf]
      %v36 = vld [vmem:[%s3 + $0x28] sm:$0xf]
      %v37 = vld [vmem:[%s3 + $0x2c] sm:$0xf]
      %v38 = vld [vmem:[%s3 + $0x30] sm:$0xf]
      %v39 = vld [vmem:[%s3 + $0x34] sm:$0xf]
      %v40 = vld [vmem:[%s3 + $0x38] sm:$0xf]
      %v41 = vld [vmem:[%s3 + $0x3c] sm:$0xf]
      %v42 = vld [vmem:[%s4] sm:$0xf]
      %v43 = vld [vmem:[%s4 + $0x4] sm:$0xf]
      %v44 = vld [vmem:[%s4 + $0x8] sm:$0xf]
      %v45 = vld [vmem:[%s4 + $0xc] sm:$0xf]
      %v46 = vld [vmem:[%s4 + $0x10] sm:$0xf]
      %v47 = vld [vmem:[%s4 + $0x14] sm:$0xf]
      %v48 = vld [vmem:[%s4 + $0x18] sm:$0xf]
      %v49 = vld [vmem:[%s4 + $0x1c] sm:$0xf]
      %v50 = vld [vmem:[%s4 + $0x20] sm:$0xf]
      %v51 = vld [vmem:[%s4 + $0x24] sm:$0xf]
      %v52 = vld [vmem:[%s4 + $0x28] sm:$0xf]
      %v53 = vld [vmem:[%s4 + $0x2c] sm:$0xf]
      %v54 = vld [vmem:[%s4 + $0x30] sm:$0xf]
      %v55 = vld [vmem:[%s4 + $0x34] sm:$0xf]
      %v56 = vld [vmem:[%s4 + $0x38] sm:$0xf]
      %v57 = vld [vmem:[%s4 + $0x3c] sm:$0xf]
      %v74 = vunpack.c.l.b16 %v26
      %v75 = vunpack.c.l.b16 %v27
      %v76 = vunpack.c.l.b16 %v28
      %v77 = vunpack.c.l.b16 %v29
      %v78 = vunpack.c.l.b16 %v30
      %v79 = vunpack.c.l.b16 %v31
      %v80 = vunpack.c.l.b16 %v32
      %v81 = vunpack.c.l.b16 %v33
      %v82 = vunpack.c.l.b16 %v34
      %v83 = vunpack.c.l.b16 %v35
      %v84 = vunpack.c.l.b16 %v36
      %v85 = vunpack.c.l.b16 %v37
      %v86 = vunpack.c.l.b16 %v38
      %v87 = vunpack.c.l.b16 %v39
      %v88 = vunpack.c.l.b16 %v40
      %v89 = vunpack.c.l.b16 %v41
      %v90 = vpack.c.b16 %v75, %v74
      %v91 = vpack.c.b16 %v77, %v76
      %v92 = vpack.c.b16 %v79, %v78
      %v93 = vpack.c.b16 %v81, %v80
      %v94 = vpack.c.b16 %v83, %v82
      %v95 = vpack.c.b16 %v85, %v84
      %v96 = vpack.c.b16 %v87, %v86
      %v97 = vpack.c.b16 %v89, %v88
      %v122 = vunpack.c.l.b16 %v42
      %v123 = vunpack.c.l.b16 %v43
      %v124 = vunpack.c.l.b16 %v44
      %v125 = vunpack.c.l.b16 %v45
      %v126 = vunpack.c.l.b16 %v46
      %v127 = vunpack.c.l.b16 %v47
      %v128 = vunpack.c.l.b16 %v48
      %v129 = vunpack.c.l.b16 %v49
      %v130 = vunpack.c.l.b16 %v50
      %v131 = vunpack.c.l.b16 %v51
      %v132 = vunpack.c.l.b16 %v52
      %v133 = vunpack.c.l.b16 %v53
      %v134 = vunpack.c.l.b16 %v54
      %v135 = vunpack.c.l.b16 %v55
      %v136 = vunpack.c.l.b16 %v56
      %v137 = vunpack.c.l.b16 %v57
      %v138 = vpack.c.b16 %v123, %v122
      %v139 = vpack.c.b16 %v125, %v124
      %v140 = vpack.c.b16 %v127, %v126
      %v141 = vpack.c.b16 %v129, %v128
      %v142 = vpack.c.b16 %v131, %v130
      %v143 = vpack.c.b16 %v133, %v132
      %v144 = vpack.c.b16 %v135, %v134
      %v145 = vpack.c.b16 %v137, %v136
      %154 = vmatprep.subr.bf16.mxu0 0
      %155 = vmatpush1.bf16.msra.mxu0 %v145
      %156 = vmatprep.subr.bf16.mxu0 0
      %157 = vmatpush1.bf16.msra.mxu0 %v144
      %158 = vmatprep.subr.bf16.mxu0 0
      %159 = vmatpush1.bf16.msra.mxu0 %v143
      %160 = vmatprep.subr.bf16.mxu0 0
      %161 = vmatpush1.bf16.msra.mxu0 %v142
      %162 = vmatprep.subr.bf16.mxu0 0
      %163 = vmatpush1.bf16.msra.mxu0 %v141
      %164 = vmatprep.subr.bf16.mxu0 0
      %165 = vmatpush1.bf16.msra.mxu0 %v140
      %166 = vmatprep.subr.bf16.mxu0 0
      %167 = vmatpush1.bf16.msra.mxu0 %v139
      %168 = vmatprep.subr.bf16.mxu0 0
      %169 = vmatpush1.bf16.msra.mxu0 %v138
      %170 = vmatprep.subr.bf16.mxu0 0
      %171 = vmatpush2.bf16.msra.mxu0 0
      %172 = vmatprep.subr.bf16.mxu0 0
      %173 = vmatpush2.bf16.msra.mxu0 0
      %174 = vmatprep.subr.bf16.mxu0 0
      %175 = vmatpush2.bf16.msra.mxu0 0
      %176 = vmatprep.subr.bf16.mxu0 0
      %177 = vmatpush2.bf16.msra.mxu0 0
      %178 = vmatprep.subr.bf16.mxu0 0
      %179 = vmatpush2.bf16.msra.mxu0 0
      %180 = vmatprep.subr.bf16.mxu0 0
      %181 = vmatpush2.bf16.msra.mxu0 0
      %182 = vmatprep.subr.bf16.mxu0 0
      %183 = vmatpush2.bf16.msra.mxu0 0
      %184 = vmatprep.subr.bf16.mxu0 0
      %185 = vmatpush2.bf16.msra.mxu0 0
      %186 = vmatprep.mubr.bf16.mxu0 0
      %187 = vmatmul.mubr.bf16.gmra.mxu0 %v90
      %v188 = vpop.f32.mrf.mxu0
      %v189 = vadd.f32 0.0, %v188
      %v190 = vpop.f32.mrf.mxu0
      %v191 = vpop.f32.mrf.mxu0
      %v192 = vadd.f32 0.0, %v191
      %v193 = vpop.f32.mrf.mxu0
      %194 = vmatprep.mubr.bf16.mxu0 0
      %195 = vmatmul.mubr.bf16.gmra.mxu0 %v91
      %v196 = vpop.f32.mrf.mxu0
      %v197 = vadd.f32 0.0, %v196
      %v198 = vpop.f32.mrf.mxu0
      %v199 = vpop.f32.mrf.mxu0
      %v200 = vadd.f32 0.0, %v199
      %v201 = vpop.f32.mrf.mxu0
      %202 = vmatprep.mubr.bf16.mxu0 0
      %203 = vmatmul.mubr.bf16.gmra.mxu0 %v92
      %v204 = vpop.f32.mrf.mxu0
      %v205 = vadd.f32 0.0, %v204
      %v206 = vpop.f32.mrf.mxu0
      %v207 = vpop.f32.mrf.mxu0
      %v208 = vadd.f32 0.0, %v207
      %v209 = vpop.f32.mrf.mxu0
      %210 = vmatprep.mubr.bf16.mxu0 0
      %211 = vmatmul.mubr.bf16.gmra.mxu0 %v93
      %v212 = vpop.f32.mrf.mxu0
      %v213 = vadd.f32 0.0, %v212
      %v214 = vpop.f32.mrf.mxu0
      %v215 = vpop.f32.mrf.mxu0
      %v216 = vadd.f32 0.0, %v215
      %v217 = vpop.f32.mrf.mxu0
      %218 = vmatprep.mubr.bf16.mxu0 0
      %219 = vmatmul.mubr.bf16.gmra.mxu0 %v94
      %v220 = vpop.f32.mrf.mxu0
      %v221 = vadd.f32 0.0, %v220
      %v222 = vpop.f32.mrf.mxu0
      %v223 = vpop.f32.mrf.mxu0
      %v224 = vadd.f32 0.0, %v223
      %v225 = vpop.f32.mrf.mxu0
      %226 = vmatprep.mubr.bf16.mxu0 0
      %227 = vmatmul.mubr.bf16.gmra.mxu0 %v95
      %v228 = vpop.f32.mrf.mxu0
      %v229 = vadd.f32 0.0, %v228
      %v230 = vpop.f32.mrf.mxu0
      %v231 = vpop.f32.mrf.mxu0
      %v232 = vadd.f32 0.0, %v231
      %v233 = vpop.f32.mrf.mxu0
      %234 = vmatprep.mubr.bf16.mxu0 0
      %235 = vmatmul.mubr.bf16.gmra.mxu0 %v96
      %v236 = vpop.f32.mrf.mxu0
      %v237 = vadd.f32 0.0, %v236
      %v238 = vpop.f32.mrf.mxu0
      %v239 = vpop.f32.mrf.mxu0
      %v240 = vadd.f32 0.0, %v239
      %v241 = vpop.f32.mrf.mxu0
      %242 = vmatprep.mubr.bf16.mxu0 0
      %243 = vmatmul.mubr.bf16.gmra.mxu0 %v97
      %v244 = vpop.f32.mrf.mxu0
      %v245 = vadd.f32 0.0, %v244
      %v246 = vpop.f32.mrf.mxu0
      %v247 = vpop.f32.mrf.mxu0
      %v248 = vadd.f32 0.0, %v247
      %v249 = vpop.f32.mrf.mxu0
      %250 = vdwg.mxu0
      %251 = vst [vmem:[#allocation2] sm:$0xff] %v189
      %252 = vst [vmem:[#allocation2 + $0x8] sm:$0xff] %v192
      %253 = vst [vmem:[#allocation2 + $0x10] sm:$0xff] %v197
      %254 = vst [vmem:[#allocation2 + $0x18] sm:$0xff] %v200
      %255 = vst [vmem:[#allocation2 + $0x20] sm:$0xff] %v205
      %256 = vst [vmem:[#allocation2 + $0x28] sm:$0xff] %v208
      %257 = vst [vmem:[#allocation2 + $0x30] sm:$0xff] %v213
      %258 = vst [vmem:[#allocation2 + $0x38] sm:$0xff] %v216
      %259 = vst [vmem:[#allocation2 + $0x40] sm:$0xff] %v221
      %260 = vst [vmem:[#allocation2 + $0x48] sm:$0xff] %v224
      %261 = vst [vmem:[#allocation2 + $0x50] sm:$0xff] %v229
      %262 = vst [vmem:[#allocation2 + $0x58] sm:$0xff] %v232
      %263 = vst [vmem:[#allocation2 + $0x60] sm:$0xff] %v237
      %264 = vst [vmem:[#allocation2 + $0x68] sm:$0xff] %v240
      %265 = vst [vmem:[#allocation2 + $0x70] sm:$0xff] %v245
      %266 = vst [vmem:[#allocation2 + $0x78] sm:$0xff] %v248
    $region25: #{bottleneck_forward.5} parent=1 // pred_fallthru
      _
    %v267 = vld [vmem:[#allocation2] sm:$0xff]
    %v268 = vld [vmem:[#allocation2 + $0x8] sm:$0xff]
    %v269 = vld [vmem:[#allocation2 + $0x10] sm:$0xff]
    %v270 = vld [vmem:[#allocation2 + $0x18] sm:$0xff]
    %v271 = vld [vmem:[#allocation2 + $0x20] sm:$0xff]
    %v272 = vld [vmem:[#allocation2 + $0x28] sm:$0xff]
    %v273 = vld [vmem:[#allocation2 + $0x30] sm:$0xff]
    %v274 = vld [vmem:[#allocation2 + $0x38] sm:$0xff]
    %v275 = vld [vmem:[#allocation2 + $0x40] sm:$0xff]
    %v276 = vld [vmem:[#allocation2 + $0x48] sm:$0xff]
    %v277 = vld [vmem:[#allocation2 + $0x50] sm:$0xff]
    %v278 = vld [vmem:[#allocation2 + $0x58] sm:$0xff]
    %v279 = vld [vmem:[#allocation2 + $0x60] sm:$0xff]
    %v280 = vld [vmem:[#allocation2 + $0x68] sm:$0xff]
    %v281 = vld [vmem:[#allocation2 + $0x70] sm:$0xff]
    %v282 = vld [vmem:[#allocation2 + $0x78] sm:$0xff]
    %v283 = vld [vmem:[%s0] sm:$0xf]
    %v284 = vld [vmem:[%s0 + $0x4] sm:$0xf]
    %v285 = vld [vmem:[%s0 + $0x8] sm:$0xf]
    %v286 = vld [vmem:[%s0 + $0xc] sm:$0xf]
    %v287 = vld [vmem:[%s0 + $0x10] sm:$0xf]
    %v288 = vld [vmem:[%s0 + $0x14] sm:$0xf]
    %v289 = vld [vmem:[%s0 + $0x18] sm:$0xf]
    %v290 = vld [vmem:[%s0 + $0x1c] sm:$0xf]
    %v291 = vld [vmem:[%s0 + $0x20] sm:$0xf]
    %v292 = vld [vmem:[%s0 + $0x24] sm:$0xf]
    %v293 = vld [vmem:[%s0 + $0x28] sm:$0xf]
    %v294 = vld [vmem:[%s0 + $0x2c] sm:$0xf]
    %v295 = vld [vmem:[%s0 + $0x30] sm:$0xf]
    %v296 = vld [vmem:[%s0 + $0x34] sm:$0xf]
    %v297 = vld [vmem:[%s0 + $0x38] sm:$0xf]
    %v298 = vld [vmem:[%s0 + $0x3c] sm:$0xf]
    %v299 = vld [vmem:[%s1] sm:$0xf]
    %v300 = vld [vmem:[%s1 + $0x4] sm:$0xf]
    %v301 = vld [vmem:[%s1 + $0x8] sm:$0xf]
    %v302 = vld [vmem:[%s1 + $0xc] sm:$0xf]
    %v303 = vld [vmem:[%s1 + $0x10] sm:$0xf]
    %v304 = vld [vmem:[%s1 + $0x14] sm:$0xf]
    %v305 = vld [vmem:[%s1 + $0x18] sm:$0xf]
    %v306 = vld [vmem:[%s1 + $0x1c] sm:$0xf]
    %v307 = vld [vmem:[%s1 + $0x20] sm:$0xf]
    %v308 = vld [vmem:[%s1 + $0x24] sm:$0xf]
    %v309 = vld [vmem:[%s1 + $0x28] sm:$0xf]
    %v310 = vld [vmem:[%s1 + $0x2c] sm:$0xf]
    %v311 = vld [vmem:[%s1 + $0x30] sm:$0xf]
    %v312 = vld [vmem:[%s1 + $0x34] sm:$0xf]
    %v313 = vld [vmem:[%s1 + $0x38] sm:$0xf]
    %v314 = vld [vmem:[%s1 + $0x3c] sm:$0xf]
    %v331 = vunpack.c.l.b16 %v283
    %v332 = vunpack.c.l.b16 %v284
    %v333 = vunpack.c.l.b16 %v285
    %v334 = vunpack.c.l.b16 %v286
    %v335 = vunpack.c.l.b16 %v287
    %v336 = vunpack.c.l.b16 %v288
    %v337 = vunpack.c.l.b16 %v289
    %v338 = vunpack.c.l.b16 %v290
    %v339 = vunpack.c.l.b16 %v291
    %v340 = vunpack.c.l.b16 %v292
    %v341 = vunpack.c.l.b16 %v293
    %v342 = vunpack.c.l.b16 %v294
    %v343 = vunpack.c.l.b16 %v295
    %v344 = vunpack.c.l.b16 %v296
    %v345 = vunpack.c.l.b16 %v297
    %v346 = vunpack.c.l.b16 %v298
    %v347 = vpack.c.b16 %v332, %v331
    %v348 = vpack.c.b16 %v334, %v333
    %v349 = vpack.c.b16 %v336, %v335
    %v350 = vpack.c.b16 %v338, %v337
    %v351 = vpack.c.b16 %v340, %v339
    %v352 = vpack.c.b16 %v342, %v341
    %v353 = vpack.c.b16 %v344, %v343
    %v354 = vpack.c.b16 %v346, %v345
    %v379 = vunpack.c.l.b16 %v299
    %v380 = vunpack.c.l.b16 %v300
    %v381 = vunpack.c.l.b16 %v301
    %v382 = vunpack.c.l.b16 %v302
    %v383 = vunpack.c.l.b16 %v303
    %v384 = vunpack.c.l.b16 %v304
    %v385 = vunpack.c.l.b16 %v305
    %v386 = vunpack.c.l.b16 %v306
    %v387 = vunpack.c.l.b16 %v307
    %v388 = vunpack.c.l.b16 %v308
    %v389 = vunpack.c.l.b16 %v309
    %v390 = vunpack.c.l.b16 %v310
    %v391 = vunpack.c.l.b16 %v311
    %v392 = vunpack.c.l.b16 %v312
    %v393 = vunpack.c.l.b16 %v313
    %v394 = vunpack.c.l.b16 %v314
    %v395 = vpack.c.b16 %v380, %v379
    %v396 = vpack.c.b16 %v382, %v381
    %v397 = vpack.c.b16 %v384, %v383
    %v398 = vpack.c.b16 %v386, %v385
    %v399 = vpack.c.b16 %v388, %v387
    %v400 = vpack.c.b16 %v390, %v389
    %v401 = vpack.c.b16 %v392, %v391
    %v402 = vpack.c.b16 %v394, %v393
    %411 = vmatprep.subr.bf16.mxu0 0
    %412 = vmatpush1.bf16.msra.mxu0 %v402
    %413 = vmatprep.subr.bf16.mxu0 0
    %414 = vmatpush1.bf16.msra.mxu0 %v401
    %415 = vmatprep.subr.bf16.mxu0 0
    %416 = vmatpush1.bf16.msra.mxu0 %v400
    %417 = vmatprep.subr.bf16.mxu0 0
    %418 = vmatpush1.bf16.msra.mxu0 %v399
    %419 = vmatprep.subr.bf16.mxu0 0
    %420 = vmatpush1.bf16.msra.mxu0 %v398
    %421 = vmatprep.subr.bf16.mxu0 0
    %422 = vmatpush1.bf16.msra.mxu0 %v397
    %423 = vmatprep.subr.bf16.mxu0 0
    %424 = vmatpush1.bf16.msra.mxu0 %v396
    %425 = vmatprep.subr.bf16.mxu0 0
    %426 = vmatpush1.bf16.msra.mxu0 %v395
    %427 = vmatprep.subr.bf16.mxu0 0
    %428 = vmatpush2.bf16.msra.mxu0 0
    %429 = vmatprep.subr.bf16.mxu0 0
    %430 = vmatpush2.bf16.msra.mxu0 0
    %431 = vmatprep.subr.bf16.mxu0 0
    %432 = vmatpush2.bf16.msra.mxu0 0
    %433 = vmatprep.subr.bf16.mxu0 0
    %434 = vmatpush2.bf16.msra.mxu0 0
    %435 = vmatprep.subr.bf16.mxu0 0
    %436 = vmatpush2.bf16.msra.mxu0 0
    %437 = vmatprep.subr.bf16.mxu0 0
    %438 = vmatpush2.bf16.msra.mxu0 0
    %439 = vmatprep.subr.bf16.mxu0 0
    %440 = vmatpush2.bf16.msra.mxu0 0
    %441 = vmatprep.subr.bf16.mxu0 0
    %442 = vmatpush2.bf16.msra.mxu0 0
    %443 = vmatprep.mubr.bf16.mxu0 0
    %444 = vmatmul.mubr.bf16.gmra.mxu0 %v347
    %v445 = vpop.f32.mrf.mxu0
    %v446 = vadd.f32 0.0, %v445
    %v447 = vpop.f32.mrf.mxu0
    %v448 = vpop.f32.mrf.mxu0
    %v449 = vadd.f32 0.0, %v448
    %v450 = vpop.f32.mrf.mxu0
    %451 = vmatprep.mubr.bf16.mxu0 0
    %452 = vmatmul.mubr.bf16.gmra.mxu0 %v348
    %v453 = vpop.f32.mrf.mxu0
    %v454 = vadd.f32 0.0, %v453
    %v455 = vpop.f32.mrf.mxu0
    %v456 = vpop.f32.mrf.mxu0
    %v457 = vadd.f32 0.0, %v456
    %v458 = vpop.f32.mrf.mxu0
    %459 = vmatprep.mubr.bf16.mxu0 0
    %460 = vmatmul.mubr.bf16.gmra.mxu0 %v349
    %v461 = vpop.f32.mrf.mxu0
    %v462 = vadd.f32 0.0, %v461
    %v463 = vpop.f32.mrf.mxu0
    %v464 = vpop.f32.mrf.mxu0
    %v465 = vadd.f32 0.0, %v464
    %v466 = vpop.f32.mrf.mxu0
    %467 = vmatprep.mubr.bf16.mxu0 0
    %468 = vmatmul.mubr.bf16.gmra.mxu0 %v350
    %v469 = vpop.f32.mrf.mxu0
    %v470 = vadd.f32 0.0, %v469
    %v471 = vpop.f32.mrf.mxu0
    %v472 = vpop.f32.mrf.mxu0
    %v473 = vadd.f32 0.0, %v472
    %v474 = vpop.f32.mrf.mxu0
    %475 = vmatprep.mubr.bf16.mxu0 0
    %476 = vmatmul.mubr.bf16.gmra.mxu0 %v351
    %v477 = vpop.f32.mrf.mxu0
    %v478 = vadd.f32 0.0, %v477
    %v479 = vpop.f32.mrf.mxu0
    %v480 = vpop.f32.mrf.mxu0
    %v481 = vadd.f32 0.0, %v480
    %v482 = vpop.f32.mrf.mxu0
    %483 = vmatprep.mubr.bf16.mxu0 0
    %484 = vmatmul.mubr.bf16.gmra.mxu0 %v352
    %v485 = vpop.f32.mrf.mxu0
    %v486 = vadd.f32 0.0, %v485
    %v487 = vpop.f32.mrf.mxu0
    %v488 = vpop.f32.mrf.mxu0
    %v489 = vadd.f32 0.0, %v488
    %v490 = vpop.f32.mrf.mxu0
    %491 = vmatprep.mubr.bf16.mxu0 0
    %492 = vmatmul.mubr.bf16.gmra.mxu0 %v353
    %v493 = vpop.f32.mrf.mxu0
    %v494 = vadd.f32 0.0, %v493
    %v495 = vpop.f32.mrf.mxu0
    %v496 = vpop.f32.mrf.mxu0
    %v497 = vadd.f32 0.0, %v496
    %v498 = vpop.f32.mrf.mxu0
    %499 = vmatprep.mubr.bf16.mxu0 0
    %500 = vmatmul.mubr.bf16.gmra.mxu0 %v354
    %v501 = vpop.f32.mrf.mxu0
    %v502 = vadd.f32 0.0, %v501
    %v503 = vpop.f32.mrf.mxu0
    %v504 = vpop.f32.mrf.mxu0
    %v505 = vadd.f32 0.0, %v504
    %v506 = vpop.f32.mrf.mxu0
    %507 = vdwg.mxu0
    %v508 = vadd.f32 %v267, %v446
    %v509 = vadd.f32 %v268, %v449
    %v510 = vadd.f32 %v269, %v454
    %v511 = vadd.f32 %v270, %v457
    %v512 = vadd.f32 %v271, %v462
    %v513 = vadd.f32 %v272, %v465
    %v514 = vadd.f32 %v273, %v470
    %v515 = vadd.f32 %v274, %v473
    %v516 = vadd.f32 %v275, %v478
    %v517 = vadd.f32 %v276, %v481
    %v518 = vadd.f32 %v277, %v486
    %v519 = vadd.f32 %v278, %v489
    %v520 = vadd.f32 %v279, %v494
    %v521 = vadd.f32 %v280, %v497
    %v522 = vadd.f32 %v281, %v502
    %v523 = vadd.f32 %v282, %v505
    %524 = vst [vmem:[#allocation2] sm:$0xff] %v508
    %525 = vst [vmem:[#allocation2 + $0x8] sm:$0xff] %v509
    %526 = vst [vmem:[#allocation2 + $0x10] sm:$0xff] %v510
    %527 = vst [vmem:[#allocation2 + $0x18] sm:$0xff] %v511
    %528 = vst [vmem:[#allocation2 + $0x20] sm:$0xff] %v512
    %529 = vst [vmem:[#allocation2 + $0x28] sm:$0xff] %v513
    %530 = vst [vmem:[#allocation2 + $0x30] sm:$0xff] %v514
    %531 = vst [vmem:[#allocation2 + $0x38] sm:$0xff] %v515
    %532 = vst [vmem:[#allocation2 + $0x40] sm:$0xff] %v516
    %533 = vst [vmem:[#allocation2 + $0x48] sm:$0xff] %v517
    %534 = vst [vmem:[#allocation2 + $0x50] sm:$0xff] %v518
    %535 = vst [vmem:[#allocation2 + $0x58] sm:$0xff] %v519
    %536 = vst [vmem:[#allocation2 + $0x60] sm:$0xff] %v520
    %537 = vst [vmem:[#allocation2 + $0x68] sm:$0xff] %v521
    %538 = vst [vmem:[#allocation2 + $0x70] sm:$0xff] %v522
    %539 = vst [vmem:[#allocation2 + $0x78] sm:$0xff] %v523
    // Predicated region
    $region26: #{bottleneck_forward.5} parent=1 // pred_check
      %p540 = pneg %p22
    $region27: #{bottleneck_forward.5} parent=1 // pred_check_branch
      %542 = sbr.rel (%p540) target = $region29
    $region28: #{bottleneck_forward.5} parent=1 // pred_region
      %v543 = vld [vmem:[#allocation2] sm:$0xff]
      %v544 = vld [vmem:[#allocation2 + $0x8] sm:$0xff]
      %v545 = vld [vmem:[#allocation2 + $0x10] sm:$0xff]
      %v546 = vld [vmem:[#allocation2 + $0x18] sm:$0xff]
      %v547 = vld [vmem:[#allocation2 + $0x20] sm:$0xff]
      %v548 = vld [vmem:[#allocation2 + $0x28] sm:$0xff]
      %v549 = vld [vmem:[#allocation2 + $0x30] sm:$0xff]
      %v550 = vld [vmem:[#allocation2 + $0x38] sm:$0xff]
      %v551 = vld [vmem:[#allocation2 + $0x40] sm:$0xff]
      %v552 = vld [vmem:[#allocation2 + $0x48] sm:$0xff]
      %v553 = vld [vmem:[#allocation2 + $0x50] sm:$0xff]
      %v554 = vld [vmem:[#allocation2 + $0x58] sm:$0xff]
      %v555 = vld [vmem:[#allocation2 + $0x60] sm:$0xff]
      %v556 = vld [vmem:[#allocation2 + $0x68] sm:$0xff]
      %v557 = vld [vmem:[#allocation2 + $0x70] sm:$0xff]
      %v558 = vld [vmem:[#allocation2 + $0x78] sm:$0xff]
      %v559 = vld [vmem:[%s2] sm:$0x1]
      %v561 = vlaneseq
      %v562 = vshrl.u32 %v561, 7
      %v563 = vsub.s32 0, %v562
      %v564 = vrot.slane %v559, %v563
      %v566 = vadd.f32 %v543, %v564
      %v567 = vadd.f32 %v544, %v564
      %v568 = vadd.f32 %v545, %v564
      %v569 = vadd.f32 %v546, %v564
      %v570 = vadd.f32 %v547, %v564
      %v571 = vadd.f32 %v548, %v564
      %v572 = vadd.f32 %v549, %v564
      %v573 = vadd.f32 %v550, %v564
      %v574 = vadd.f32 %v551, %v564
      %v575 = vadd.f32 %v552, %v564
      %v576 = vadd.f32 %v553, %v564
      %v577 = vadd.f32 %v554, %v564
      %v578 = vadd.f32 %v555, %v564
      %v579 = vadd.f32 %v556, %v564
      %v580 = vadd.f32 %v557, %v564
      %v581 = vadd.f32 %v558, %v564
      %v582 = vmax.f32 %v566, 0.0
      %v583 = vmax.f32 %v567, 0.0
      %v584 = vmax.f32 %v568, 0.0
      %v585 = vmax.f32 %v569, 0.0
      %v586 = vmax.f32 %v570, 0.0
      %v587 = vmax.f32 %v571, 0.0
      %v588 = vmax.f32 %v572, 0.0
      %v589 = vmax.f32 %v573, 0.0
      %v590 = vmax.f32 %v574, 0.0
      %v591 = vmax.f32 %v575, 0.0
      %v592 = vmax.f32 %v576, 0.0
      %v593 = vmax.f32 %v577, 0.0
      %v594 = vmax.f32 %v578, 0.0
      %v595 = vmax.f32 %v579, 0.0
      %v596 = vmax.f32 %v580, 0.0
      %v597 = vmax.f32 %v581, 0.0
      %598 = vst [vmem:[#allocation3] sm:$0xff] %v582
      %599 = vst [vmem:[#allocation3 + $0x8] sm:$0xff] %v583
      %600 = vst [vmem:[#allocation3 + $0x10] sm:$0xff] %v584
      %601 = vst [vmem:[#allocation3 + $0x18] sm:$0xff] %v585
      %602 = vst [vmem:[#allocation3 + $0x20] sm:$0xff] %v586
      %603 = vst [vmem:[#allocation3 + $0x28] sm:$0xff] %v587
      %604 = vst [vmem:[#allocation3 + $0x30] sm:$0xff] %v588
      %605 = vst [vmem:[#allocation3 + $0x38] sm:$0xff] %v589
      %606 = vst [vmem:[#allocation3 + $0x40] sm:$0xff] %v590
      %607 = vst [vmem:[#allocation3 + $0x48] sm:$0xff] %v591
      %608 = vst [vmem:[#allocation3 + $0x50] sm:$0xff] %v592
      %609 = vst [vmem:[#allocation3 + $0x58] sm:$0xff] %v593
      %610 = vst [vmem:[#allocation3 + $0x60] sm:$0xff] %v594
      %611 = vst [vmem:[#allocation3 + $0x68] sm:$0xff] %v595
      %612 = vst [vmem:[#allocation3 + $0x70] sm:$0xff] %v596
      %613 = vst [vmem:[#allocation3 + $0x78] sm:$0xff] %v597
    $region29: #{bottleneck_forward.5} parent=1 // pred_fallthru
      _
    // Predicated region
    $region30: #{bottleneck_forward.5} parent=1 // pred_check
      _
    $region31: #{bottleneck_forward.5} parent=1 // pred_check_branch
      %615 = sbr.rel (0) target = $region33
    $region32: #{bottleneck_forward.5} parent=1 // pred_region
      %s617 = ssub.s32 2048, 2048
      %618 = vsyncadd [#allocation4], %s617
      %s619 = sshll.u32 [#allocation3], 4
      %s620 = int_to_ptr.vmem [resolvable:$true] %s619
      %625 = dma.vmem_to_hbm [thread:$0]  %s620, 2048, %s5, [#allocation4], 128, 128, 8
    $region33: #{bottleneck_forward.5} parent=1 // pred_fallthru
      _
    // Predicated region
    $region34: #{bottleneck_forward.5} parent=1 // pred_check
      _
    $region35: #{bottleneck_forward.5} parent=1 // pred_check_branch
      %627 = sbr.rel (0) target = $region37
    $region36: #{bottleneck_forward.5} parent=1 // pred_region
      %628 = dma.done [#allocation4], 2048
    $region37: #{bottleneck_forward.5} parent=1 // pred_fallthru
      _
    %629 = vsyncpa [#allocation4], 1

// kernel: bottleneck_forward.4
$region0: #{bottleneck_forward.4}
  #allocation0 [shape = 'u32[]', space=smem, size = 0x4, offset = 0x4, fixed_abs, tag = 'smem constant byte address 0x4 - core index']
  #allocation1 [shape = 'u32[144,128]{1,0:T(1,128)}', space=vmem, size = 0x12000, scoped, tag = 'internal scratch']
  %s0 = inlined_call_operand.vmem [shape: bf16[2,440,128], index: 0, kind: input, shape index: {}]
  %s1 = inlined_call_operand.vmem [shape: bf16[3,384,128], index: 1, kind: input, shape index: {}]
  %s2 = inlined_call_operand.vmem [shape: f32[1,128], index: 2, kind: input, shape index: {}]
  %s3 = inlined_call_operand.vmem [shape: bf16[2,16,16,128], index: 3, kind: output, shape index: {}]
  %s4 = sld [smem:[#allocation0]]
  $region45: #{bottleneck_forward.4} parent=0
    _
  %s6 = ssub.s32 1, %s4
  %s7 = scalar_select 0, %s6, %s4
  loop: start=0, step=1, limit=4
  $region2: #{bottleneck_forward.4} parent=0 // loop_pre_header
    _
  $region3: #{bottleneck_forward.4} parent=0 // loop_header
    %s9 = sphi 0, %s13
    %p10 = scmp.ge.s32.totalorder %s9, 4
    %s19 = sphi 0, %s21
    %s22 = sphi 0, %s19
    %s23 = sphi 0, %s22
    %s39 = sphi 0, %s23
    %s43 = sphi 0, %s43
    %s45 = sphi 0, %s43
    %s46 = sphi 0, %s45
    %s60 = sphi 0, %s46
    %s64 = sphi 0, %s64
    %s66 = sphi 0, %s64
    %s67 = sphi 0, %s66
    %s81 = sphi 0, %s67
    %s87 = sphi 0, %s89
    %s90 = sphi 0, %s87
    %s91 = sphi 0, %s90
    %s107 = sphi 0, %s91
  $region4: #{bottleneck_forward.4} parent=0 // loop_header_branch
    %12 = sbr.rel (%p10) target = $region8
  $region5: #{bottleneck_forward.4} parent=0 // loop_body
    %s14 = ssub.s32 %s9, 1
    %s15 = ssub.s32 %s9, 2
    %s16 = sadd.s32 %s9, 1
    %s17 = ssub.s32 %s9, %s16
    %p18 = scmp.eq.s32.totalorder %s17, 0
    %s20 = sadd.s32 %s19, 1
    %s21 = scalar_select %p18, %s19, %s20
    %p24 = pneg %p18
    %p25 = scmp.eq.s32.totalorder %s9, 1
    %p26 = por %p24, %p25
    %p27 = scmp.ne.s32.totalorder %s19, %s22
    %p28 = scmp.eq.s32.totalorder %s9, 0
    %p29 = por %p27, %p28
    %p30 = scmp.ne.s32.totalorder %s19, %s22
    %p31 = scmp.eq.s32.totalorder %s14, 1
    %p32 = por %p30, %p31
    %p33 = scmp.ne.s32.totalorder %s22, %s23
    %p34 = scmp.eq.s32.totalorder %s14, 0
    %p35 = por %p33, %p34
    %p36 = scmp.ne.s32.totalorder %s22, %s23
    %p37 = scmp.eq.s32.totalorder %s15, 1
    %p38 = por %p36, %p37
    %p40 = scmp.ne.s32.totalorder %s23, %s39
    %p41 = scmp.eq.s32.totalorder %s15, 0
    %p42 = por %p40, %p41
    %s44 = sadd.s32 %s43, 1
    %p47 = scmp.eq.s32.totalorder %s9, 1
    %p48 = scmp.ne.s32.totalorder %s43, %s45
    %p49 = scmp.eq.s32.totalorder %s9, 0
    %p50 = por %p48, %p49
    %p51 = scmp.ne.s32.totalorder %s43, %s45
    %p52 = scmp.eq.s32.totalorder %s14, 1
    %p53 = por %p51, %p52
    %p54 = scmp.ne.s32.totalorder %s45, %s46
    %p55 = scmp.eq.s32.totalorder %s14, 0
    %p56 = por %p54, %p55
    %p57 = scmp.ne.s32.totalorder %s45, %s46
    %p58 = scmp.eq.s32.totalorder %s15, 1
    %p59 = por %p57, %p58
    %p61 = scmp.ne.s32.totalorder %s46, %s60
    %p62 = scmp.eq.s32.totalorder %s15, 0
    %p63 = por %p61, %p62
    %s65 = sadd.s32 %s64, 1
    %p68 = scmp.eq.s32.totalorder %s9, 1
    %p69 = scmp.ne.s32.totalorder %s64, %s66
    %p70 = scmp.eq.s32.totalorder %s9, 0
    %p71 = por %p69, %p70
    %p72 = scmp.ne.s32.totalorder %s64, %s66
    %p73 = scmp.eq.s32.totalorder %s14, 1
    %p74 = por %p72, %p73
    %p75 = scmp.ne.s32.totalorder %s66, %s67
    %p76 = scmp.eq.s32.totalorder %s14, 0
    %p77 = por %p75, %p76
    %p78 = scmp.ne.s32.totalorder %s66, %s67
    %p79 = scmp.eq.s32.totalorder %s15, 1
    %p80 = por %p78, %p79
    %p82 = scmp.ne.s32.totalorder %s67, %s81
    %p83 = scmp.eq.s32.totalorder %s15, 0
    %p84 = por %p82, %p83
    %s85 = ssub.s32 %s9, %s16
    %p86 = scmp.eq.s32.totalorder %s85, 0
    %s88 = sadd.s32 %s87, 1
    %s89 = scalar_select %p86, %s87, %s88
    %p92 = pneg %p86
    %p93 = scmp.eq.s32.totalorder %s9, 1
    %p94 = por %p92, %p93
    %p95 = scmp.ne.s32.totalorder %s87, %s90
    %p96 = scmp.eq.s32.totalorder %s9, 0
    %p97 = por %p95, %p96
    %p98 = scmp.ne.s32.totalorder %s87, %s90
    %p99 = scmp.eq.s32.totalorder %s14, 1
    %p100 = por %p98, %p99
    %p101 = scmp.ne.s32.totalorder %s90, %s91
    %p102 = scmp.eq.s32.totalorder %s14, 0
    %p103 = por %p101, %p102
    %p104 = scmp.ne.s32.totalorder %s90, %s91
    %p105 = scmp.eq.s32.totalorder %s15, 1
    %p106 = por %p104, %p105
    %p108 = scmp.ne.s32.totalorder %s91, %s107
    %p109 = scmp.eq.s32.totalorder %s15, 0
    %p110 = por %p108, %p109
    %p111 = scmp.le.s32.totalorder 1, %s9
    %p112 = scmp.lt.s32.totalorder %s9, 3
    %p113 = pnand %p111, %p112
    %p114 = pneg %p113
    // Predicated region
    $region9: #{bottleneck_forward.4} parent=5 // pred_check
      _
    $region10: #{bottleneck_forward.4} parent=5 // pred_check_branch
      %116 = sbr.rel (%p113) target = $region12
    $region11: #{bottleneck_forward.4} parent=5 // pred_region
      %s117 = ssub.s32 %s9, 1
      // Predicated region
      $region13: #{bottleneck_forward.4} parent=11 // pred_check
        %p118 = pneg %p56
      $region14: #{bottleneck_forward.4} parent=11 // pred_check_branch
        %120 = sbr.rel (%p118) target = $region16
      $region15: #{bottleneck_forward.4} parent=11 // pred_region
        _
      $region16: #{bottleneck_forward.4} parent=11 // pred_fallthru
        _
      // Predicated region
      $region17: #{bottleneck_forward.4} parent=11 // pred_check
        %p121 = pneg %p77
      $region18: #{bottleneck_forward.4} parent=11 // pred_check_branch
        %123 = sbr.rel (%p121) target = $region20
      $region19: #{bottleneck_forward.4} parent=11 // pred_region
        _
      $region20: #{bottleneck_forward.4} parent=11 // pred_fallthru
        _
    $region12: #{bottleneck_forward.4} parent=5 // pred_fallthru
      _
    %p124 = scmp.lt.s32.totalorder %s9, 2
    // Predicated region
    $region21: #{bottleneck_forward.4} parent=5 // pred_check
      %p125 = pneg %p124
    $region22: #{bottleneck_forward.4} parent=5 // pred_check_branch
      %127 = sbr.rel (%p125) target = $region24
    $region23: #{bottleneck_forward.4} parent=5 // pred_region
      // Predicated region
      $region25: #{bottleneck_forward.4} parent=23 // pred_check
        %p128 = pneg %p29
      $region26: #{bottleneck_forward.4} parent=23 // pred_check_branch
        %130 = sbr.rel (%p128) target = $region28
      $region27: #{bottleneck_forward.4} parent=23 // pred_region
        %p131 = scmp.lt.s32.totalorder %s9, 1
        %s132 = scalar_select %p131, %s9, 1
        %s133 = smul.addr %s132, 55
        %s134 = smul.addr %s133, 4
        %s135 = scalar_lea.vmem %s0, %s134
      $region28: #{bottleneck_forward.4} parent=23 // pred_fallthru
        _
    $region24: #{bottleneck_forward.4} parent=5 // pred_fallthru
      _
    %p136 = scmp.le.s32.totalorder 1, %s9
    %p137 = scmp.lt.s32.totalorder %s9, 3
    %p138 = pnand %p136, %p137
    %p139 = pneg %p138
    // Predicated region
    $region29: #{bottleneck_forward.4} parent=5 // pred_check
      _
    $region30: #{bottleneck_forward.4} parent=5 // pred_check_branch
      %141 = sbr.rel (%p138) target = $region32
    $region31: #{bottleneck_forward.4} parent=5 // pred_region
      %s142 = ssub.s32 %s9, 1
      %p143 = scmp.lt.s32.totalorder %s14, 1
      %s144 = scalar_select %p143, %s14, 1
      %s145 = smul.addr %s144, 55
      %s146 = smul.addr %s145, 4
      %s147 = scalar_lea.vmem %s0, %s146
      %p148 = pneg %p35
      %p149 = pneg %p32
      %p150 = pneg %p56
      %p151 = pneg %p53
      %p152 = pneg %p77
      %p153 = pneg %p74
      %p154 = pneg %p103
      %p155 = pneg %p100
      %p156 = scmp.lt.s32.totalorder %s14, 1
      %s157 = scalar_select %p156, %s14, 1
      %s158 = smul.addr %s157, 32
      %s159 = smul.addr %s158, 4
      %s160 = scalar_lea.vmem %s3, %s159
      %p161 = scmp.lt.s32.totalorder %s14, 1
      %s162 = scalar_select %p161, %s14, 1
      %s163 = smul.addr %s162, 55
      %s164 = smul.addr %s163, 4
      %s165 = scalar_lea.vmem %s0, %s164
      %p166 = scmp.lt.s32.totalorder %s14, 1
      %s167 = scalar_select %p166, %s14, 1
      %s168 = smul.addr %s167, 32
      %s169 = smul.addr %s168, 4
      %s170 = scalar_lea.vmem %s3, %s169
      %v172 = vld [vmem:[%s165] sm:$0xf]
      %v173 = vld [vmem:[%s165 + $0x4] sm:$0xf]
      %v174 = vld [vmem:[%s165 + $0x8] sm:$0xf]
      %v175 = vld [vmem:[%s165 + $0xc] sm:$0xf]
      %v176 = vld [vmem:[%s165 + $0x10] sm:$0xf]
      %v177 = vld [vmem:[%s165 + $0x14] sm:$0xf]
      %v178 = vld [vmem:[%s165 + $0x18] sm:$0xf]
      %v179 = vld [vmem:[%s165 + $0x1c] sm:$0xf]
      %v180 = vld [vmem:[%s165 + $0x20] sm:$0xf]
      %v181 = vld [vmem:[%s165 + $0x24] sm:$0xf]
      %v182 = vld [vmem:[%s165 + $0x28] sm:$0xf]
      %v183 = vld [vmem:[%s165 + $0x2c] sm:$0xf]
      %v184 = vld [vmem:[%s165 + $0x30] sm:$0xf]
      %v185 = vld [vmem:[%s165 + $0x34] sm:$0xf]
      %v186 = vld [vmem:[%s165 + $0x38] sm:$0xf]
      %v187 = vld [vmem:[%s165 + $0x3c] sm:$0xf]
      %v188 = vld [vmem:[%s165 + $0x40] sm:$0xf]
      %v189 = vld [vmem:[%s165 + $0x44] sm:$0xf]
      %v190 = vld [vmem:[%s165 + $0x48] sm:$0xf]
      %v191 = vld [vmem:[%s165 + $0x4c] sm:$0xf]
      %v192 = vld [vmem:[%s165 + $0x50] sm:$0xf]
      %v193 = vld [vmem:[%s165 + $0x54] sm:$0xf]
      %v194 = vld [vmem:[%s165 + $0x58] sm:$0xf]
      %v195 = vld [vmem:[%s165 + $0x5c] sm:$0xf]
      %v196 = vld [vmem:[%s165 + $0x60] sm:$0xf]
      %v197 = vld [vmem:[%s165 + $0x64] sm:$0xf]
      %v198 = vld [vmem:[%s165 + $0x68] sm:$0xf]
      %v199 = vld [vmem:[%s165 + $0x6c] sm:$0xf]
      %v200 = vld [vmem:[%s165 + $0x70] sm:$0xf]
      %v201 = vld [vmem:[%s165 + $0x74] sm:$0xf]
      %v202 = vld [vmem:[%s165 + $0x78] sm:$0xf]
      %v203 = vld [vmem:[%s165 + $0x7c] sm:$0xf]
      %v204 = vld [vmem:[%s165 + $0x80] sm:$0xf]
      %v205 = vld [vmem:[%s165 + $0x84] sm:$0xf]
      %v206 = vld [vmem:[%s165 + $0x88] sm:$0xf]
      %v207 = vld [vmem:[%s165 + $0x8c] sm:$0xf]
      %v208 = vld [vmem:[%s165 + $0x90] sm:$0xf]
      %v209 = vld [vmem:[%s165 + $0x94] sm:$0xf]
      %v210 = vld [vmem:[%s165 + $0x98] sm:$0xf]
      %v211 = vld [vmem:[%s165 + $0x9c] sm:$0xf]
      %v212 = vld [vmem:[%s165 + $0xa0] sm:$0xf]
      %v213 = vld [vmem:[%s165 + $0xa4] sm:$0xf]
      %v214 = vld [vmem:[%s165 + $0xa8] sm:$0xf]
      %v215 = vld [vmem:[%s165 + $0xac] sm:$0xf]
      %v216 = vld [vmem:[%s165 + $0xb0] sm:$0xf]
      %v217 = vld [vmem:[%s165 + $0xb4] sm:$0xf]
      %v218 = vld [vmem:[%s165 + $0xb8] sm:$0xf]
      %v219 = vld [vmem:[%s165 + $0xbc] sm:$0xf]
      %v220 = vld [vmem:[%s165 + $0xc0] sm:$0x1]
      %v221 = vld [vmem:[%s165] sm:$0xe]
      %v270 = vunpack.c.l.b16 %v172
      %v271 = vunpack.c.l.b16 %v173
      %v272 = vunpack.c.l.b16 %v174
      %v273 = vunpack.c.l.b16 %v175
      %v274 = vunpack.c.l.b16 %v176
      %v275 = vunpack.c.l.b16 %v177
      %v276 = vunpack.c.l.b16 %v178
      %v277 = vunpack.c.l.b16 %v179
      %v278 = vunpack.c.l.b16 %v180
      %v279 = vunpack.c.l.b16 %v181
      %v280 = vunpack.c.l.b16 %v182
      %v281 = vunpack.c.l.b16 %v183
      %v282 = vunpack.c.l.b16 %v184
      %v283 = vunpack.c.l.b16 %v185
      %v284 = vunpack.c.l.b16 %v186
      %v285 = vunpack.c.l.b16 %v187
      %v286 = vunpack.c.l.b16 %v188
      %v287 = vunpack.c.l.b16 %v189
      %v288 = vunpack.c.l.b16 %v190
      %v289 = vunpack.c.l.b16 %v191
      %v290 = vunpack.c.l.b16 %v192
      %v291 = vunpack.c.l.b16 %v193
      %v292 = vunpack.c.l.b16 %v194
      %v293 = vunpack.c.l.b16 %v195
      %v294 = vunpack.c.l.b16 %v196
      %v295 = vunpack.c.l.b16 %v197
      %v296 = vunpack.c.l.b16 %v198
      %v297 = vunpack.c.l.b16 %v199
      %v298 = vunpack.c.l.b16 %v200
      %v299 = vunpack.c.l.b16 %v201
      %v300 = vunpack.c.l.b16 %v202
      %v301 = vunpack.c.l.b16 %v203
      %v302 = vunpack.c.l.b16 %v204
      %v303 = vunpack.c.l.b16 %v205
      %v304 = vunpack.c.l.b16 %v206
      %v305 = vunpack.c.l.b16 %v207
      %v306 = vunpack.c.l.b16 %v208
      %v307 = vunpack.c.l.b16 %v209
      %v308 = vunpack.c.l.b16 %v210
      %v309 = vunpack.c.l.b16 %v211
      %v310 = vunpack.c.l.b16 %v212
      %v311 = vunpack.c.l.b16 %v213
      %v312 = vunpack.c.l.b16 %v214
      %v313 = vunpack.c.l.b16 %v215
      %v314 = vunpack.c.l.b16 %v216
      %v315 = vunpack.c.l.b16 %v217
      %v316 = vunpack.c.l.b16 %v218
      %v317 = vunpack.c.l.b16 %v219
      %v318 = vpack.c.b16 %v271, %v270
      %v319 = vpack.c.b16 %v273, %v272
      %v320 = vpack.c.b16 %v275, %v274
      %v321 = vpack.c.b16 %v277, %v276
      %v322 = vpack.c.b16 %v279, %v278
      %v323 = vpack.c.b16 %v281, %v280
      %v324 = vpack.c.b16 %v283, %v282
      %v325 = vpack.c.b16 %v285, %v284
      %v326 = vpack.c.b16 %v287, %v286
      %v327 = vpack.c.b16 %v289, %v288
      %v328 = vpack.c.b16 %v291, %v290
      %v329 = vpack.c.b16 %v293, %v292
      %v330 = vpack.c.b16 %v295, %v294
      %v331 = vpack.c.b16 %v297, %v296
      %v332 = vpack.c.b16 %v299, %v298
      %v333 = vpack.c.b16 %v301, %v300
      %v334 = vpack.c.b16 %v303, %v302
      %v335 = vpack.c.b16 %v305, %v304
      %v336 = vpack.c.b16 %v307, %v306
      %v337 = vpack.c.b16 %v309, %v308
      %v338 = vpack.c.b16 %v311, %v310
      %v339 = vpack.c.b16 %v313, %v312
      %v340 = vpack.c.b16 %v315, %v314
      %v341 = vpack.c.b16 %v317, %v316
      %v367 = vunpack.c.l.b16 %v220
      %v368 = vpack.c.b16 %v367, %v367
      %vm369 = vsmask.f32 7424
      %v371 = vshrl.u32 %v318, 16
      %v373 = vshll.u32 %v318, 16
      %v375 = vrot.slane %v373, 1
      %v376 = vor.u32 %v371, %v375
      %v378 = vshll.u32 %v319, 16
      %v380 = vrot.slane %v378, 1
      %v381 = vsel %vm369, %v376, %v380
      %v382 = vshrl.u32 %v319, 16
      %v384 = vor.u32 %v382, %v380
      %v386 = vshll.u32 %v320, 16
      %v388 = vrot.slane %v386, 1
      %v389 = vsel %vm369, %v384, %v388
      %v390 = vshrl.u32 %v320, 16
      %v392 = vor.u32 %v390, %v388
      %v394 = vshll.u32 %v321, 16
      %v396 = vrot.slane %v394, 1
      %v397 = vsel %vm369, %v392, %v396
      %v398 = vshrl.u32 %v321, 16
      %v400 = vor.u32 %v398, %v396
      %v402 = vshll.u32 %v322, 16
      %v404 = vrot.slane %v402, 1
      %v405 = vsel %vm369, %v400, %v404
      %v406 = vshrl.u32 %v322, 16
      %v408 = vor.u32 %v406, %v404
      %v410 = vshll.u32 %v323, 16
      %v412 = vrot.slane %v410, 1
      %v413 = vsel %vm369, %v408, %v412
      %v414 = vshrl.u32 %v323, 16
      %v416 = vor.u32 %v414, %v412
      %v418 = vshll.u32 %v324, 16
      %v420 = vrot.slane %v418, 1
      %v421 = vsel %vm369, %v416, %v420
      %v422 = vshrl.u32 %v324, 16
      %v424 = vor.u32 %v422, %v420
      %v426 = vshll.u32 %v325, 16
      %v428 = vrot.slane %v426, 1
      %v429 = vsel %vm369, %v424, %v428
      %v430 = vshrl.u32 %v325, 16
      %v432 = vor.u32 %v430, %v428
      %v434 = vshll.u32 %v326, 16
      %v436 = vrot.slane %v434, 1
      %v437 = vsel %vm369, %v432, %v436
      %v438 = vshrl.u32 %v326, 16
      %v440 = vor.u32 %v438, %v436
      %v442 = vshll.u32 %v327, 16
      %v444 = vrot.slane %v442, 1
      %v445 = vsel %vm369, %v440, %v444
      %v446 = vshrl.u32 %v327, 16
      %v448 = vor.u32 %v446, %v444
      %v450 = vshll.u32 %v328, 16
      %v452 = vrot.slane %v450, 1
      %v453 = vsel %vm369, %v448, %v452
      %v454 = vshrl.u32 %v328, 16
      %v456 = vor.u32 %v454, %v452
      %v458 = vshll.u32 %v329, 16
      %v460 = vrot.slane %v458, 1
      %v461 = vsel %vm369, %v456, %v460
      %v462 = vshrl.u32 %v329, 16
      %v464 = vor.u32 %v462, %v460
      %v466 = vshll.u32 %v330, 16
      %v468 = vrot.slane %v466, 1
      %v469 = vsel %vm369, %v464, %v468
      %v470 = vshrl.u32 %v330, 16
      %v472 = vor.u32 %v470, %v468
      %v474 = vshll.u32 %v331, 16
      %v476 = vrot.slane %v474, 1
      %v477 = vsel %vm369, %v472, %v476
      %v478 = vshrl.u32 %v331, 16
      %v480 = vor.u32 %v478, %v476
      %v482 = vshll.u32 %v332, 16
      %v484 = vrot.slane %v482, 1
      %v485 = vsel %vm369, %v480, %v484
      %v486 = vshrl.u32 %v332, 16
      %v488 = vor.u32 %v486, %v484
      %v490 = vshll.u32 %v333, 16
      %v492 = vrot.slane %v490, 1
      %v493 = vsel %vm369, %v488, %v492
      %v494 = vshrl.u32 %v333, 16
      %v496 = vor.u32 %v494, %v492
      %v498 = vshll.u32 %v334, 16
      %v500 = vrot.slane %v498, 1
      %v501 = vsel %vm369, %v496, %v500
      %v502 = vshrl.u32 %v334, 16
      %v504 = vor.u32 %v502, %v500
      %v506 = vshll.u32 %v335, 16
      %v508 = vrot.slane %v506, 1
      %v509 = vsel %vm369, %v504, %v508
      %v510 = vshrl.u32 %v335, 16
      %v512 = vor.u32 %v510, %v508
      %v514 = vshll.u32 %v336, 16
      %v516 = vrot.slane %v514, 1
      %v517 = vsel %vm369, %v512, %v516
      %v518 = vshrl.u32 %v336, 16
      %v520 = vor.u32 %v518, %v516
      %v522 = vshll.u32 %v337, 16
      %v524 = vrot.slane %v522, 1
      %v525 = vsel %vm369, %v520, %v524
      %v526 = vshrl.u32 %v337, 16
      %v528 = vor.u32 %v526, %v524
      %v530 = vshll.u32 %v338, 16
      %v532 = vrot.slane %v530, 1
      %v533 = vsel %vm369, %v528, %v532
      %v534 = vshrl.u32 %v338, 16
      %v536 = vor.u32 %v534, %v532
      %v538 = vshll.u32 %v339, 16
      %v540 = vrot.slane %v538, 1
      %v541 = vsel %vm369, %v536, %v540
      %v542 = vshrl.u32 %v339, 16
      %v544 = vor.u32 %v542, %v540
      %v546 = vshll.u32 %v340, 16
      %v548 = vrot.slane %v546, 1
      %v549 = vsel %vm369, %v544, %v548
      %v550 = vshrl.u32 %v340, 16
      %v552 = vor.u32 %v550, %v548
      %v554 = vshll.u32 %v341, 16
      %v556 = vrot.slane %v554, 1
      %v557 = vsel %vm369, %v552, %v556
      %v558 = vshrl.u32 %v341, 16
      %v560 = vor.u32 %v558, %v556
      %v562 = vshll.u32 %v368, 16
      %v564 = vrot.slane %v562, 1
      %v565 = vsel %vm369, %v560, %v564
      %v591 = vunpack.c.l.b16 %v221
      %v592 = vpack.c.b16 %v271, %v591
      %vm593 = vcmask 1046528
      %v594 = vrot.slane %v592, 1
      %v595 = vrot.slane %v319, 1
      %v596 = vsel %vm593, %v594, %v595
      %v597 = vrot.slane %v320, 1
      %v598 = vsel %vm593, %v595, %v597
      %v599 = vrot.slane %v321, 1
      %v600 = vsel %vm593, %v597, %v599
      %v601 = vrot.slane %v322, 1
      %v602 = vsel %vm593, %v599, %v601
      %v603 = vrot.slane %v323, 1
      %v604 = vsel %vm593, %v601, %v603
      %v605 = vrot.slane %v324, 1
      %v606 = vsel %vm593, %v603, %v605
      %v607 = vrot.slane %v325, 1
      %v608 = vsel %vm593, %v605, %v607
      %v609 = vrot.slane %v326, 1
      %v610 = vsel %vm593, %v607, %v609
      %v611 = vrot.slane %v327, 1
      %v612 = vsel %vm593, %v609, %v611
      %v613 = vrot.slane %v328, 1
      %v614 = vsel %vm593, %v611, %v613
      %v615 = vrot.slane %v329, 1
      %v616 = vsel %vm593, %v613, %v615
      %v617 = vrot.slane %v330, 1
      %v618 = vsel %vm593, %v615, %v617
      %v619 = vrot.slane %v331, 1
      %v620 = vsel %vm593, %v617, %v619
      %v621 = vrot.slane %v332, 1
      %v622 = vsel %vm593, %v619, %v621
      %v623 = vrot.slane %v333, 1
      %v624 = vsel %vm593, %v621, %v623
      %v625 = vrot.slane %v334, 1
      %v626 = vsel %vm593, %v623, %v625
      %v627 = vrot.slane %v335, 1
      %v628 = vsel %vm593, %v625, %v627
      %v629 = vrot.slane %v336, 1
      %v630 = vsel %vm593, %v627, %v629
      %v631 = vrot.slane %v337, 1
      %v632 = vsel %vm593, %v629, %v631
      %v633 = vrot.slane %v338, 1
      %v634 = vsel %vm593, %v631, %v633
      %v635 = vrot.slane %v339, 1
      %v636 = vsel %vm593, %v633, %v635
      %v637 = vrot.slane %v340, 1
      %v638 = vsel %vm593, %v635, %v637
      %v639 = vrot.slane %v341, 1
      %v640 = vsel %vm593, %v637, %v639
      %v641 = vrot.slane %v368, 1
      %v642 = vsel %vm593, %v639, %v641
      %v667 = vld [vmem:[%s1] sm:$0xf]
      %v668 = vld [vmem:[%s1 + $0x4] sm:$0xf]
      %v669 = vld [vmem:[%s1 + $0x8] sm:$0xf]
      %v670 = vld [vmem:[%s1 + $0xc] sm:$0xf]
      %v671 = vld [vmem:[%s1 + $0x10] sm:$0xf]
      %v672 = vld [vmem:[%s1 + $0x14] sm:$0xf]
      %v673 = vld [vmem:[%s1 + $0x18] sm:$0xf]
      %v674 = vld [vmem:[%s1 + $0x1c] sm:$0xf]
      %v675 = vld [vmem:[%s1 + $0x20] sm:$0xf]
      %v676 = vld [vmem:[%s1 + $0x24] sm:$0xf]
      %v677 = vld [vmem:[%s1 + $0x28] sm:$0xf]
      %v678 = vld [vmem:[%s1 + $0x2c] sm:$0xf]
      %v679 = vld [vmem:[%s1 + $0x30] sm:$0xf]
      %v680 = vld [vmem:[%s1 + $0x34] sm:$0xf]
      %v681 = vld [vmem:[%s1 + $0x38] sm:$0xf]
      %v682 = vld [vmem:[%s1 + $0x3c] sm:$0xf]
      %v683 = vld [vmem:[%s1 + $0x40] sm:$0xf]
      %v684 = vld [vmem:[%s1 + $0x44] sm:$0xf]
      %v685 = vld [vmem:[%s1 + $0x48] sm:$0xf]
      %v686 = vld [vmem:[%s1 + $0x4c] sm:$0xf]
      %v687 = vld [vmem:[%s1 + $0x50] sm:$0xf]
      %v688 = vld [vmem:[%s1 + $0x54] sm:$0xf]
      %v689 = vld [vmem:[%s1 + $0x58] sm:$0xf]
      %v690 = vld [vmem:[%s1 + $0x5c] sm:$0xf]
      %v691 = vld [vmem:[%s1 + $0x60] sm:$0xf]
      %v692 = vld [vmem:[%s1 + $0x64] sm:$0xf]
      %v693 = vld [vmem:[%s1 + $0x68] sm:$0xf]
      %v694 = vld [vmem:[%s1 + $0x6c] sm:$0xf]
      %v695 = vld [vmem:[%s1 + $0x70] sm:$0xf]
      %v696 = vld [vmem:[%s1 + $0x74] sm:$0xf]
      %v697 = vld [vmem:[%s1 + $0x78] sm:$0xf]
      %v698 = vld [vmem:[%s1 + $0x7c] sm:$0xf]
      %v699 = vld [vmem:[%s1 + $0x80] sm:$0xf]
      %v700 = vld [vmem:[%s1 + $0x84] sm:$0xf]
      %v701 = vld [vmem:[%s1 + $0x88] sm:$0xf]
      %v702 = vld [vmem:[%s1 + $0x8c] sm:$0xf]
      %v703 = vld [vmem:[%s1 + $0x90] sm:$0xf]
      %v704 = vld [vmem:[%s1 + $0x94] sm:$0xf]
      %v705 = vld [vmem:[%s1 + $0x98] sm:$0xf]
      %v706 = vld [vmem:[%s1 + $0x9c] sm:$0xf]
      %v707 = vld [vmem:[%s1 + $0xa0] sm:$0xf]
      %v708 = vld [vmem:[%s1 + $0xa4] sm:$0xf]
      %v709 = vld [vmem:[%s1 + $0xa8] sm:$0xf]
      %v710 = vld [vmem:[%s1 + $0xac] sm:$0xf]
      %v711 = vld [vmem:[%s1 + $0xb0] sm:$0xf]
      %v712 = vld [vmem:[%s1 + $0xb4] sm:$0xf]
      %v713 = vld [vmem:[%s1 + $0xb8] sm:$0xf]
      %v714 = vld [vmem:[%s1 + $0xbc] sm:$0xf]
      %v715 = vld [vmem:[%s165 + $0xc0] sm:$0xf]
      %v716 = vld [vmem:[%s165 + $0xc4] sm:$0xf]
      %v717 = vld [vmem:[%s165 + $0xc8] sm:$0xf]
      %v718 = vld [vmem:[%s165 + $0xcc] sm:$0x1]
      %v719 = vld [vmem:[%s165 + $0xc] sm:$0xe]
      %v723 = vunpack.c.l.b16 %v715
      %v724 = vunpack.c.l.b16 %v716
      %v725 = vunpack.c.l.b16 %v717
      %v726 = vpack.c.b16 %v274, %v273
      %v727 = vpack.c.b16 %v276, %v275
      %v728 = vpack.c.b16 %v278, %v277
      %v729 = vpack.c.b16 %v280, %v279
      %v730 = vpack.c.b16 %v282, %v281
      %v731 = vpack.c.b16 %v284, %v283
      %v732 = vpack.c.b16 %v286, %v285
      %v733 = vpack.c.b16 %v288, %v287
      %v734 = vpack.c.b16 %v290, %v289
      %v735 = vpack.c.b16 %v292, %v291
      %v736 = vpack.c.b16 %v294, %v293
      %v737 = vpack.c.b16 %v296, %v295
      %v738 = vpack.c.b16 %v298, %v297
      %v739 = vpack.c.b16 %v300, %v299
      %v740 = vpack.c.b16 %v302, %v301
      %v741 = vpack.c.b16 %v304, %v303
      %v742 = vpack.c.b16 %v306, %v305
      %v743 = vpack.c.b16 %v308, %v307
      %v744 = vpack.c.b16 %v310, %v309
      %v745 = vpack.c.b16 %v312, %v311
      %v746 = vpack.c.b16 %v314, %v313
      %v747 = vpack.c.b16 %v316, %v315
      %v748 = vpack.c.b16 %v723, %v317
      %v749 = vpack.c.b16 %v725, %v724
      %v775 = vunpack.c.l.b16 %v718
      %v776 = vpack.c.b16 %v775, %v775
      %v778 = vshrl.u32 %v726, 16
      %v780 = vshll.u32 %v726, 16
      %v782 = vrot.slane %v780, 1
      %v783 = vor.u32 %v778, %v782
      %v785 = vshll.u32 %v727, 16
      %v787 = vrot.slane %v785, 1
      %v788 = vsel %vm369, %v783, %v787
      %v789 = vshrl.u32 %v727, 16
      %v791 = vor.u32 %v789, %v787
      %v793 = vshll.u32 %v728, 16
      %v795 = vrot.slane %v793, 1
      %v796 = vsel %vm369, %v791, %v795
      %v797 = vshrl.u32 %v728, 16
      %v799 = vor.u32 %v797, %v795
      %v801 = vshll.u32 %v729, 16
      %v803 = vrot.slane %v801, 1
      %v804 = vsel %vm369, %v799, %v803
      %v805 = vshrl.u32 %v729, 16
      %v807 = vor.u32 %v805, %v803
      %v809 = vshll.u32 %v730, 16
      %v811 = vrot.slane %v809, 1
      %v812 = vsel %vm369, %v807, %v811
      %v813 = vshrl.u32 %v730, 16
      %v815 = vor.u32 %v813, %v811
      %v817 = vshll.u32 %v731, 16
      %v819 = vrot.slane %v817, 1
      %v820 = vsel %vm369, %v815, %v819
      %v821 = vshrl.u32 %v731, 16
      %v823 = vor.u32 %v821, %v819
      %v825 = vshll.u32 %v732, 16
      %v827 = vrot.slane %v825, 1
      %v828 = vsel %vm369, %v823, %v827
      %v829 = vshrl.u32 %v732, 16
      %v831 = vor.u32 %v829, %v827
      %v833 = vshll.u32 %v733, 16
      %v835 = vrot.slane %v833, 1
      %v836 = vsel %vm369, %v831, %v835
      %v837 = vshrl.u32 %v733, 16
      %v839 = vor.u32 %v837, %v835
      %v841 = vshll.u32 %v734, 16
      %v843 = vrot.slane %v841, 1
      %v844 = vsel %vm369, %v839, %v843
      %v845 = vshrl.u32 %v734, 16
      %v847 = vor.u32 %v845, %v843
      %v849 = vshll.u32 %v735, 16
      %v851 = vrot.slane %v849, 1
      %v852 = vsel %vm369, %v847, %v851
      %v853 = vshrl.u32 %v735, 16
      %v855 = vor.u32 %v853, %v851
      %v857 = vshll.u32 %v736, 16
      %v859 = vrot.slane %v857, 1
      %v860 = vsel %vm369, %v855, %v859
      %v861 = vshrl.u32 %v736, 16
      %v863 = vor.u32 %v861, %v859
      %v865 = vshll.u32 %v737, 16
      %v867 = vrot.slane %v865, 1
      %v868 = vsel %vm369, %v863, %v867
      %v869 = vshrl.u32 %v737, 16
      %v871 = vor.u32 %v869, %v867
      %v873 = vshll.u32 %v738, 16
      %v875 = vrot.slane %v873, 1
      %v876 = vsel %vm369, %v871, %v875
      %v877 = vshrl.u32 %v738, 16
      %v879 = vor.u32 %v877, %v875
      %v881 = vshll.u32 %v739, 16
      %v883 = vrot.slane %v881, 1
      %v884 = vsel %vm369, %v879, %v883
      %v885 = vshrl.u32 %v739, 16
      %v887 = vor.u32 %v885, %v883
      %v889 = vshll.u32 %v740, 16
      %v891 = vrot.slane %v889, 1
      %v892 = vsel %vm369, %v887, %v891
      %v893 = vshrl.u32 %v740, 16
      %v895 = vor.u32 %v893, %v891
      %v897 = vshll.u32 %v741, 16
      %v899 = vrot.slane %v897, 1
      %v900 = vsel %vm369, %v895, %v899
      %v901 = vshrl.u32 %v741, 16
      %v903 = vor.u32 %v901, %v899
      %v905 = vshll.u32 %v742, 16
      %v907 = vrot.slane %v905, 1
      %v908 = vsel %vm369, %v903, %v907
      %v909 = vshrl.u32 %v742, 16
      %v911 = vor.u32 %v909, %v907
      %v913 = vshll.u32 %v743, 16
      %v915 = vrot.slane %v913, 1
      %v916 = vsel %vm369, %v911, %v915
      %v917 = vshrl.u32 %v743, 16
      %v919 = vor.u32 %v917, %v915
      %v921 = vshll.u32 %v744, 16
      %v923 = vrot.slane %v921, 1
      %v924 = vsel %vm369, %v919, %v923
      %v925 = vshrl.u32 %v744, 16
      %v927 = vor.u32 %v925, %v923
      %v929 = vshll.u32 %v745, 16
      %v931 = vrot.slane %v929, 1
      %v932 = vsel %vm369, %v927, %v931
      %v933 = vshrl.u32 %v745, 16
      %v935 = vor.u32 %v933, %v931
      %v937 = vshll.u32 %v746, 16
      %v939 = vrot.slane %v937, 1
      %v940 = vsel %vm369, %v935, %v939
      %v941 = vshrl.u32 %v746, 16
      %v943 = vor.u32 %v941, %v939
      %v945 = vshll.u32 %v747, 16
      %v947 = vrot.slane %v945, 1
      %v948 = vsel %vm369, %v943, %v947
      %v949 = vshrl.u32 %v747, 16
      %v951 = vor.u32 %v949, %v947
      %v953 = vshll.u32 %v748, 16
      %v955 = vrot.slane %v953, 1
      %v956 = vsel %vm369, %v951, %v955
      %v957 = vshrl.u32 %v748, 16
      %v959 = vor.u32 %v957, %v955
      %v961 = vshll.u32 %v749, 16
      %v963 = vrot.slane %v961, 1
      %v964 = vsel %vm369, %v959, %v963
      %v965 = vshrl.u32 %v749, 16
      %v967 = vor.u32 %v965, %v963
      %v969 = vshll.u32 %v776, 16
      %v971 = vrot.slane %v969, 1
      %v972 = vsel %vm369, %v967, %v971
      %v998 = vunpack.c.l.b16 %v719
      %v999 = vpack.c.b16 %v274, %v998
      %v1000 = vrot.slane %v999, 1
      %v1001 = vrot.slane %v727, 1
      %v1002 = vsel %vm593, %v1000, %v1001
      %v1003 = vrot.slane %v728, 1
      %v1004 = vsel %vm593, %v1001, %v1003
      %v1005 = vrot.slane %v729, 1
      %v1006 = vsel %vm593, %v1003, %v1005
      %v1007 = vrot.slane %v730, 1
      %v1008 = vsel %vm593, %v1005, %v1007
      %v1009 = vrot.slane %v731, 1
      %v1010 = vsel %vm593, %v1007, %v1009
      %v1011 = vrot.slane %v732, 1
      %v1012 = vsel %vm593, %v1009, %v1011
      %v1013 = vrot.slane %v733, 1
      %v1014 = vsel %vm593, %v1011, %v1013
      %v1015 = vrot.slane %v734, 1
      %v1016 = vsel %vm593, %v1013, %v1015
      %v1017 = vrot.slane %v735, 1
      %v1018 = vsel %vm593, %v1015, %v1017
      %v1019 = vrot.slane %v736, 1
      %v1020 = vsel %vm593, %v1017, %v1019
      %v1021 = vrot.slane %v737, 1
      %v1022 = vsel %vm593, %v1019, %v1021
      %v1023 = vrot.slane %v738, 1
      %v1024 = vsel %vm593, %v1021, %v1023
      %v1025 = vrot.slane %v739, 1
      %v1026 = vsel %vm593, %v1023, %v1025
      %v1027 = vrot.slane %v740, 1
      %v1028 = vsel %vm593, %v1025, %v1027
      %v1029 = vrot.slane %v741, 1
      %v1030 = vsel %vm593, %v1027, %v1029
      %v1031 = vrot.slane %v742, 1
      %v1032 = vsel %vm593, %v1029, %v1031
      %v1033 = vrot.slane %v743, 1
      %v1034 = vsel %vm593, %v1031, %v1033
      %v1035 = vrot.slane %v744, 1
      %v1036 = vsel %vm593, %v1033, %v1035
      %v1037 = vrot.slane %v745, 1
      %v1038 = vsel %vm593, %v1035, %v1037
      %v1039 = vrot.slane %v746, 1
      %v1040 = vsel %vm593, %v1037, %v1039
      %v1041 = vrot.slane %v747, 1
      %v1042 = vsel %vm593, %v1039, %v1041
      %v1043 = vrot.slane %v748, 1
      %v1044 = vsel %vm593, %v1041, %v1043
      %v1045 = vrot.slane %v749, 1
      %v1046 = vsel %vm593, %v1043, %v1045
      %v1047 = vrot.slane %v776, 1
      %v1048 = vsel %vm593, %v1045, %v1047
      %s1073 = scalar_lea.vmem %s1, 192
      %v1074 = vld [vmem:[%s1073] sm:$0xf]
      %v1075 = vld [vmem:[%s1073 + $0x4] sm:$0xf]
      %v1076 = vld [vmem:[%s1073 + $0x8] sm:$0xf]
      %v1077 = vld [vmem:[%s1073 + $0xc] sm:$0xf]
      %v1078 = vld [vmem:[%s1073 + $0x10] sm:$0xf]
      %v1079 = vld [vmem:[%s1073 + $0x14] sm:$0xf]
      %v1080 = vld [vmem:[%s1073 + $0x18] sm:$0xf]
      %v1081 = vld [vmem:[%s1073 + $0x1c] sm:$0xf]
      %v1082 = vld [vmem:[%s1073 + $0x20] sm:$0xf]
      %v1083 = vld [vmem:[%s1073 + $0x24] sm:$0xf]
      %v1084 = vld [vmem:[%s1073 + $0x28] sm:$0xf]
      %v1085 = vld [vmem:[%s1073 + $0x2c] sm:$0xf]
      %v1086 = vld [vmem:[%s1073 + $0x30] sm:$0xf]
      %v1087 = vld [vmem:[%s1073 + $0x34] sm:$0xf]
      %v1088 = vld [vmem:[%s1073 + $0x38] sm:$0xf]
      %v1089 = vld [vmem:[%s1073 + $0x3c] sm:$0xf]
      %v1090 = vld [vmem:[%s1073 + $0x40] sm:$0xf]
      %v1091 = vld [vmem:[%s1073 + $0x44] sm:$0xf]
      %v1092 = vld [vmem:[%s1073 + $0x48] sm:$0xf]
      %v1093 = vld [vmem:[%s1073 + $0x4c] sm:$0xf]
      %v1094 = vld [vmem:[%s1073 + $0x50] sm:$0xf]
      %v1095 = vld [vmem:[%s1073 + $0x54] sm:$0xf]
      %v1096 = vld [vmem:[%s1073 + $0x58] sm:$0xf]
      %v1097 = vld [vmem:[%s1073 + $0x5c] sm:$0xf]
      %v1098 = vld [vmem:[%s1073 + $0x60] sm:$0xf]
      %v1099 = vld [vmem:[%s1073 + $0x64] sm:$0xf]
      %v1100 = vld [vmem:[%s1073 + $0x68] sm:$0xf]
      %v1101 = vld [vmem:[%s1073 + $0x6c] sm:$0xf]
      %v1102 = vld [vmem:[%s1073 + $0x70] sm:$0xf]
      %v1103 = vld [vmem:[%s1073 + $0x74] sm:$0xf]
      %v1104 = vld [vmem:[%s1073 + $0x78] sm:$0xf]
      %v1105 = vld [vmem:[%s1073 + $0x7c] sm:$0xf]
      %v1106 = vld [vmem:[%s1073 + $0x80] sm:$0xf]
      %v1107 = vld [vmem:[%s1073 + $0x84] sm:$0xf]
      %v1108 = vld [vmem:[%s1073 + $0x88] sm:$0xf]
      %v1109 = vld [vmem:[%s1073 + $0x8c] sm:$0xf]
      %v1110 = vld [vmem:[%s1073 + $0x90] sm:$0xf]
      %v1111 = vld [vmem:[%s1073 + $0x94] sm:$0xf]
      %v1112 = vld [vmem:[%s1073 + $0x98] sm:$0xf]
      %v1113 = vld [vmem:[%s1073 + $0x9c] sm:$0xf]
      %v1114 = vld [vmem:[%s1073 + $0xa0] sm:$0xf]
      %v1115 = vld [vmem:[%s1073 + $0xa4] sm:$0xf]
      %v1116 = vld [vmem:[%s1073 + $0xa8] sm:$0xf]
      %v1117 = vld [vmem:[%s1073 + $0xac] sm:$0xf]
      %v1118 = vld [vmem:[%s1073 + $0xb0] sm:$0xf]
      %v1119 = vld [vmem:[%s1073 + $0xb4] sm:$0xf]
      %v1120 = vld [vmem:[%s1073 + $0xb8] sm:$0xf]
      %v1121 = vld [vmem:[%s1073 + $0xbc] sm:$0xf]
      %v1170 = vunpack.c.l.b16 %v1074
      %v1171 = vunpack.c.l.b16 %v1075
      %v1172 = vunpack.c.l.b16 %v1076
      %v1173 = vunpack.c.l.b16 %v1077
      %v1174 = vunpack.c.l.b16 %v1078
      %v1175 = vunpack.c.l.b16 %v1079
      %v1176 = vunpack.c.l.b16 %v1080
      %v1177 = vunpack.c.l.b16 %v1081
      %v1178 = vunpack.c.l.b16 %v1082
      %v1179 = vunpack.c.l.b16 %v1083
      %v1180 = vunpack.c.l.b16 %v1084
      %v1181 = vunpack.c.l.b16 %v1085
      %v1182 = vunpack.c.l.b16 %v1086
      %v1183 = vunpack.c.l.b16 %v1087
      %v1184 = vunpack.c.l.b16 %v1088
      %v1185 = vunpack.c.l.b16 %v1089
      %v1186 = vunpack.c.l.b16 %v1090
      %v1187 = vunpack.c.l.b16 %v1091
      %v1188 = vunpack.c.l.b16 %v1092
      %v1189 = vunpack.c.l.b16 %v1093
      %v1190 = vunpack.c.l.b16 %v1094
      %v1191 = vunpack.c.l.b16 %v1095
      %v1192 = vunpack.c.l.b16 %v1096
      %v1193 = vunpack.c.l.b16 %v1097
      %v1194 = vunpack.c.l.b16 %v1098
      %v1195 = vunpack.c.l.b16 %v1099
      %v1196 = vunpack.c.l.b16 %v1100
      %v1197 = vunpack.c.l.b16 %v1101
      %v1198 = vunpack.c.l.b16 %v1102
      %v1199 = vunpack.c.l.b16 %v1103
      %v1200 = vunpack.c.l.b16 %v1104
      %v1201 = vunpack.c.l.b16 %v1105
      %v1202 = vunpack.c.l.b16 %v1106
      %v1203 = vunpack.c.l.b16 %v1107
      %v1204 = vunpack.c.l.b16 %v1108
      %v1205 = vunpack.c.l.b16 %v1109
      %v1206 = vunpack.c.l.b16 %v1110
      %v1207 = vunpack.c.l.b16 %v1111
      %v1208 = vunpack.c.l.b16 %v1112
      %v1209 = vunpack.c.l.b16 %v1113
      %v1210 = vunpack.c.l.b16 %v1114
      %v1211 = vunpack.c.l.b16 %v1115
      %v1212 = vunpack.c.l.b16 %v1116
      %v1213 = vunpack.c.l.b16 %v1117
      %v1214 = vunpack.c.l.b16 %v1118
      %v1215 = vunpack.c.l.b16 %v1119
      %v1216 = vunpack.c.l.b16 %v1120
      %v1217 = vunpack.c.l.b16 %v1121
      %v1218 = vpack.c.b16 %v1171, %v1170
      %v1219 = vpack.c.b16 %v1173, %v1172
      %v1220 = vpack.c.b16 %v1175, %v1174
      %v1221 = vpack.c.b16 %v1177, %v1176
      %v1222 = vpack.c.b16 %v1179, %v1178
      %v1223 = vpack.c.b16 %v1181, %v1180
      %v1224 = vpack.c.b16 %v1183, %v1182
      %v1225 = vpack.c.b16 %v1185, %v1184
      %v1226 = vpack.c.b16 %v1187, %v1186
      %v1227 = vpack.c.b16 %v1189, %v1188
      %v1228 = vpack.c.b16 %v1191, %v1190
      %v1229 = vpack.c.b16 %v1193, %v1192
      %v1230 = vpack.c.b16 %v1195, %v1194
      %v1231 = vpack.c.b16 %v1197, %v1196
      %v1232 = vpack.c.b16 %v1199, %v1198
      %v1233 = vpack.c.b16 %v1201, %v1200
      %v1234 = vpack.c.b16 %v1203, %v1202
      %v1235 = vpack.c.b16 %v1205, %v1204
      %v1236 = vpack.c.b16 %v1207, %v1206
      %v1237 = vpack.c.b16 %v1209, %v1208
      %v1238 = vpack.c.b16 %v1211, %v1210
      %v1239 = vpack.c.b16 %v1213, %v1212
      %v1240 = vpack.c.b16 %v1215, %v1214
      %v1241 = vpack.c.b16 %v1217, %v1216
      %1266 = vmatprep.subr.bf16.mxu0 0
      %1267 = vmatpush1.bf16.msra.mxu0 %v1225
      %1268 = vmatprep.subr.bf16.mxu0 0
      %1269 = vmatpush1.bf16.msra.mxu0 %v1224
      %1270 = vmatprep.subr.bf16.mxu0 0
      %1271 = vmatpush1.bf16.msra.mxu0 %v1223
      %1272 = vmatprep.subr.bf16.mxu0 0
      %1273 = vmatpush1.bf16.msra.mxu0 %v1222
      %1274 = vmatprep.subr.bf16.mxu0 0
      %1275 = vmatpush1.bf16.msra.mxu0 %v1221
      %1276 = vmatprep.subr.bf16.mxu0 0
      %1277 = vmatpush1.bf16.msra.mxu0 %v1220
      %1278 = vmatprep.subr.bf16.mxu0 0
      %1279 = vmatpush1.bf16.msra.mxu0 %v1219
      %1280 = vmatprep.subr.bf16.mxu0 0
      %1281 = vmatpush1.bf16.msra.mxu0 %v1218
      %1282 = vmatprep.subr.bf16.mxu0 0
      %1283 = vmatpush2.bf16.msra.mxu0 %v1233
      %1284 = vmatprep.subr.bf16.mxu0 0
      %1285 = vmatpush2.bf16.msra.mxu0 %v1232
      %1286 = vmatprep.subr.bf16.mxu0 0
      %1287 = vmatpush2.bf16.msra.mxu0 %v1231
      %1288 = vmatprep.subr.bf16.mxu0 0
      %1289 = vmatpush2.bf16.msra.mxu0 %v1230
      %1290 = vmatprep.subr.bf16.mxu0 0
      %1291 = vmatpush2.bf16.msra.mxu0 %v1229
      %1292 = vmatprep.subr.bf16.mxu0 0
      %1293 = vmatpush2.bf16.msra.mxu0 %v1228
      %1294 = vmatprep.subr.bf16.mxu0 0
      %1295 = vmatpush2.bf16.msra.mxu0 %v1227
      %1296 = vmatprep.subr.bf16.mxu0 0
      %1297 = vmatpush2.bf16.msra.mxu0 %v1226
      %1298 = vmatprep.mubr.bf16.mxu0 %v788
      %1299 = vmatmul.mubr.bf16.gmra.mxu0 %v726
      %v1300 = vpop.f32.mrf.mxu0
      %v1301 = vadd.f32 0.0, %v1300
      %v1302 = vpop.f32.mrf.mxu0
      %v1303 = vpop.f32.mrf.mxu0
      %v1304 = vadd.f32 0.0, %v1303
      %v1305 = vpop.f32.mrf.mxu0
      %1306 = vmatprep.mubr.bf16.mxu0 %v796
      %1307 = vmatmul.mubr.bf16.gmra.mxu0 %v727
      %v1308 = vpop.f32.mrf.mxu0
      %v1309 = vpop.f32.mrf.mxu0
      %v1310 = vpop.f32.mrf.mxu0
      %v1311 = vadd.f32 0.0, %v1310
      %v1312 = vpop.f32.mrf.mxu0
      %1313 = vmatprep.mubr.bf16.mxu0 %v804
      %1314 = vmatmul.mubr.bf16.gmra.mxu0 %v728
      %v1315 = vpop.f32.mrf.mxu0
      %v1316 = vadd.f32 0.0, %v1315
      %v1317 = vpop.f32.mrf.mxu0
      %v1318 = vpop.f32.mrf.mxu0
      %v1319 = vpop.f32.mrf.mxu0
      %1320 = vmatprep.mubr.bf16.mxu0 %v812
      %1321 = vmatmul.mubr.bf16.gmra.mxu0 %v729
      %v1322 = vpop.f32.mrf.mxu0
      %v1323 = vadd.f32 0.0, %v1322
      %v1324 = vpop.f32.mrf.mxu0
      %v1325 = vpop.f32.mrf.mxu0
      %v1326 = vadd.f32 0.0, %v1325
      %v1327 = vpop.f32.mrf.mxu0
      %1328 = vmatprep.mubr.bf16.mxu0 %v820
      %1329 = vmatmul.mubr.bf16.gmra.mxu0 %v730
      %v1330 = vpop.f32.mrf.mxu0
      %v1331 = vpop.f32.mrf.mxu0
      %v1332 = vpop.f32.mrf.mxu0
      %v1333 = vadd.f32 0.0, %v1332
      %v1334 = vpop.f32.mrf.mxu0
      %1335 = vmatprep.mubr.bf16.mxu0 %v828
      %1336 = vmatmul.mubr.bf16.gmra.mxu0 %v731
      %v1337 = vpop.f32.mrf.mxu0
      %v1338 = vadd.f32 0.0, %v1337
      %v1339 = vpop.f32.mrf.mxu0
      %v1340 = vpop.f32.mrf.mxu0
      %v1341 = vpop.f32.mrf.mxu0
      %1342 = vmatprep.mubr.bf16.mxu0 %v836
      %1343 = vmatmul.mubr.bf16.gmra.mxu0 %v732
      %v1344 = vpop.f32.mrf.mxu0
      %v1345 = vadd.f32 0.0, %v1344
      %v1346 = vpop.f32.mrf.mxu0
      %v1347 = vpop.f32.mrf.mxu0
      %v1348 = vadd.f32 0.0, %v1347
      %v1349 = vpop.f32.mrf.mxu0
      %1350 = vmatprep.mubr.bf16.mxu0 %v844
      %1351 = vmatmul.mubr.bf16.gmra.mxu0 %v733
      %v1352 = vpop.f32.mrf.mxu0
      %v1353 = vpop.f32.mrf.mxu0
      %v1354 = vpop.f32.mrf.mxu0
      %v1355 = vadd.f32 0.0, %v1354
      %v1356 = vpop.f32.mrf.mxu0
      %1357 = vmatprep.mubr.bf16.mxu0 %v852
      %1358 = vmatmul.mubr.bf16.gmra.mxu0 %v734
      %v1359 = vpop.f32.mrf.mxu0
      %v1360 = vadd.f32 0.0, %v1359
      %v1361 = vpop.f32.mrf.mxu0
      %v1362 = vpop.f32.mrf.mxu0
      %v1363 = vpop.f32.mrf.mxu0
      %1364 = vmatprep.mubr.bf16.mxu0 %v860
      %1365 = vmatmul.mubr.bf16.gmra.mxu0 %v735
      %v1366 = vpop.f32.mrf.mxu0
      %v1367 = vadd.f32 0.0, %v1366
      %v1368 = vpop.f32.mrf.mxu0
      %v1369 = vpop.f32.mrf.mxu0
      %v1370 = vadd.f32 0.0, %v1369
      %v1371 = vpop.f32.mrf.mxu0
      %1372 = vmatprep.mubr.bf16.mxu0 %v868
      %1373 = vmatmul.mubr.bf16.gmra.mxu0 %v736
      %v1374 = vpop.f32.mrf.mxu0
      %v1375 = vpop.f32.mrf.mxu0
      %v1376 = vpop.f32.mrf.mxu0
      %v1377 = vadd.f32 0.0, %v1376
      %v1378 = vpop.f32.mrf.mxu0
      %1379 = vmatprep.mubr.bf16.mxu0 %v876
      %1380 = vmatmul.mubr.bf16.gmra.mxu0 %v737
      %v1381 = vpop.f32.mrf.mxu0
      %v1382 = vadd.f32 0.0, %v1381
      %v1383 = vpop.f32.mrf.mxu0
      %v1384 = vpop.f32.mrf.mxu0
      %v1385 = vpop.f32.mrf.mxu0
      %1386 = vmatprep.mubr.bf16.mxu0 %v884
      %1387 = vmatmul.mubr.bf16.gmra.mxu0 %v738
      %v1388 = vpop.f32.mrf.mxu0
      %v1389 = vadd.f32 0.0, %v1388
      %v1390 = vpop.f32.mrf.mxu0
      %v1391 = vpop.f32.mrf.mxu0
      %v1392 = vadd.f32 0.0, %v1391
      %v1393 = vpop.f32.mrf.mxu0
      %1394 = vmatprep.mubr.bf16.mxu0 %v892
      %1395 = vmatmul.mubr.bf16.gmra.mxu0 %v739
      %v1396 = vpop.f32.mrf.mxu0
      %v1397 = vpop.f32.mrf.mxu0
      %v1398 = vpop.f32.mrf.mxu0
      %v1399 = vadd.f32 0.0, %v1398
      %v1400 = vpop.f32.mrf.mxu0
      %1401 = vmatprep.mubr.bf16.mxu0 %v900
      %1402 = vmatmul.mubr.bf16.gmra.mxu0 %v740
      %v1403 = vpop.f32.mrf.mxu0
      %v1404 = vadd.f32 0.0, %v1403
      %v1405 = vpop.f32.mrf.mxu0
      %v1406 = vpop.f32.mrf.mxu0
      %v1407 = vpop.f32.mrf.mxu0
      %1408 = vmatprep.mubr.bf16.mxu0 %v908
      %1409 = vmatmul.mubr.bf16.gmra.mxu0 %v741
      %v1410 = vpop.f32.mrf.mxu0
      %v1411 = vadd.f32 0.0, %v1410
      %v1412 = vpop.f32.mrf.mxu0
      %v1413 = vpop.f32.mrf.mxu0
      %v1414 = vadd.f32 0.0, %v1413
      %v1415 = vpop.f32.mrf.mxu0
      %1416 = vmatprep.mubr.bf16.mxu0 %v916
      %1417 = vmatmul.mubr.bf16.gmra.mxu0 %v742
      %v1418 = vpop.f32.mrf.mxu0
      %v1419 = vpop.f32.mrf.mxu0
      %v1420 = vpop.f32.mrf.mxu0
      %v1421 = vadd.f32 0.0, %v1420
      %v1422 = vpop.f32.mrf.mxu0
      %1423 = vmatprep.mubr.bf16.mxu0 %v924
      %1424 = vmatmul.mubr.bf16.gmra.mxu0 %v743
      %v1425 = vpop.f32.mrf.mxu0
      %v1426 = vadd.f32 0.0, %v1425
      %v1427 = vpop.f32.mrf.mxu0
      %v1428 = vpop.f32.mrf.mxu0
      %v1429 = vpop.f32.mrf.mxu0
      %1430 = vmatprep.mubr.bf16.mxu0 %v932
      %1431 = vmatmul.mubr.bf16.gmra.mxu0 %v744
      %v1432 = vpop.f32.mrf.mxu0
      %v1433 = vadd.f32 0.0, %v1432
      %v1434 = vpop.f32.mrf.mxu0
      %v1435 = vpop.f32.mrf.mxu0
      %v1436 = vadd.f32 0.0, %v1435
      %v1437 = vpop.f32.mrf.mxu0
      %1438 = vmatprep.mubr.bf16.mxu0 %v940
      %1439 = vmatmul.mubr.bf16.gmra.mxu0 %v745
      %v1440 = vpop.f32.mrf.mxu0
      %v1441 = vpop.f32.mrf.mxu0
      %v1442 = vpop.f32.mrf.mxu0
      %v1443 = vadd.f32 0.0, %v1442
      %v1444 = vpop.f32.mrf.mxu0
      %1445 = vmatprep.mubr.bf16.mxu0 %v948
      %1446 = vmatmul.mubr.bf16.gmra.mxu0 %v746
      %v1447 = vpop.f32.mrf.mxu0
      %v1448 = vadd.f32 0.0, %v1447
      %v1449 = vpop.f32.mrf.mxu0
      %v1450 = vpop.f32.mrf.mxu0
      %v1451 = vpop.f32.mrf.mxu0
      %1452 = vmatprep.mubr.bf16.mxu0 %v956
      %1453 = vmatmul.mubr.bf16.gmra.mxu0 %v747
      %v1454 = vpop.f32.mrf.mxu0
      %v1455 = vadd.f32 0.0, %v1454
      %v1456 = vpop.f32.mrf.mxu0
      %v1457 = vpop.f32.mrf.mxu0
      %v1458 = vadd.f32 0.0, %v1457
      %v1459 = vpop.f32.mrf.mxu0
      %1460 = vmatprep.mubr.bf16.mxu0 %v964
      %1461 = vmatmul.mubr.bf16.gmra.mxu0 %v748
      %v1462 = vpop.f32.mrf.mxu0
      %v1463 = vpop.f32.mrf.mxu0
      %v1464 = vpop.f32.mrf.mxu0
      %v1465 = vadd.f32 0.0, %v1464
      %v1466 = vpop.f32.mrf.mxu0
      %1467 = vmatprep.mubr.bf16.mxu0 %v972
      %1468 = vmatmul.mubr.bf16.gmra.mxu0 %v749
      %v1469 = vpop.f32.mrf.mxu0
      %v1470 = vadd.f32 0.0, %v1469
      %v1471 = vpop.f32.mrf.mxu0
      %v1472 = vpop.f32.mrf.mxu0
      %v1473 = vpop.f32.mrf.mxu0
      %1474 = vdwg.mxu0
      %1475 = vmatprep.subr.bf16.mxu0 0
      %1476 = vmatpush1.bf16.msra.mxu0 %v1241
      %1477 = vmatprep.subr.bf16.mxu0 0
      %1478 = vmatpush1.bf16.msra.mxu0 %v1240
      %1479 = vmatprep.subr.bf16.mxu0 0
      %1480 = vmatpush1.bf16.msra.mxu0 %v1239
      %1481 = vmatprep.subr.bf16.mxu0 0
      %1482 = vmatpush1.bf16.msra.mxu0 %v1238
      %1483 = vmatprep.subr.bf16.mxu0 0
      %1484 = vmatpush1.bf16.msra.mxu0 %v1237
      %1485 = vmatprep.subr.bf16.mxu0 0
      %1486 = vmatpush1.bf16.msra.mxu0 %v1236
      %1487 = vmatprep.subr.bf16.mxu0 0
      %1488 = vmatpush1.bf16.msra.mxu0 %v1235
      %1489 = vmatprep.subr.bf16.mxu0 0
      %1490 = vmatpush1.bf16.msra.mxu0 %v1234
      %1491 = vmatprep.subr.bf16.mxu0 0
      %1492 = vmatpush2.bf16.msra.mxu0 0
      %1493 = vmatprep.subr.bf16.mxu0 0
      %1494 = vmatpush2.bf16.msra.mxu0 0
      %1495 = vmatprep.subr.bf16.mxu0 0
      %1496 = vmatpush2.bf16.msra.mxu0 0
      %1497 = vmatprep.subr.bf16.mxu0 0
      %1498 = vmatpush2.bf16.msra.mxu0 0
      %1499 = vmatprep.subr.bf16.mxu0 0
      %1500 = vmatpush2.bf16.msra.mxu0 0
      %1501 = vmatprep.subr.bf16.mxu0 0
      %1502 = vmatpush2.bf16.msra.mxu0 0
      %1503 = vmatprep.subr.bf16.mxu0 0
      %1504 = vmatpush2.bf16.msra.mxu0 0
      %1505 = vmatprep.subr.bf16.mxu0 0
      %1506 = vmatpush2.bf16.msra.mxu0 0
      %1507 = vmatprep.mubr.bf16.mxu0 0
      %1508 = vmatmul.mubr.bf16.gmra.mxu0 %v1002
      %v1509 = vpop.f32.mrf.mxu0
      %v1510 = vadd.f32 %v1301, %v1509
      %v1511 = vpop.f32.mrf.mxu0
      %v1512 = vpop.f32.mrf.mxu0
      %v1513 = vadd.f32 %v1304, %v1512
      %v1514 = vpop.f32.mrf.mxu0
      %1515 = vmatprep.mubr.bf16.mxu0 0
      %1516 = vmatmul.mubr.bf16.gmra.mxu0 %v1004
      %v1517 = vpop.f32.mrf.mxu0
      %v1518 = vpop.f32.mrf.mxu0
      %v1519 = vpop.f32.mrf.mxu0
      %v1520 = vadd.f32 %v1311, %v1519
      %v1521 = vpop.f32.mrf.mxu0
      %1522 = vmatprep.mubr.bf16.mxu0 0
      %1523 = vmatmul.mubr.bf16.gmra.mxu0 %v1006
      %v1524 = vpop.f32.mrf.mxu0
      %v1525 = vadd.f32 %v1316, %v1524
      %v1526 = vpop.f32.mrf.mxu0
      %v1527 = vpop.f32.mrf.mxu0
      %v1528 = vpop.f32.mrf.mxu0
      %1529 = vmatprep.mubr.bf16.mxu0 0
      %1530 = vmatmul.mubr.bf16.gmra.mxu0 %v1008
      %v1531 = vpop.f32.mrf.mxu0
      %v1532 = vadd.f32 %v1323, %v1531
      %v1533 = vpop.f32.mrf.mxu0
      %v1534 = vpop.f32.mrf.mxu0
      %v1535 = vadd.f32 %v1326, %v1534
      %v1536 = vpop.f32.mrf.mxu0
      %1537 = vmatprep.mubr.bf16.mxu0 0
      %1538 = vmatmul.mubr.bf16.gmra.mxu0 %v1010
      %v1539 = vpop.f32.mrf.mxu0
      %v1540 = vpop.f32.mrf.mxu0
      %v1541 = vpop.f32.mrf.mxu0
      %v1542 = vadd.f32 %v1333, %v1541
      %v1543 = vpop.f32.mrf.mxu0
      %1544 = vmatprep.mubr.bf16.mxu0 0
      %1545 = vmatmul.mubr.bf16.gmra.mxu0 %v1012
      %v1546 = vpop.f32.mrf.mxu0
      %v1547 = vadd.f32 %v1338, %v1546
      %v1548 = vpop.f32.mrf.mxu0
      %v1549 = vpop.f32.mrf.mxu0
      %v1550 = vpop.f32.mrf.mxu0
      %1551 = vmatprep.mubr.bf16.mxu0 0
      %1552 = vmatmul.mubr.bf16.gmra.mxu0 %v1014
      %v1553 = vpop.f32.mrf.mxu0
      %v1554 = vadd.f32 %v1345, %v1553
      %v1555 = vpop.f32.mrf.mxu0
      %v1556 = vpop.f32.mrf.mxu0
      %v1557 = vadd.f32 %v1348, %v1556
      %v1558 = vpop.f32.mrf.mxu0
      %1559 = vmatprep.mubr.bf16.mxu0 0
      %1560 = vmatmul.mubr.bf16.gmra.mxu0 %v1016
      %v1561 = vpop.f32.mrf.mxu0
      %v1562 = vpop.f32.mrf.mxu0
      %v1563 = vpop.f32.mrf.mxu0
      %v1564 = vadd.f32 %v1355, %v1563
      %v1565 = vpop.f32.mrf.mxu0
      %1566 = vmatprep.mubr.bf16.mxu0 0
      %1567 = vmatmul.mubr.bf16.gmra.mxu0 %v1018
      %v1568 = vpop.f32.mrf.mxu0
      %v1569 = vadd.f32 %v1360, %v1568
      %v1570 = vpop.f32.mrf.mxu0
      %v1571 = vpop.f32.mrf.mxu0
      %v1572 = vpop.f32.mrf.mxu0
      %1573 = vmatprep.mubr.bf16.mxu0 0
      %1574 = vmatmul.mubr.bf16.gmra.mxu0 %v1020
      %v1575 = vpop.f32.mrf.mxu0
      %v1576 = vadd.f32 %v1367, %v1575
      %v1577 = vpop.f32.mrf.mxu0
      %v1578 = vpop.f32.mrf.mxu0
      %v1579 = vadd.f32 %v1370, %v1578
      %v1580 = vpop.f32.mrf.mxu0
      %1581 = vmatprep.mubr.bf16.mxu0 0
      %1582 = vmatmul.mubr.bf16.gmra.mxu0 %v1022
      %v1583 = vpop.f32.mrf.mxu0
      %v1584 = vpop.f32.mrf.mxu0
      %v1585 = vpop.f32.mrf.mxu0
      %v1586 = vadd.f32 %v1377, %v1585
      %v1587 = vpop.f32.mrf.mxu0
      %1588 = vmatprep.mubr.bf16.mxu0 0
      %1589 = vmatmul.mubr.bf16.gmra.mxu0 %v1024
      %v1590 = vpop.f32.mrf.mxu0
      %v1591 = vadd.f32 %v1382, %v1590
      %v1592 = vpop.f32.mrf.mxu0
      %v1593 = vpop.f32.mrf.mxu0
      %v1594 = vpop.f32.mrf.mxu0
      %1595 = vmatprep.mubr.bf16.mxu0 0
      %1596 = vmatmul.mubr.bf16.gmra.mxu0 %v1026
      %v1597 = vpop.f32.mrf.mxu0
      %v1598 = vadd.f32 %v1389, %v1597
      %v1599 = vpop.f32.mrf.mxu0
      %v1600 = vpop.f32.mrf.mxu0
      %v1601 = vadd.f32 %v1392, %v1600
      %v1602 = vpop.f32.mrf.mxu0
      %1603 = vmatprep.mubr.bf16.mxu0 0
      %1604 = vmatmul.mubr.bf16.gmra.mxu0 %v1028
      %v1605 = vpop.f32.mrf.mxu0
      %v1606 = vpop.f32.mrf.mxu0
      %v1607 = vpop.f32.mrf.mxu0
      %v1608 = vadd.f32 %v1399, %v1607
      %v1609 = vpop.f32.mrf.mxu0
      %1610 = vmatprep.mubr.bf16.mxu0 0
      %1611 = vmatmul.mubr.bf16.gmra.mxu0 %v1030
      %v1612 = vpop.f32.mrf.mxu0
      %v1613 = vadd.f32 %v1404, %v1612
      %v1614 = vpop.f32.mrf.mxu0
      %v1615 = vpop.f32.mrf.mxu0
      %v1616 = vpop.f32.mrf.mxu0
      %1617 = vmatprep.mubr.bf16.mxu0 0
      %1618 = vmatmul.mubr.bf16.gmra.mxu0 %v1032
      %v1619 = vpop.f32.mrf.mxu0
      %v1620 = vadd.f32 %v1411, %v1619
      %v1621 = vpop.f32.mrf.mxu0
      %v1622 = vpop.f32.mrf.mxu0
      %v1623 = vadd.f32 %v1414, %v1622
      %v1624 = vpop.f32.mrf.mxu0
      %1625 = vmatprep.mubr.bf16.mxu0 0
      %1626 = vmatmul.mubr.bf16.gmra.mxu0 %v1034
      %v1627 = vpop.f32.mrf.mxu0
      %v1628 = vpop.f32.mrf.mxu0
      %v1629 = vpop.f32.mrf.mxu0
      %v1630 = vadd.f32 %v1421, %v1629
      %v1631 = vpop.f32.mrf.mxu0
      %1632 = vmatprep.mubr.bf16.mxu0 0
      %1633 = vmatmul.mubr.bf16.gmra.mxu0 %v1036
      %v1634 = vpop.f32.mrf.mxu0
      %v1635 = vadd.f32 %v1426, %v1634
      %v1636 = vpop.f32.mrf.mxu0
      %v1637 = vpop.f32.mrf.mxu0
      %v1638 = vpop.f32.mrf.mxu0
      %1639 = vmatprep.mubr.bf16.mxu0 0
      %1640 = vmatmul.mubr.bf16.gmra.mxu0 %v1038
      %v1641 = vpop.f32.mrf.mxu0
      %v1642 = vadd.f32 %v1433, %v1641
      %v1643 = vpop.f32.mrf.mxu0
      %v1644 = vpop.f32.mrf.mxu0
      %v1645 = vadd.f32 %v1436, %v1644
      %v1646 = vpop.f32.mrf.mxu0
      %1647 = vmatprep.mubr.bf16.mxu0 0
      %1648 = vmatmul.mubr.bf16.gmra.mxu0 %v1040
      %v1649 = vpop.f32.mrf.mxu0
      %v1650 = vpop.f32.mrf.mxu0
      %v1651 = vpop.f32.mrf.mxu0
      %v1652 = vadd.f32 %v1443, %v1651
      %v1653 = vpop.f32.mrf.mxu0
      %1654 = vmatprep.mubr.bf16.mxu0 0
      %1655 = vmatmul.mubr.bf16.gmra.mxu0 %v1042
      %v1656 = vpop.f32.mrf.mxu0
      %v1657 = vadd.f32 %v1448, %v1656
      %v1658 = vpop.f32.mrf.mxu0
      %v1659 = vpop.f32.mrf.mxu0
      %v1660 = vpop.f32.mrf.mxu0
      %1661 = vmatprep.mubr.bf16.mxu0 0
      %1662 = vmatmul.mubr.bf16.gmra.mxu0 %v1044
      %v1663 = vpop.f32.mrf.mxu0
      %v1664 = vadd.f32 %v1455, %v1663
      %v1665 = vpop.f32.mrf.mxu0
      %v1666 = vpop.f32.mrf.mxu0
      %v1667 = vadd.f32 %v1458, %v1666
      %v1668 = vpop.f32.mrf.mxu0
      %1669 = vmatprep.mubr.bf16.mxu0 0
      %1670 = vmatmul.mubr.bf16.gmra.mxu0 %v1046
      %v1671 = vpop.f32.mrf.mxu0
      %v1672 = vpop.f32.mrf.mxu0
      %v1673 = vpop.f32.mrf.mxu0
      %v1674 = vadd.f32 %v1465, %v1673
      %v1675 = vpop.f32.mrf.mxu0
      %1676 = vmatprep.mubr.bf16.mxu0 0
      %1677 = vmatmul.mubr.bf16.gmra.mxu0 %v1048
      %v1678 = vpop.f32.mrf.mxu0
      %v1679 = vadd.f32 %v1470, %v1678
      %v1680 = vpop.f32.mrf.mxu0
      %v1681 = vpop.f32.mrf.mxu0
      %v1682 = vpop.f32.mrf.mxu0
      %1683 = vdwg.mxu0
      %v1732 = vunpack.c.l.b16 %v667
      %v1733 = vunpack.c.l.b16 %v668
      %v1734 = vunpack.c.l.b16 %v669
      %v1735 = vunpack.c.l.b16 %v670
      %v1736 = vunpack.c.l.b16 %v671
      %v1737 = vunpack.c.l.b16 %v672
      %v1738 = vunpack.c.l.b16 %v673
      %v1739 = vunpack.c.l.b16 %v674
      %v1740 = vunpack.c.l.b16 %v675
      %v1741 = vunpack.c.l.b16 %v676
      %v1742 = vunpack.c.l.b16 %v677
      %v1743 = vunpack.c.l.b16 %v678
      %v1744 = vunpack.c.l.b16 %v679
      %v1745 = vunpack.c.l.b16 %v680
      %v1746 = vunpack.c.l.b16 %v681
      %v1747 = vunpack.c.l.b16 %v682
      %v1748 = vunpack.c.l.b16 %v683
      %v1749 = vunpack.c.l.b16 %v684
      %v1750 = vunpack.c.l.b16 %v685
      %v1751 = vunpack.c.l.b16 %v686
      %v1752 = vunpack.c.l.b16 %v687
      %v1753 = vunpack.c.l.b16 %v688
      %v1754 = vunpack.c.l.b16 %v689
      %v1755 = vunpack.c.l.b16 %v690
      %v1756 = vunpack.c.l.b16 %v691
      %v1757 = vunpack.c.l.b16 %v692
      %v1758 = vunpack.c.l.b16 %v693
      %v1759 = vunpack.c.l.b16 %v694
      %v1760 = vunpack.c.l.b16 %v695
      %v1761 = vunpack.c.l.b16 %v696
      %v1762 = vunpack.c.l.b16 %v697
      %v1763 = vunpack.c.l.b16 %v698
      %v1764 = vunpack.c.l.b16 %v699
      %v1765 = vunpack.c.l.b16 %v700
      %v1766 = vunpack.c.l.b16 %v701
      %v1767 = vunpack.c.l.b16 %v702
      %v1768 = vunpack.c.l.b16 %v703
      %v1769 = vunpack.c.l.b16 %v704
      %v1770 = vunpack.c.l.b16 %v705
      %v1771 = vunpack.c.l.b16 %v706
      %v1772 = vunpack.c.l.b16 %v707
      %v1773 = vunpack.c.l.b16 %v708
      %v1774 = vunpack.c.l.b16 %v709
      %v1775 = vunpack.c.l.b16 %v710
      %v1776 = vunpack.c.l.b16 %v711
      %v1777 = vunpack.c.l.b16 %v712
      %v1778 = vunpack.c.l.b16 %v713
      %v1779 = vunpack.c.l.b16 %v714
      %v1780 = vpack.c.b16 %v1733, %v1732
      %v1781 = vpack.c.b16 %v1735, %v1734
      %v1782 = vpack.c.b16 %v1737, %v1736
      %v1783 = vpack.c.b16 %v1739, %v1738
      %v1784 = vpack.c.b16 %v1741, %v1740
      %v1785 = vpack.c.b16 %v1743, %v1742
      %v1786 = vpack.c.b16 %v1745, %v1744
      %v1787 = vpack.c.b16 %v1747, %v1746
      %v1788 = vpack.c.b16 %v1749, %v1748
      %v1789 = vpack.c.b16 %v1751, %v1750
      %v1790 = vpack.c.b16 %v1753, %v1752
      %v1791 = vpack.c.b16 %v1755, %v1754
      %v1792 = vpack.c.b16 %v1757, %v1756
      %v1793 = vpack.c.b16 %v1759, %v1758
      %v1794 = vpack.c.b16 %v1761, %v1760
      %v1795 = vpack.c.b16 %v1763, %v1762
      %v1796 = vpack.c.b16 %v1765, %v1764
      %v1797 = vpack.c.b16 %v1767, %v1766
      %v1798 = vpack.c.b16 %v1769, %v1768
      %v1799 = vpack.c.b16 %v1771, %v1770
      %v1800 = vpack.c.b16 %v1773, %v1772
      %v1801 = vpack.c.b16 %v1775, %v1774
      %v1802 = vpack.c.b16 %v1777, %v1776
      %v1803 = vpack.c.b16 %v1779, %v1778
      %1828 = vmatprep.subr.bf16.mxu0 0
      %1829 = vmatpush1.bf16.msra.mxu0 %v1787
      %1830 = vmatprep.subr.bf16.mxu0 0
      %1831 = vmatpush1.bf16.msra.mxu0 %v1786
      %1832 = vmatprep.subr.bf16.mxu0 0
      %1833 = vmatpush1.bf16.msra.mxu0 %v1785
      %1834 = vmatprep.subr.bf16.mxu0 0
      %1835 = vmatpush1.bf16.msra.mxu0 %v1784
      %1836 = vmatprep.subr.bf16.mxu0 0
      %1837 = vmatpush1.bf16.msra.mxu0 %v1783
      %1838 = vmatprep.subr.bf16.mxu0 0
      %1839 = vmatpush1.bf16.msra.mxu0 %v1782
      %1840 = vmatprep.subr.bf16.mxu0 0
      %1841 = vmatpush1.bf16.msra.mxu0 %v1781
      %1842 = vmatprep.subr.bf16.mxu0 0
      %1843 = vmatpush1.bf16.msra.mxu0 %v1780
      %1844 = vmatprep.subr.bf16.mxu0 0
      %1845 = vmatpush2.bf16.msra.mxu0 %v1795
      %1846 = vmatprep.subr.bf16.mxu0 0
      %1847 = vmatpush2.bf16.msra.mxu0 %v1794
      %1848 = vmatprep.subr.bf16.mxu0 0
      %1849 = vmatpush2.bf16.msra.mxu0 %v1793
      %1850 = vmatprep.subr.bf16.mxu0 0
      %1851 = vmatpush2.bf16.msra.mxu0 %v1792
      %1852 = vmatprep.subr.bf16.mxu0 0
      %1853 = vmatpush2.bf16.msra.mxu0 %v1791
      %1854 = vmatprep.subr.bf16.mxu0 0
      %1855 = vmatpush2.bf16.msra.mxu0 %v1790
      %1856 = vmatprep.subr.bf16.mxu0 0
      %1857 = vmatpush2.bf16.msra.mxu0 %v1789
      %1858 = vmatprep.subr.bf16.mxu0 0
      %1859 = vmatpush2.bf16.msra.mxu0 %v1788
      %1860 = vmatprep.mubr.bf16.mxu0 %v381
      %1861 = vmatmul.mubr.bf16.gmra.mxu0 %v318
      %v1862 = vpop.f32.mrf.mxu0
      %v1863 = vadd.f32 %v1510, %v1862
      %v1864 = vpop.f32.mrf.mxu0
      %v1865 = vpop.f32.mrf.mxu0
      %v1866 = vadd.f32 %v1513, %v1865
      %v1867 = vpop.f32.mrf.mxu0
      %1868 = vmatprep.mubr.bf16.mxu0 %v389
      %1869 = vmatmul.mubr.bf16.gmra.mxu0 %v319
      %v1870 = vpop.f32.mrf.mxu0
      %v1871 = vpop.f32.mrf.mxu0
      %v1872 = vpop.f32.mrf.mxu0
      %v1873 = vadd.f32 %v1520, %v1872
      %v1874 = vpop.f32.mrf.mxu0
      %1875 = vmatprep.mubr.bf16.mxu0 %v397
      %1876 = vmatmul.mubr.bf16.gmra.mxu0 %v320
      %v1877 = vpop.f32.mrf.mxu0
      %v1878 = vadd.f32 %v1525, %v1877
      %v1879 = vpop.f32.mrf.mxu0
      %v1880 = vpop.f32.mrf.mxu0
      %v1881 = vpop.f32.mrf.mxu0
      %1882 = vmatprep.mubr.bf16.mxu0 %v405
      %1883 = vmatmul.mubr.bf16.gmra.mxu0 %v321
      %v1884 = vpop.f32.mrf.mxu0
      %v1885 = vadd.f32 %v1532, %v1884
      %v1886 = vpop.f32.mrf.mxu0
      %v1887 = vpop.f32.mrf.mxu0
      %v1888 = vadd.f32 %v1535, %v1887
      %v1889 = vpop.f32.mrf.mxu0
      %1890 = vmatprep.mubr.bf16.mxu0 %v413
      %1891 = vmatmul.mubr.bf16.gmra.mxu0 %v322
      %v1892 = vpop.f32.mrf.mxu0
      %v1893 = vpop.f32.mrf.mxu0
      %v1894 = vpop.f32.mrf.mxu0
      %v1895 = vadd.f32 %v1542, %v1894
      %v1896 = vpop.f32.mrf.mxu0
      %1897 = vmatprep.mubr.bf16.mxu0 %v421
      %1898 = vmatmul.mubr.bf16.gmra.mxu0 %v323
      %v1899 = vpop.f32.mrf.mxu0
      %v1900 = vadd.f32 %v1547, %v1899
      %v1901 = vpop.f32.mrf.mxu0
      %v1902 = vpop.f32.mrf.mxu0
      %v1903 = vpop.f32.mrf.mxu0
      %1904 = vmatprep.mubr.bf16.mxu0 %v429
      %1905 = vmatmul.mubr.bf16.gmra.mxu0 %v324
      %v1906 = vpop.f32.mrf.mxu0
      %v1907 = vadd.f32 %v1554, %v1906
      %v1908 = vpop.f32.mrf.mxu0
      %v1909 = vpop.f32.mrf.mxu0
      %v1910 = vadd.f32 %v1557, %v1909
      %v1911 = vpop.f32.mrf.mxu0
      %1912 = vmatprep.mubr.bf16.mxu0 %v437
      %1913 = vmatmul.mubr.bf16.gmra.mxu0 %v325
      %v1914 = vpop.f32.mrf.mxu0
      %v1915 = vpop.f32.mrf.mxu0
      %v1916 = vpop.f32.mrf.mxu0
      %v1917 = vadd.f32 %v1564, %v1916
      %v1918 = vpop.f32.mrf.mxu0
      %1919 = vmatprep.mubr.bf16.mxu0 %v445
      %1920 = vmatmul.mubr.bf16.gmra.mxu0 %v326
      %v1921 = vpop.f32.mrf.mxu0
      %v1922 = vadd.f32 %v1569, %v1921
      %v1923 = vpop.f32.mrf.mxu0
      %v1924 = vpop.f32.mrf.mxu0
      %v1925 = vpop.f32.mrf.mxu0
      %1926 = vmatprep.mubr.bf16.mxu0 %v453
      %1927 = vmatmul.mubr.bf16.gmra.mxu0 %v327
      %v1928 = vpop.f32.mrf.mxu0
      %v1929 = vadd.f32 %v1576, %v1928
      %v1930 = vpop.f32.mrf.mxu0
      %v1931 = vpop.f32.mrf.mxu0
      %v1932 = vadd.f32 %v1579, %v1931
      %v1933 = vpop.f32.mrf.mxu0
      %1934 = vmatprep.mubr.bf16.mxu0 %v461
      %1935 = vmatmul.mubr.bf16.gmra.mxu0 %v328
      %v1936 = vpop.f32.mrf.mxu0
      %v1937 = vpop.f32.mrf.mxu0
      %v1938 = vpop.f32.mrf.mxu0
      %v1939 = vadd.f32 %v1586, %v1938
      %v1940 = vpop.f32.mrf.mxu0
      %1941 = vmatprep.mubr.bf16.mxu0 %v469
      %1942 = vmatmul.mubr.bf16.gmra.mxu0 %v329
      %v1943 = vpop.f32.mrf.mxu0
      %v1944 = vadd.f32 %v1591, %v1943
      %v1945 = vpop.f32.mrf.mxu0
      %v1946 = vpop.f32.mrf.mxu0
      %v1947 = vpop.f32.mrf.mxu0
      %1948 = vmatprep.mubr.bf16.mxu0 %v477
      %1949 = vmatmul.mubr.bf16.gmra.mxu0 %v330
      %v1950 = vpop.f32.mrf.mxu0
      %v1951 = vadd.f32 %v1598, %v1950
      %v1952 = vpop.f32.mrf.mxu0
      %v1953 = vpop.f32.mrf.mxu0
      %v1954 = vadd.f32 %v1601, %v1953
      %v1955 = vpop.f32.mrf.mxu0
      %1956 = vmatprep.mubr.bf16.mxu0 %v485
      %1957 = vmatmul.mubr.bf16.gmra.mxu0 %v331
      %v1958 = vpop.f32.mrf.mxu0
      %v1959 = vpop.f32.mrf.mxu0
      %v1960 = vpop.f32.mrf.mxu0
      %v1961 = vadd.f32 %v1608, %v1960
      %v1962 = vpop.f32.mrf.mxu0
      %1963 = vmatprep.mubr.bf16.mxu0 %v493
      %1964 = vmatmul.mubr.bf16.gmra.mxu0 %v332
      %v1965 = vpop.f32.mrf.mxu0
      %v1966 = vadd.f32 %v1613, %v1965
      %v1967 = vpop.f32.mrf.mxu0
      %v1968 = vpop.f32.mrf.mxu0
      %v1969 = vpop.f32.mrf.mxu0
      %1970 = vmatprep.mubr.bf16.mxu0 %v501
      %1971 = vmatmul.mubr.bf16.gmra.mxu0 %v333
      %v1972 = vpop.f32.mrf.mxu0
      %v1973 = vadd.f32 %v1620, %v1972
      %v1974 = vpop.f32.mrf.mxu0
      %v1975 = vpop.f32.mrf.mxu0
      %v1976 = vadd.f32 %v1623, %v1975
      %v1977 = vpop.f32.mrf.mxu0
      %1978 = vmatprep.mubr.bf16.mxu0 %v509
      %1979 = vmatmul.mubr.bf16.gmra.mxu0 %v334
      %v1980 = vpop.f32.mrf.mxu0
      %v1981 = vpop.f32.mrf.mxu0
      %v1982 = vpop.f32.mrf.mxu0
      %v1983 = vadd.f32 %v1630, %v1982
      %v1984 = vpop.f32.mrf.mxu0
      %1985 = vmatprep.mubr.bf16.mxu0 %v517
      %1986 = vmatmul.mubr.bf16.gmra.mxu0 %v335
      %v1987 = vpop.f32.mrf.mxu0
      %v1988 = vadd.f32 %v1635, %v1987
      %v1989 = vpop.f32.mrf.mxu0
      %v1990 = vpop.f32.mrf.mxu0
      %v1991 = vpop.f32.mrf.mxu0
      %1992 = vmatprep.mubr.bf16.mxu0 %v525
      %1993 = vmatmul.mubr.bf16.gmra.mxu0 %v336
      %v1994 = vpop.f32.mrf.mxu0
      %v1995 = vadd.f32 %v1642, %v1994
      %v1996 = vpop.f32.mrf.mxu0
      %v1997 = vpop.f32.mrf.mxu0
      %v1998 = vadd.f32 %v1645, %v1997
      %v1999 = vpop.f32.mrf.mxu0
      %2000 = vmatprep.mubr.bf16.mxu0 %v533
      %2001 = vmatmul.mubr.bf16.gmra.mxu0 %v337
      %v2002 = vpop.f32.mrf.mxu0
      %v2003 = vpop.f32.mrf.mxu0
      %v2004 = vpop.f32.mrf.mxu0
      %v2005 = vadd.f32 %v1652, %v2004
      %v2006 = vpop.f32.mrf.mxu0
      %2007 = vmatprep.mubr.bf16.mxu0 %v541
      %2008 = vmatmul.mubr.bf16.gmra.mxu0 %v338
      %v2009 = vpop.f32.mrf.mxu0
      %v2010 = vadd.f32 %v1657, %v2009
      %v2011 = vpop.f32.mrf.mxu0
      %v2012 = vpop.f32.mrf.mxu0
      %v2013 = vpop.f32.mrf.mxu0
      %2014 = vmatprep.mubr.bf16.mxu0 %v549
      %2015 = vmatmul.mubr.bf16.gmra.mxu0 %v339
      %v2016 = vpop.f32.mrf.mxu0
      %v2017 = vadd.f32 %v1664, %v2016
      %v2018 = vpop.f32.mrf.mxu0
      %v2019 = vpop.f32.mrf.mxu0
      %v2020 = vadd.f32 %v1667, %v2019
      %v2021 = vpop.f32.mrf.mxu0
      %2022 = vmatprep.mubr.bf16.mxu0 %v557
      %2023 = vmatmul.mubr.bf16.gmra.mxu0 %v340
      %v2024 = vpop.f32.mrf.mxu0
      %v2025 = vpop.f32.mrf.mxu0
      %v2026 = vpop.f32.mrf.mxu0
      %v2027 = vadd.f32 %v1674, %v2026
      %v2028 = vpop.f32.mrf.mxu0
      %2029 = vmatprep.mubr.bf16.mxu0 %v565
      %2030 = vmatmul.mubr.bf16.gmra.mxu0 %v341
      %v2031 = vpop.f32.mrf.mxu0
      %v2032 = vadd.f32 %v1679, %v2031
      %v2033 = vpop.f32.mrf.mxu0
      %v2034 = vpop.f32.mrf.mxu0
      %v2035 = vpop.f32.mrf.mxu0
      %2036 = vdwg.mxu0
      %2037 = vmatprep.subr.bf16.mxu0 0
      %2038 = vmatpush1.bf16.msra.mxu0 %v1803
      %2039 = vmatprep.subr.bf16.mxu0 0
      %2040 = vmatpush1.bf16.msra.mxu0 %v1802
      %2041 = vmatprep.subr.bf16.mxu0 0
      %2042 = vmatpush1.bf16.msra.mxu0 %v1801
      %2043 = vmatprep.subr.bf16.mxu0 0
      %2044 = vmatpush1.bf16.msra.mxu0 %v1800
      %2045 = vmatprep.subr.bf16.mxu0 0
      %2046 = vmatpush1.bf16.msra.mxu0 %v1799
      %2047 = vmatprep.subr.bf16.mxu0 0
      %2048 = vmatpush1.bf16.msra.mxu0 %v1798
      %2049 = vmatprep.subr.bf16.mxu0 0
      %2050 = vmatpush1.bf16.msra.mxu0 %v1797
      %2051 = vmatprep.subr.bf16.mxu0 0
      %2052 = vmatpush1.bf16.msra.mxu0 %v1796
      %2053 = vmatprep.subr.bf16.mxu0 0
      %2054 = vmatpush2.bf16.msra.mxu0 0
      %2055 = vmatprep.subr.bf16.mxu0 0
      %2056 = vmatpush2.bf16.msra.mxu0 0
      %2057 = vmatprep.subr.bf16.mxu0 0
      %2058 = vmatpush2.bf16.msra.mxu0 0
      %2059 = vmatprep.subr.bf16.mxu0 0
      %2060 = vmatpush2.bf16.msra.mxu0 0
      %2061 = vmatprep.subr.bf16.mxu0 0
      %2062 = vmatpush2.bf16.msra.mxu0 0
      %2063 = vmatprep.subr.bf16.mxu0 0
      %2064 = vmatpush2.bf16.msra.mxu0 0
      %2065 = vmatprep.subr.bf16.mxu0 0
      %2066 = vmatpush2.bf16.msra.mxu0 0
      %2067 = vmatprep.subr.bf16.mxu0 0
      %2068 = vmatpush2.bf16.msra.mxu0 0
      %2069 = vmatprep.mubr.bf16.mxu0 0
      %2070 = vmatmul.mubr.bf16.gmra.mxu0 %v596
      %v2071 = vpop.f32.mrf.mxu0
      %v2072 = vadd.f32 %v1863, %v2071
      %v2073 = vpop.f32.mrf.mxu0
      %v2074 = vpop.f32.mrf.mxu0
      %v2075 = vadd.f32 %v1866, %v2074
      %v2076 = vpop.f32.mrf.mxu0
      %2077 = vmatprep.mubr.bf16.mxu0 0
      %2078 = vmatmul.mubr.bf16.gmra.mxu0 %v598
      %v2079 = vpop.f32.mrf.mxu0
      %v2080 = vpop.f32.mrf.mxu0
      %v2081 = vpop.f32.mrf.mxu0
      %v2082 = vadd.f32 %v1873, %v2081
      %v2083 = vpop.f32.mrf.mxu0
      %2084 = vmatprep.mubr.bf16.mxu0 0
      %2085 = vmatmul.mubr.bf16.gmra.mxu0 %v600
      %v2086 = vpop.f32.mrf.mxu0
      %v2087 = vadd.f32 %v1878, %v2086
      %v2088 = vpop.f32.mrf.mxu0
      %v2089 = vpop.f32.mrf.mxu0
      %v2090 = vpop.f32.mrf.mxu0
      %2091 = vmatprep.mubr.bf16.mxu0 0
      %2092 = vmatmul.mubr.bf16.gmra.mxu0 %v602
      %v2093 = vpop.f32.mrf.mxu0
      %v2094 = vadd.f32 %v1885, %v2093
      %v2095 = vpop.f32.mrf.mxu0
      %v2096 = vpop.f32.mrf.mxu0
      %v2097 = vadd.f32 %v1888, %v2096
      %v2098 = vpop.f32.mrf.mxu0
      %2099 = vmatprep.mubr.bf16.mxu0 0
      %2100 = vmatmul.mubr.bf16.gmra.mxu0 %v604
      %v2101 = vpop.f32.mrf.mxu0
      %v2102 = vpop.f32.mrf.mxu0
      %v2103 = vpop.f32.mrf.mxu0
      %v2104 = vadd.f32 %v1895, %v2103
      %v2105 = vpop.f32.mrf.mxu0
      %2106 = vmatprep.mubr.bf16.mxu0 0
      %2107 = vmatmul.mubr.bf16.gmra.mxu0 %v606
      %v2108 = vpop.f32.mrf.mxu0
      %v2109 = vadd.f32 %v1900, %v2108
      %v2110 = vpop.f32.mrf.mxu0
      %v2111 = vpop.f32.mrf.mxu0
      %v2112 = vpop.f32.mrf.mxu0
      %2113 = vmatprep.mubr.bf16.mxu0 0
      %2114 = vmatmul.mubr.bf16.gmra.mxu0 %v608
      %v2115 = vpop.f32.mrf.mxu0
      %v2116 = vadd.f32 %v1907, %v2115
      %v2117 = vpop.f32.mrf.mxu0
      %v2118 = vpop.f32.mrf.mxu0
      %v2119 = vadd.f32 %v1910, %v2118
      %v2120 = vpop.f32.mrf.mxu0
      %2121 = vmatprep.mubr.bf16.mxu0 0
      %2122 = vmatmul.mubr.bf16.gmra.mxu0 %v610
      %v2123 = vpop.f32.mrf.mxu0
      %v2124 = vpop.f32.mrf.mxu0
      %v2125 = vpop.f32.mrf.mxu0
      %v2126 = vadd.f32 %v1917, %v2125
      %v2127 = vpop.f32.mrf.mxu0
      %2128 = vmatprep.mubr.bf16.mxu0 0
      %2129 = vmatmul.mubr.bf16.gmra.mxu0 %v612
      %v2130 = vpop.f32.mrf.mxu0
      %v2131 = vadd.f32 %v1922, %v2130
      %v2132 = vpop.f32.mrf.mxu0
      %v2133 = vpop.f32.mrf.mxu0
      %v2134 = vpop.f32.mrf.mxu0
      %2135 = vmatprep.mubr.bf16.mxu0 0
      %2136 = vmatmul.mubr.bf16.gmra.mxu0 %v614
      %v2137 = vpop.f32.mrf.mxu0
      %v2138 = vadd.f32 %v1929, %v2137
      %v2139 = vpop.f32.mrf.mxu0
      %v2140 = vpop.f32.mrf.mxu0
      %v2141 = vadd.f32 %v1932, %v2140
      %v2142 = vpop.f32.mrf.mxu0
      %2143 = vmatprep.mubr.bf16.mxu0 0
      %2144 = vmatmul.mubr.bf16.gmra.mxu0 %v616
      %v2145 = vpop.f32.mrf.mxu0
      %v2146 = vpop.f32.mrf.mxu0
      %v2147 = vpop.f32.mrf.mxu0
      %v2148 = vadd.f32 %v1939, %v2147
      %v2149 = vpop.f32.mrf.mxu0
      %2150 = vmatprep.mubr.bf16.mxu0 0
      %2151 = vmatmul.mubr.bf16.gmra.mxu0 %v618
      %v2152 = vpop.f32.mrf.mxu0
      %v2153 = vadd.f32 %v1944, %v2152
      %v2154 = vpop.f32.mrf.mxu0
      %v2155 = vpop.f32.mrf.mxu0
      %v2156 = vpop.f32.mrf.mxu0
      %2157 = vmatprep.mubr.bf16.mxu0 0
      %2158 = vmatmul.mubr.bf16.gmra.mxu0 %v620
      %v2159 = vpop.f32.mrf.mxu0
      %v2160 = vadd.f32 %v1951, %v2159
      %v2161 = vpop.f32.mrf.mxu0
      %v2162 = vpop.f32.mrf.mxu0
      %v2163 = vadd.f32 %v1954, %v2162
      %v2164 = vpop.f32.mrf.mxu0
      %2165 = vmatprep.mubr.bf16.mxu0 0
      %2166 = vmatmul.mubr.bf16.gmra.mxu0 %v622
      %v2167 = vpop.f32.mrf.mxu0
      %v2168 = vpop.f32.mrf.mxu0
      %v2169 = vpop.f32.mrf.mxu0
      %v2170 = vadd.f32 %v1961, %v2169
      %v2171 = vpop.f32.mrf.mxu0
      %2172 = vmatprep.mubr.bf16.mxu0 0
      %2173 = vmatmul.mubr.bf16.gmra.mxu0 %v624
      %v2174 = vpop.f32.mrf.mxu0
      %v2175 = vadd.f32 %v1966, %v2174
      %v2176 = vpop.f32.mrf.mxu0
      %v2177 = vpop.f32.mrf.mxu0
      %v2178 = vpop.f32.mrf.mxu0
      %2179 = vmatprep.mubr.bf16.mxu0 0
      %2180 = vmatmul.mubr.bf16.gmra.mxu0 %v626
      %v2181 = vpop.f32.mrf.mxu0
      %v2182 = vadd.f32 %v1973, %v2181
      %v2183 = vpop.f32.mrf.mxu0
      %v2184 = vpop.f32.mrf.mxu0
      %v2185 = vadd.f32 %v1976, %v2184
      %v2186 = vpop.f32.mrf.mxu0
      %2187 = vmatprep.mubr.bf16.mxu0 0
      %2188 = vmatmul.mubr.bf16.gmra.mxu0 %v628
      %v2189 = vpop.f32.mrf.mxu0
      %v2190 = vpop.f32.mrf.mxu0
      %v2191 = vpop.f32.mrf.mxu0
      %v2192 = vadd.f32 %v1983, %v2191
      %v2193 = vpop.f32.mrf.mxu0
      %2194 = vmatprep.mubr.bf16.mxu0 0
      %2195 = vmatmul.mubr.bf16.gmra.mxu0 %v630
      %v2196 = vpop.f32.mrf.mxu0
      %v2197 = vadd.f32 %v1988, %v2196
      %v2198 = vpop.f32.mrf.mxu0
      %v2199 = vpop.f32.mrf.mxu0
      %v2200 = vpop.f32.mrf.mxu0
      %2201 = vmatprep.mubr.bf16.mxu0 0
      %2202 = vmatmul.mubr.bf16.gmra.mxu0 %v632
      %v2203 = vpop.f32.mrf.mxu0
      %v2204 = vadd.f32 %v1995, %v2203
      %v2205 = vpop.f32.mrf.mxu0
      %v2206 = vpop.f32.mrf.mxu0
      %v2207 = vadd.f32 %v1998, %v2206
      %v2208 = vpop.f32.mrf.mxu0
      %2209 = vmatprep.mubr.bf16.mxu0 0
      %2210 = vmatmul.mubr.bf16.gmra.mxu0 %v634
      %v2211 = vpop.f32.mrf.mxu0
      %v2212 = vpop.f32.mrf.mxu0
      %v2213 = vpop.f32.mrf.mxu0
      %v2214 = vadd.f32 %v2005, %v2213
      %v2215 = vpop.f32.mrf.mxu0
      %2216 = vmatprep.mubr.bf16.mxu0 0
      %2217 = vmatmul.mubr.bf16.gmra.mxu0 %v636
      %v2218 = vpop.f32.mrf.mxu0
      %v2219 = vadd.f32 %v2010, %v2218
      %v2220 = vpop.f32.mrf.mxu0
      %v2221 = vpop.f32.mrf.mxu0
      %v2222 = vpop.f32.mrf.mxu0
      %2223 = vmatprep.mubr.bf16.mxu0 0
      %2224 = vmatmul.mubr.bf16.gmra.mxu0 %v638
      %v2225 = vpop.f32.mrf.mxu0
      %v2226 = vadd.f32 %v2017, %v2225
      %v2227 = vpop.f32.mrf.mxu0
      %v2228 = vpop.f32.mrf.mxu0
      %v2229 = vadd.f32 %v2020, %v2228
      %v2230 = vpop.f32.mrf.mxu0
      %2231 = vmatprep.mubr.bf16.mxu0 0
      %2232 = vmatmul.mubr.bf16.gmra.mxu0 %v640
      %v2233 = vpop.f32.mrf.mxu0
      %v2234 = vpop.f32.mrf.mxu0
      %v2235 = vpop.f32.mrf.mxu0
      %v2236 = vadd.f32 %v2027, %v2235
      %v2237 = vpop.f32.mrf.mxu0
      %2238 = vmatprep.mubr.bf16.mxu0 0
      %2239 = vmatmul.mubr.bf16.gmra.mxu0 %v642
      %v2240 = vpop.f32.mrf.mxu0
      %v2241 = vadd.f32 %v2032, %v2240
      %v2242 = vpop.f32.mrf.mxu0
      %v2243 = vpop.f32.mrf.mxu0
      %v2244 = vpop.f32.mrf.mxu0
      %2245 = vdwg.mxu0
      %v2246 = vld [vmem:[%s165 + $0x18] sm:$0xf]
      %v2247 = vld [vmem:[%s165 + $0x1c] sm:$0xf]
      %v2248 = vld [vmem:[%s165 + $0x20] sm:$0xf]
      %v2249 = vld [vmem:[%s165 + $0x24] sm:$0xf]
      %v2250 = vld [vmem:[%s165 + $0x28] sm:$0xf]
      %v2251 = vld [vmem:[%s165 + $0x2c] sm:$0xf]
      %v2252 = vld [vmem:[%s165 + $0x30] sm:$0xf]
      %v2253 = vld [vmem:[%s165 + $0x34] sm:$0xf]
      %v2254 = vld [vmem:[%s165 + $0x38] sm:$0xf]
      %v2255 = vld [vmem:[%s165 + $0x3c] sm:$0xf]
      %v2256 = vld [vmem:[%s165 + $0x40] sm:$0xf]
      %v2257 = vld [vmem:[%s165 + $0x44] sm:$0xf]
      %v2258 = vld [vmem:[%s165 + $0x48] sm:$0xf]
      %v2259 = vld [vmem:[%s165 + $0x4c] sm:$0xf]
      %v2260 = vld [vmem:[%s165 + $0x50] sm:$0xf]
      %v2261 = vld [vmem:[%s165 + $0x54] sm:$0xf]
      %v2262 = vld [vmem:[%s165 + $0x58] sm:$0xf]
      %v2263 = vld [vmem:[%s165 + $0x5c] sm:$0xf]
      %v2264 = vld [vmem:[%s165 + $0x60] sm:$0xf]
      %v2265 = vld [vmem:[%s165 + $0x64] sm:$0xf]
      %v2266 = vld [vmem:[%s165 + $0x68] sm:$0xf]
      %v2267 = vld [vmem:[%s165 + $0x6c] sm:$0xf]
      %v2268 = vld [vmem:[%s165 + $0x70] sm:$0xf]
      %v2269 = vld [vmem:[%s165 + $0x74] sm:$0xf]
      %v2270 = vld [vmem:[%s165 + $0x78] sm:$0xf]
      %v2271 = vld [vmem:[%s165 + $0x7c] sm:$0xf]
      %v2272 = vld [vmem:[%s165 + $0x80] sm:$0xf]
      %v2273 = vld [vmem:[%s165 + $0x84] sm:$0xf]
      %v2274 = vld [vmem:[%s165 + $0x88] sm:$0xf]
      %v2275 = vld [vmem:[%s165 + $0x8c] sm:$0xf]
      %v2276 = vld [vmem:[%s165 + $0x90] sm:$0xf]
      %v2277 = vld [vmem:[%s165 + $0x94] sm:$0xf]
      %v2278 = vld [vmem:[%s165 + $0x98] sm:$0xf]
      %v2279 = vld [vmem:[%s165 + $0x9c] sm:$0xf]
      %v2280 = vld [vmem:[%s165 + $0xa0] sm:$0xf]
      %v2281 = vld [vmem:[%s165 + $0xa4] sm:$0xf]
      %v2282 = vld [vmem:[%s165 + $0xa8] sm:$0xf]
      %v2283 = vld [vmem:[%s165 + $0xac] sm:$0xf]
      %v2284 = vld [vmem:[%s165 + $0xb0] sm:$0xf]
      %v2285 = vld [vmem:[%s165 + $0xb4] sm:$0xf]
      %v2286 = vld [vmem:[%s165 + $0xb8] sm:$0xf]
      %v2287 = vld [vmem:[%s165 + $0xbc] sm:$0xf]
      %v2288 = vld [vmem:[%s165 + $0xc0] sm:$0xf]
      %v2289 = vld [vmem:[%s165 + $0xc4] sm:$0xf]
      %v2290 = vld [vmem:[%s165 + $0xc8] sm:$0xf]
      %v2291 = vld [vmem:[%s165 + $0xcc] sm:$0xf]
      %v2292 = vld [vmem:[%s165 + $0xd0] sm:$0xf]
      %v2293 = vld [vmem:[%s165 + $0xd4] sm:$0xf]
      %v2294 = vld [vmem:[%s165 + $0x18] sm:$0xf]
      %v2295 = vld [vmem:[%s165 + $0x1c] sm:$0xf]
      %v2296 = vld [vmem:[%s165 + $0x20] sm:$0xf]
      %v2297 = vld [vmem:[%s165 + $0x24] sm:$0xf]
      %v2298 = vld [vmem:[%s165 + $0x28] sm:$0xf]
      %v2299 = vld [vmem:[%s165 + $0x2c] sm:$0xf]
      %v2300 = vld [vmem:[%s165 + $0x30] sm:$0xf]
      %v2301 = vld [vmem:[%s165 + $0x34] sm:$0xf]
      %v2302 = vld [vmem:[%s165 + $0x38] sm:$0xf]
      %v2303 = vld [vmem:[%s165 + $0x3c] sm:$0xf]
      %v2304 = vld [vmem:[%s165 + $0x40] sm:$0xf]
      %v2305 = vld [vmem:[%s165 + $0x44] sm:$0xf]
      %v2306 = vld [vmem:[%s165 + $0x48] sm:$0xf]
      %v2307 = vld [vmem:[%s165 + $0x4c] sm:$0xf]
      %v2308 = vld [vmem:[%s165 + $0x50] sm:$0xf]
      %v2309 = vld [vmem:[%s165 + $0x54] sm:$0xf]
      %v2310 = vld [vmem:[%s165 + $0x58] sm:$0xf]
      %v2311 = vld [vmem:[%s165 + $0x5c] sm:$0xf]
      %v2312 = vld [vmem:[%s165 + $0x60] sm:$0xf]
      %v2313 = vld [vmem:[%s165 + $0x64] sm:$0xf]
      %v2314 = vld [vmem:[%s165 + $0x68] sm:$0xf]
      %v2315 = vld [vmem:[%s165 + $0x6c] sm:$0xf]
      %v2316 = vld [vmem:[%s165 + $0x70] sm:$0xf]
      %v2317 = vld [vmem:[%s165 + $0x74] sm:$0xf]
      %v2318 = vld [vmem:[%s165 + $0x78] sm:$0xf]
      %v2319 = vld [vmem:[%s165 + $0x7c] sm:$0xf]
      %v2320 = vld [vmem:[%s165 + $0x80] sm:$0xf]
      %v2321 = vld [vmem:[%s165 + $0x84] sm:$0xf]
      %v2322 = vld [vmem:[%s165 + $0x88] sm:$0xf]
      %v2323 = vld [vmem:[%s165 + $0x8c] sm:$0xf]
      %v2324 = vld [vmem:[%s165 + $0x90] sm:$0xf]
      %v2325 = vld [vmem:[%s165 + $0x94] sm:$0xf]
      %v2326 = vld [vmem:[%s165 + $0x98] sm:$0xf]
      %v2327 = vld [vmem:[%s165 + $0x9c] sm:$0xf]
      %v2328 = vld [vmem:[%s165 + $0xa0] sm:$0xf]
      %v2329 = vld [vmem:[%s165 + $0xa4] sm:$0xf]
      %v2330 = vld [vmem:[%s165 + $0xa8] sm:$0xf]
      %v2331 = vld [vmem:[%s165 + $0xac] sm:$0xf]
      %v2332 = vld [vmem:[%s165 + $0xb0] sm:$0xf]
      %v2333 = vld [vmem:[%s165 + $0xb4] sm:$0xf]
      %v2334 = vld [vmem:[%s165 + $0xb8] sm:$0xf]
      %v2335 = vld [vmem:[%s165 + $0xbc] sm:$0xf]
      %v2336 = vld [vmem:[%s165 + $0xc0] sm:$0xf]
      %v2337 = vld [vmem:[%s165 + $0xc4] sm:$0xf]
      %v2338 = vld [vmem:[%s165 + $0xc8] sm:$0xf]
      %v2339 = vld [vmem:[%s165 + $0xcc] sm:$0xf]
      %v2340 = vld [vmem:[%s165 + $0xd0] sm:$0xf]
      %v2341 = vld [vmem:[%s165 + $0xd4] sm:$0xf]
      %v2342 = vld [vmem:[%s165 + $0xd8] sm:$0x1]
      %v2343 = vld [vmem:[%s165 + $0x18] sm:$0xe]
      %v2392 = vunpack.c.l.b16 %v2246
      %v2393 = vunpack.c.l.b16 %v2247
      %v2394 = vunpack.c.l.b16 %v2248
      %v2395 = vunpack.c.l.b16 %v2249
      %v2396 = vunpack.c.l.b16 %v2250
      %v2397 = vunpack.c.l.b16 %v2251
      %v2398 = vunpack.c.l.b16 %v2252
      %v2399 = vunpack.c.l.b16 %v2253
      %v2400 = vunpack.c.l.b16 %v2254
      %v2401 = vunpack.c.l.b16 %v2255
      %v2402 = vunpack.c.l.b16 %v2256
      %v2403 = vunpack.c.l.b16 %v2257
      %v2404 = vunpack.c.l.b16 %v2258
      %v2405 = vunpack.c.l.b16 %v2259
      %v2406 = vunpack.c.l.b16 %v2260
      %v2407 = vunpack.c.l.b16 %v2261
      %v2408 = vunpack.c.l.b16 %v2262
      %v2409 = vunpack.c.l.b16 %v2263
      %v2410 = vunpack.c.l.b16 %v2264
      %v2411 = vunpack.c.l.b16 %v2265
      %v2412 = vunpack.c.l.b16 %v2266
      %v2413 = vunpack.c.l.b16 %v2267
      %v2414 = vunpack.c.l.b16 %v2268
      %v2415 = vunpack.c.l.b16 %v2269
      %v2416 = vunpack.c.l.b16 %v2270
      %v2417 = vunpack.c.l.b16 %v2271
      %v2418 = vunpack.c.l.b16 %v2272
      %v2419 = vunpack.c.l.b16 %v2273
      %v2420 = vunpack.c.l.b16 %v2274
      %v2421 = vunpack.c.l.b16 %v2275
      %v2422 = vunpack.c.l.b16 %v2276
      %v2423 = vunpack.c.l.b16 %v2277
      %v2424 = vunpack.c.l.b16 %v2278
      %v2425 = vunpack.c.l.b16 %v2279
      %v2426 = vunpack.c.l.b16 %v2280
      %v2427 = vunpack.c.l.b16 %v2281
      %v2428 = vunpack.c.l.b16 %v2282
      %v2429 = vunpack.c.l.b16 %v2283
      %v2430 = vunpack.c.l.b16 %v2284
      %v2431 = vunpack.c.l.b16 %v2285
      %v2432 = vunpack.c.l.b16 %v2286
      %v2433 = vunpack.c.l.b16 %v2287
      %v2434 = vunpack.c.l.b16 %v2288
      %v2435 = vunpack.c.l.b16 %v2289
      %v2436 = vunpack.c.l.b16 %v2290
      %v2437 = vunpack.c.l.b16 %v2291
      %v2438 = vunpack.c.l.b16 %v2292
      %v2439 = vunpack.c.l.b16 %v2293
      %v2440 = vpack.c.b16 %v2393, %v2392
      %v2441 = vpack.c.b16 %v2395, %v2394
      %v2442 = vpack.c.b16 %v2397, %v2396
      %v2443 = vpack.c.b16 %v2399, %v2398
      %v2444 = vpack.c.b16 %v2401, %v2400
      %v2445 = vpack.c.b16 %v2403, %v2402
      %v2446 = vpack.c.b16 %v2405, %v2404
      %v2447 = vpack.c.b16 %v2407, %v2406
      %v2448 = vpack.c.b16 %v2409, %v2408
      %v2449 = vpack.c.b16 %v2411, %v2410
      %v2450 = vpack.c.b16 %v2413, %v2412
      %v2451 = vpack.c.b16 %v2415, %v2414
      %v2452 = vpack.c.b16 %v2417, %v2416
      %v2453 = vpack.c.b16 %v2419, %v2418
      %v2454 = vpack.c.b16 %v2421, %v2420
      %v2455 = vpack.c.b16 %v2423, %v2422
      %v2456 = vpack.c.b16 %v2425, %v2424
      %v2457 = vpack.c.b16 %v2427, %v2426
      %v2458 = vpack.c.b16 %v2429, %v2428
      %v2459 = vpack.c.b16 %v2431, %v2430
      %v2460 = vpack.c.b16 %v2433, %v2432
      %v2461 = vpack.c.b16 %v2435, %v2434
      %v2462 = vpack.c.b16 %v2437, %v2436
      %v2463 = vpack.c.b16 %v2439, %v2438
      %v2537 = vunpack.c.l.b16 %v2294
      %v2538 = vunpack.c.l.b16 %v2295
      %v2539 = vunpack.c.l.b16 %v2296
      %v2540 = vunpack.c.l.b16 %v2297
      %v2541 = vunpack.c.l.b16 %v2298
      %v2542 = vunpack.c.l.b16 %v2299
      %v2543 = vunpack.c.l.b16 %v2300
      %v2544 = vunpack.c.l.b16 %v2301
      %v2545 = vunpack.c.l.b16 %v2302
      %v2546 = vunpack.c.l.b16 %v2303
      %v2547 = vunpack.c.l.b16 %v2304
      %v2548 = vunpack.c.l.b16 %v2305
      %v2549 = vunpack.c.l.b16 %v2306
      %v2550 = vunpack.c.l.b16 %v2307
      %v2551 = vunpack.c.l.b16 %v2308
      %v2552 = vunpack.c.l.b16 %v2309
      %v2553 = vunpack.c.l.b16 %v2310
      %v2554 = vunpack.c.l.b16 %v2311
      %v2555 = vunpack.c.l.b16 %v2312
      %v2556 = vunpack.c.l.b16 %v2313
      %v2557 = vunpack.c.l.b16 %v2314
      %v2558 = vunpack.c.l.b16 %v2315
      %v2559 = vunpack.c.l.b16 %v2316
      %v2560 = vunpack.c.l.b16 %v2317
      %v2561 = vunpack.c.l.b16 %v2318
      %v2562 = vunpack.c.l.b16 %v2319
      %v2563 = vunpack.c.l.b16 %v2320
      %v2564 = vunpack.c.l.b16 %v2321
      %v2565 = vunpack.c.l.b16 %v2322
      %v2566 = vunpack.c.l.b16 %v2323
      %v2567 = vunpack.c.l.b16 %v2324
      %v2568 = vunpack.c.l.b16 %v2325
      %v2569 = vunpack.c.l.b16 %v2326
      %v2570 = vunpack.c.l.b16 %v2327
      %v2571 = vunpack.c.l.b16 %v2328
      %v2572 = vunpack.c.l.b16 %v2329
      %v2573 = vunpack.c.l.b16 %v2330
      %v2574 = vunpack.c.l.b16 %v2331
      %v2575 = vunpack.c.l.b16 %v2332
      %v2576 = vunpack.c.l.b16 %v2333
      %v2577 = vunpack.c.l.b16 %v2334
      %v2578 = vunpack.c.l.b16 %v2335
      %v2579 = vunpack.c.l.b16 %v2336
      %v2580 = vunpack.c.l.b16 %v2337
      %v2581 = vunpack.c.l.b16 %v2338
      %v2582 = vunpack.c.l.b16 %v2339
      %v2583 = vunpack.c.l.b16 %v2340
      %v2584 = vunpack.c.l.b16 %v2341
      %v2585 = vunpack.c.l.b16 %v2342
      %v2586 = vpack.c.b16 %v2538, %v2537
      %v2587 = vpack.c.b16 %v2540, %v2539
      %v2588 = vpack.c.b16 %v2542, %v2541
      %v2589 = vpack.c.b16 %v2544, %v2543
      %v2590 = vpack.c.b16 %v2546, %v2545
      %v2591 = vpack.c.b16 %v2548, %v2547
      %v2592 = vpack.c.b16 %v2550, %v2549
      %v2593 = vpack.c.b16 %v2552, %v2551
      %v2594 = vpack.c.b16 %v2554, %v2553
      %v2595 = vpack.c.b16 %v2556, %v2555
      %v2596 = vpack.c.b16 %v2558, %v2557
      %v2597 = vpack.c.b16 %v2560, %v2559
      %v2598 = vpack.c.b16 %v2562, %v2561
      %v2599 = vpack.c.b16 %v2564, %v2563
      %v2600 = vpack.c.b16 %v2566, %v2565
      %v2601 = vpack.c.b16 %v2568, %v2567
      %v2602 = vpack.c.b16 %v2570, %v2569
      %v2603 = vpack.c.b16 %v2572, %v2571
      %v2604 = vpack.c.b16 %v2574, %v2573
      %v2605 = vpack.c.b16 %v2576, %v2575
      %v2606 = vpack.c.b16 %v2578, %v2577
      %v2607 = vpack.c.b16 %v2580, %v2579
      %v2608 = vpack.c.b16 %v2582, %v2581
      %v2609 = vpack.c.b16 %v2584, %v2583
      %v2610 = vpack.c.b16 %v2585, %v2585
      %v2612 = vshrl.u32 %v2586, 16
      %v2614 = vshll.u32 %v2586, 16
      %v2616 = vrot.slane %v2614, 1
      %v2617 = vor.u32 %v2612, %v2616
      %v2619 = vshll.u32 %v2587, 16
      %v2621 = vrot.slane %v2619, 1
      %v2622 = vsel %vm369, %v2617, %v2621
      %v2623 = vshrl.u32 %v2587, 16
      %v2625 = vor.u32 %v2623, %v2621
      %v2627 = vshll.u32 %v2588, 16
      %v2629 = vrot.slane %v2627, 1
      %v2630 = vsel %vm369, %v2625, %v2629
      %v2631 = vshrl.u32 %v2588, 16
      %v2633 = vor.u32 %v2631, %v2629
      %v2635 = vshll.u32 %v2589, 16
      %v2637 = vrot.slane %v2635, 1
      %v2638 = vsel %vm369, %v2633, %v2637
      %v2639 = vshrl.u32 %v2589, 16
      %v2641 = vor.u32 %v2639, %v2637
      %v2643 = vshll.u32 %v2590, 16
      %v2645 = vrot.slane %v2643, 1
      %v2646 = vsel %vm369, %v2641, %v2645
      %v2647 = vshrl.u32 %v2590, 16
      %v2649 = vor.u32 %v2647, %v2645
      %v2651 = vshll.u32 %v2591, 16
      %v2653 = vrot.slane %v2651, 1
      %v2654 = vsel %vm369, %v2649, %v2653
      %v2655 = vshrl.u32 %v2591, 16
      %v2657 = vor.u32 %v2655, %v2653
      %v2659 = vshll.u32 %v2592, 16
      %v2661 = vrot.slane %v2659, 1
      %v2662 = vsel %vm369, %v2657, %v2661
      %v2663 = vshrl.u32 %v2592, 16
      %v2665 = vor.u32 %v2663, %v2661
      %v2667 = vshll.u32 %v2593, 16
      %v2669 = vrot.slane %v2667, 1
      %v2670 = vsel %vm369, %v2665, %v2669
      %v2671 = vshrl.u32 %v2593, 16
      %v2673 = vor.u32 %v2671, %v2669
      %v2675 = vshll.u32 %v2594, 16
      %v2677 = vrot.slane %v2675, 1
      %v2678 = vsel %vm369, %v2673, %v2677
      %v2679 = vshrl.u32 %v2594, 16
      %v2681 = vor.u32 %v2679, %v2677
      %v2683 = vshll.u32 %v2595, 16
      %v2685 = vrot.slane %v2683, 1
      %v2686 = vsel %vm369, %v2681, %v2685
      %v2687 = vshrl.u32 %v2595, 16
      %v2689 = vor.u32 %v2687, %v2685
      %v2691 = vshll.u32 %v2596, 16
      %v2693 = vrot.slane %v2691, 1
      %v2694 = vsel %vm369, %v2689, %v2693
      %v2695 = vshrl.u32 %v2596, 16
      %v2697 = vor.u32 %v2695, %v2693
      %v2699 = vshll.u32 %v2597, 16
      %v2701 = vrot.slane %v2699, 1
      %v2702 = vsel %vm369, %v2697, %v2701
      %v2703 = vshrl.u32 %v2597, 16
      %v2705 = vor.u32 %v2703, %v2701
      %v2707 = vshll.u32 %v2598, 16
      %v2709 = vrot.slane %v2707, 1
      %v2710 = vsel %vm369, %v2705, %v2709
      %v2711 = vshrl.u32 %v2598, 16
      %v2713 = vor.u32 %v2711, %v2709
      %v2715 = vshll.u32 %v2599, 16
      %v2717 = vrot.slane %v2715, 1
      %v2718 = vsel %vm369, %v2713, %v2717
      %v2719 = vshrl.u32 %v2599, 16
      %v2721 = vor.u32 %v2719, %v2717
      %v2723 = vshll.u32 %v2600, 16
      %v2725 = vrot.slane %v2723, 1
      %v2726 = vsel %vm369, %v2721, %v2725
      %v2727 = vshrl.u32 %v2600, 16
      %v2729 = vor.u32 %v2727, %v2725
      %v2731 = vshll.u32 %v2601, 16
      %v2733 = vrot.slane %v2731, 1
      %v2734 = vsel %vm369, %v2729, %v2733
      %v2735 = vshrl.u32 %v2601, 16
      %v2737 = vor.u32 %v2735, %v2733
      %v2739 = vshll.u32 %v2602, 16
      %v2741 = vrot.slane %v2739, 1
      %v2742 = vsel %vm369, %v2737, %v2741
      %v2743 = vshrl.u32 %v2602, 16
      %v2745 = vor.u32 %v2743, %v2741
      %v2747 = vshll.u32 %v2603, 16
      %v2749 = vrot.slane %v2747, 1
      %v2750 = vsel %vm369, %v2745, %v2749
      %v2751 = vshrl.u32 %v2603, 16
      %v2753 = vor.u32 %v2751, %v2749
      %v2755 = vshll.u32 %v2604, 16
      %v2757 = vrot.slane %v2755, 1
      %v2758 = vsel %vm369, %v2753, %v2757
      %v2759 = vshrl.u32 %v2604, 16
      %v2761 = vor.u32 %v2759, %v2757
      %v2763 = vshll.u32 %v2605, 16
      %v2765 = vrot.slane %v2763, 1
      %v2766 = vsel %vm369, %v2761, %v2765
      %v2767 = vshrl.u32 %v2605, 16
      %v2769 = vor.u32 %v2767, %v2765
      %v2771 = vshll.u32 %v2606, 16
      %v2773 = vrot.slane %v2771, 1
      %v2774 = vsel %vm369, %v2769, %v2773
      %v2775 = vshrl.u32 %v2606, 16
      %v2777 = vor.u32 %v2775, %v2773
      %v2779 = vshll.u32 %v2607, 16
      %v2781 = vrot.slane %v2779, 1
      %v2782 = vsel %vm369, %v2777, %v2781
      %v2783 = vshrl.u32 %v2607, 16
      %v2785 = vor.u32 %v2783, %v2781
      %v2787 = vshll.u32 %v2608, 16
      %v2789 = vrot.slane %v2787, 1
      %v2790 = vsel %vm369, %v2785, %v2789
      %v2791 = vshrl.u32 %v2608, 16
      %v2793 = vor.u32 %v2791, %v2789
      %v2795 = vshll.u32 %v2609, 16
      %v2797 = vrot.slane %v2795, 1
      %v2798 = vsel %vm369, %v2793, %v2797
      %v2799 = vshrl.u32 %v2609, 16
      %v2801 = vor.u32 %v2799, %v2797
      %v2803 = vshll.u32 %v2610, 16
      %v2805 = vrot.slane %v2803, 1
      %v2806 = vsel %vm369, %v2801, %v2805
      %v2832 = vunpack.c.l.b16 %v2343
      %v2833 = vpack.c.b16 %v2538, %v2832
      %v2834 = vrot.slane %v2833, 1
      %v2835 = vrot.slane %v2587, 1
      %v2836 = vsel %vm593, %v2834, %v2835
      %v2837 = vrot.slane %v2588, 1
      %v2838 = vsel %vm593, %v2835, %v2837
      %v2839 = vrot.slane %v2589, 1
      %v2840 = vsel %vm593, %v2837, %v2839
      %v2841 = vrot.slane %v2590, 1
      %v2842 = vsel %vm593, %v2839, %v2841
      %v2843 = vrot.slane %v2591, 1
      %v2844 = vsel %vm593, %v2841, %v2843
      %v2845 = vrot.slane %v2592, 1
      %v2846 = vsel %vm593, %v2843, %v2845
      %v2847 = vrot.slane %v2593, 1
      %v2848 = vsel %vm593, %v2845, %v2847
      %v2849 = vrot.slane %v2594, 1
      %v2850 = vsel %vm593, %v2847, %v2849
      %v2851 = vrot.slane %v2595, 1
      %v2852 = vsel %vm593, %v2849, %v2851
      %v2853 = vrot.slane %v2596, 1
      %v2854 = vsel %vm593, %v2851, %v2853
      %v2855 = vrot.slane %v2597, 1
      %v2856 = vsel %vm593, %v2853, %v2855
      %v2857 = vrot.slane %v2598, 1
      %v2858 = vsel %vm593, %v2855, %v2857
      %v2859 = vrot.slane %v2599, 1
      %v2860 = vsel %vm593, %v2857, %v2859
      %v2861 = vrot.slane %v2600, 1
      %v2862 = vsel %vm593, %v2859, %v2861
      %v2863 = vrot.slane %v2601, 1
      %v2864 = vsel %vm593, %v2861, %v2863
      %v2865 = vrot.slane %v2602, 1
      %v2866 = vsel %vm593, %v2863, %v2865
      %v2867 = vrot.slane %v2603, 1
      %v2868 = vsel %vm593, %v2865, %v2867
      %v2869 = vrot.slane %v2604, 1
      %v2870 = vsel %vm593, %v2867, %v2869
      %v2871 = vrot.slane %v2605, 1
      %v2872 = vsel %vm593, %v2869, %v2871
      %v2873 = vrot.slane %v2606, 1
      %v2874 = vsel %vm593, %v2871, %v2873
      %v2875 = vrot.slane %v2607, 1
      %v2876 = vsel %vm593, %v2873, %v2875
      %v2877 = vrot.slane %v2608, 1
      %v2878 = vsel %vm593, %v2875, %v2877
      %v2879 = vrot.slane %v2609, 1
      %v2880 = vsel %vm593, %v2877, %v2879
      %v2881 = vrot.slane %v2610, 1
      %v2882 = vsel %vm593, %v2879, %v2881
      %s2907 = scalar_lea.vmem %s1, 384
      %v2908 = vld [vmem:[%s2907] sm:$0xf]
      %v2909 = vld [vmem:[%s2907 + $0x4] sm:$0xf]
      %v2910 = vld [vmem:[%s2907 + $0x8] sm:$0xf]
      %v2911 = vld [vmem:[%s2907 + $0xc] sm:$0xf]
      %v2912 = vld [vmem:[%s2907 + $0x10] sm:$0xf]
      %v2913 = vld [vmem:[%s2907 + $0x14] sm:$0xf]
      %v2914 = vld [vmem:[%s2907 + $0x18] sm:$0xf]
      %v2915 = vld [vmem:[%s2907 + $0x1c] sm:$0xf]
      %v2916 = vld [vmem:[%s2907 + $0x20] sm:$0xf]
      %v2917 = vld [vmem:[%s2907 + $0x24] sm:$0xf]
      %v2918 = vld [vmem:[%s2907 + $0x28] sm:$0xf]
      %v2919 = vld [vmem:[%s2907 + $0x2c] sm:$0xf]
      %v2920 = vld [vmem:[%s2907 + $0x30] sm:$0xf]
      %v2921 = vld [vmem:[%s2907 + $0x34] sm:$0xf]
      %v2922 = vld [vmem:[%s2907 + $0x38] sm:$0xf]
      %v2923 = vld [vmem:[%s2907 + $0x3c] sm:$0xf]
      %v2924 = vld [vmem:[%s2907 + $0x40] sm:$0xf]
      %v2925 = vld [vmem:[%s2907 + $0x44] sm:$0xf]
      %v2926 = vld [vmem:[%s2907 + $0x48] sm:$0xf]
      %v2927 = vld [vmem:[%s2907 + $0x4c] sm:$0xf]
      %v2928 = vld [vmem:[%s2907 + $0x50] sm:$0xf]
      %v2929 = vld [vmem:[%s2907 + $0x54] sm:$0xf]
      %v2930 = vld [vmem:[%s2907 + $0x58] sm:$0xf]
      %v2931 = vld [vmem:[%s2907 + $0x5c] sm:$0xf]
      %v2932 = vld [vmem:[%s2907 + $0x60] sm:$0xf]
      %v2933 = vld [vmem:[%s2907 + $0x64] sm:$0xf]
      %v2934 = vld [vmem:[%s2907 + $0x68] sm:$0xf]
      %v2935 = vld [vmem:[%s2907 + $0x6c] sm:$0xf]
      %v2936 = vld [vmem:[%s2907 + $0x70] sm:$0xf]
      %v2937 = vld [vmem:[%s2907 + $0x74] sm:$0xf]
      %v2938 = vld [vmem:[%s2907 + $0x78] sm:$0xf]
      %v2939 = vld [vmem:[%s2907 + $0x7c] sm:$0xf]
      %v2940 = vld [vmem:[%s2907 + $0x80] sm:$0xf]
      %v2941 = vld [vmem:[%s2907 + $0x84] sm:$0xf]
      %v2942 = vld [vmem:[%s2907 + $0x88] sm:$0xf]
      %v2943 = vld [vmem:[%s2907 + $0x8c] sm:$0xf]
      %v2944 = vld [vmem:[%s2907 + $0x90] sm:$0xf]
      %v2945 = vld [vmem:[%s2907 + $0x94] sm:$0xf]
      %v2946 = vld [vmem:[%s2907 + $0x98] sm:$0xf]
      %v2947 = vld [vmem:[%s2907 + $0x9c] sm:$0xf]
      %v2948 = vld [vmem:[%s2907 + $0xa0] sm:$0xf]
      %v2949 = vld [vmem:[%s2907 + $0xa4] sm:$0xf]
      %v2950 = vld [vmem:[%s2907 + $0xa8] sm:$0xf]
      %v2951 = vld [vmem:[%s2907 + $0xac] sm:$0xf]
      %v2952 = vld [vmem:[%s2907 + $0xb0] sm:$0xf]
      %v2953 = vld [vmem:[%s2907 + $0xb4] sm:$0xf]
      %v2954 = vld [vmem:[%s2907 + $0xb8] sm:$0xf]
      %v2955 = vld [vmem:[%s2907 + $0xbc] sm:$0xf]
      %v3004 = vunpack.c.l.b16 %v2908
      %v3005 = vunpack.c.l.b16 %v2909
      %v3006 = vunpack.c.l.b16 %v2910
      %v3007 = vunpack.c.l.b16 %v2911
      %v3008 = vunpack.c.l.b16 %v2912
      %v3009 = vunpack.c.l.b16 %v2913
      %v3010 = vunpack.c.l.b16 %v2914
      %v3011 = vunpack.c.l.b16 %v2915
      %v3012 = vunpack.c.l.b16 %v2916
      %v3013 = vunpack.c.l.b16 %v2917
      %v3014 = vunpack.c.l.b16 %v2918
      %v3015 = vunpack.c.l.b16 %v2919
      %v3016 = vunpack.c.l.b16 %v2920
      %v3017 = vunpack.c.l.b16 %v2921
      %v3018 = vunpack.c.l.b16 %v2922
      %v3019 = vunpack.c.l.b16 %v2923
      %v3020 = vunpack.c.l.b16 %v2924
      %v3021 = vunpack.c.l.b16 %v2925
      %v3022 = vunpack.c.l.b16 %v2926
      %v3023 = vunpack.c.l.b16 %v2927
      %v3024 = vunpack.c.l.b16 %v2928
      %v3025 = vunpack.c.l.b16 %v2929
      %v3026 = vunpack.c.l.b16 %v2930
      %v3027 = vunpack.c.l.b16 %v2931
      %v3028 = vunpack.c.l.b16 %v2932
      %v3029 = vunpack.c.l.b16 %v2933
      %v3030 = vunpack.c.l.b16 %v2934
      %v3031 = vunpack.c.l.b16 %v2935
      %v3032 = vunpack.c.l.b16 %v2936
      %v3033 = vunpack.c.l.b16 %v2937
      %v3034 = vunpack.c.l.b16 %v2938
      %v3035 = vunpack.c.l.b16 %v2939
      %v3036 = vunpack.c.l.b16 %v2940
      %v3037 = vunpack.c.l.b16 %v2941
      %v3038 = vunpack.c.l.b16 %v2942
      %v3039 = vunpack.c.l.b16 %v2943
      %v3040 = vunpack.c.l.b16 %v2944
      %v3041 = vunpack.c.l.b16 %v2945
      %v3042 = vunpack.c.l.b16 %v2946
      %v3043 = vunpack.c.l.b16 %v2947
      %v3044 = vunpack.c.l.b16 %v2948
      %v3045 = vunpack.c.l.b16 %v2949
      %v3046 = vunpack.c.l.b16 %v2950
      %v3047 = vunpack.c.l.b16 %v2951
      %v3048 = vunpack.c.l.b16 %v2952
      %v3049 = vunpack.c.l.b16 %v2953
      %v3050 = vunpack.c.l.b16 %v2954
      %v3051 = vunpack.c.l.b16 %v2955
      %v3052 = vpack.c.b16 %v3005, %v3004
      %v3053 = vpack.c.b16 %v3007, %v3006
      %v3054 = vpack.c.b16 %v3009, %v3008
      %v3055 = vpack.c.b16 %v3011, %v3010
      %v3056 = vpack.c.b16 %v3013, %v3012
      %v3057 = vpack.c.b16 %v3015, %v3014
      %v3058 = vpack.c.b16 %v3017, %v3016
      %v3059 = vpack.c.b16 %v3019, %v3018
      %v3060 = vpack.c.b16 %v3021, %v3020
      %v3061 = vpack.c.b16 %v3023, %v3022
      %v3062 = vpack.c.b16 %v3025, %v3024
      %v3063 = vpack.c.b16 %v3027, %v3026
      %v3064 = vpack.c.b16 %v3029, %v3028
      %v3065 = vpack.c.b16 %v3031, %v3030
      %v3066 = vpack.c.b16 %v3033, %v3032
      %v3067 = vpack.c.b16 %v3035, %v3034
      %v3068 = vpack.c.b16 %v3037, %v3036
      %v3069 = vpack.c.b16 %v3039, %v3038
      %v3070 = vpack.c.b16 %v3041, %v3040
      %v3071 = vpack.c.b16 %v3043, %v3042
      %v3072 = vpack.c.b16 %v3045, %v3044
      %v3073 = vpack.c.b16 %v3047, %v3046
      %v3074 = vpack.c.b16 %v3049, %v3048
      %v3075 = vpack.c.b16 %v3051, %v3050
      %3100 = vmatprep.subr.bf16.mxu0 0
      %3101 = vmatpush1.bf16.msra.mxu0 %v3059
      %3102 = vmatprep.subr.bf16.mxu0 0
      %3103 = vmatpush1.bf16.msra.mxu0 %v3058
      %3104 = vmatprep.subr.bf16.mxu0 0
      %3105 = vmatpush1.bf16.msra.mxu0 %v3057
      %3106 = vmatprep.subr.bf16.mxu0 0
      %3107 = vmatpush1.bf16.msra.mxu0 %v3056
      %3108 = vmatprep.subr.bf16.mxu0 0
      %3109 = vmatpush1.bf16.msra.mxu0 %v3055
      %3110 = vmatprep.subr.bf16.mxu0 0
      %3111 = vmatpush1.bf16.msra.mxu0 %v3054
      %3112 = vmatprep.subr.bf16.mxu0 0
      %3113 = vmatpush1.bf16.msra.mxu0 %v3053
      %3114 = vmatprep.subr.bf16.mxu0 0
      %3115 = vmatpush1.bf16.msra.mxu0 %v3052
      %3116 = vmatprep.subr.bf16.mxu0 0
      %3117 = vmatpush2.bf16.msra.mxu0 %v3067
      %3118 = vmatprep.subr.bf16.mxu0 0
      %3119 = vmatpush2.bf16.msra.mxu0 %v3066
      %3120 = vmatprep.subr.bf16.mxu0 0
      %3121 = vmatpush2.bf16.msra.mxu0 %v3065
      %3122 = vmatprep.subr.bf16.mxu0 0
      %3123 = vmatpush2.bf16.msra.mxu0 %v3064
      %3124 = vmatprep.subr.bf16.mxu0 0
      %3125 = vmatpush2.bf16.msra.mxu0 %v3063
      %3126 = vmatprep.subr.bf16.mxu0 0
      %3127 = vmatpush2.bf16.msra.mxu0 %v3062
      %3128 = vmatprep.subr.bf16.mxu0 0
      %3129 = vmatpush2.bf16.msra.mxu0 %v3061
      %3130 = vmatprep.subr.bf16.mxu0 0
      %3131 = vmatpush2.bf16.msra.mxu0 %v3060
      %3132 = vmatprep.mubr.bf16.mxu0 %v2622
      %3133 = vmatmul.mubr.bf16.gmra.mxu0 %v2440
      %v3134 = vpop.f32.mrf.mxu0
      %v3135 = vadd.f32 0.0, %v3134
      %v3136 = vpop.f32.mrf.mxu0
      %v3137 = vpop.f32.mrf.mxu0
      %v3138 = vadd.f32 0.0, %v3137
      %v3139 = vpop.f32.mrf.mxu0
      %3140 = vmatprep.mubr.bf16.mxu0 %v2630
      %3141 = vmatmul.mubr.bf16.gmra.mxu0 %v2441
      %v3142 = vpop.f32.mrf.mxu0
      %v3143 = vpop.f32.mrf.mxu0
      %v3144 = vpop.f32.mrf.mxu0
      %v3145 = vadd.f32 0.0, %v3144
      %v3146 = vpop.f32.mrf.mxu0
      %3147 = vmatprep.mubr.bf16.mxu0 %v2638
      %3148 = vmatmul.mubr.bf16.gmra.mxu0 %v2442
      %v3149 = vpop.f32.mrf.mxu0
      %v3150 = vadd.f32 0.0, %v3149
      %v3151 = vpop.f32.mrf.mxu0
      %v3152 = vpop.f32.mrf.mxu0
      %v3153 = vpop.f32.mrf.mxu0
      %3154 = vmatprep.mubr.bf16.mxu0 %v2646
      %3155 = vmatmul.mubr.bf16.gmra.mxu0 %v2443
      %v3156 = vpop.f32.mrf.mxu0
      %v3157 = vadd.f32 0.0, %v3156
      %v3158 = vpop.f32.mrf.mxu0
      %v3159 = vpop.f32.mrf.mxu0
      %v3160 = vadd.f32 0.0, %v3159
      %v3161 = vpop.f32.mrf.mxu0
      %3162 = vmatprep.mubr.bf16.mxu0 %v2654
      %3163 = vmatmul.mubr.bf16.gmra.mxu0 %v2444
      %v3164 = vpop.f32.mrf.mxu0
      %v3165 = vpop.f32.mrf.mxu0
      %v3166 = vpop.f32.mrf.mxu0
      %v3167 = vadd.f32 0.0, %v3166
      %v3168 = vpop.f32.mrf.mxu0
      %3169 = vmatprep.mubr.bf16.mxu0 %v2662
      %3170 = vmatmul.mubr.bf16.gmra.mxu0 %v2445
      %v3171 = vpop.f32.mrf.mxu0
      %v3172 = vadd.f32 0.0, %v3171
      %v3173 = vpop.f32.mrf.mxu0
      %v3174 = vpop.f32.mrf.mxu0
      %v3175 = vpop.f32.mrf.mxu0
      %3176 = vmatprep.mubr.bf16.mxu0 %v2670
      %3177 = vmatmul.mubr.bf16.gmra.mxu0 %v2446
      %v3178 = vpop.f32.mrf.mxu0
      %v3179 = vadd.f32 0.0, %v3178
      %v3180 = vpop.f32.mrf.mxu0
      %v3181 = vpop.f32.mrf.mxu0
      %v3182 = vadd.f32 0.0, %v3181
      %v3183 = vpop.f32.mrf.mxu0
      %3184 = vmatprep.mubr.bf16.mxu0 %v2678
      %3185 = vmatmul.mubr.bf16.gmra.mxu0 %v2447
      %v3186 = vpop.f32.mrf.mxu0
      %v3187 = vpop.f32.mrf.mxu0
      %v3188 = vpop.f32.mrf.mxu0
      %v3189 = vadd.f32 0.0, %v3188
      %v3190 = vpop.f32.mrf.mxu0
      %3191 = vmatprep.mubr.bf16.mxu0 %v2686
      %3192 = vmatmul.mubr.bf16.gmra.mxu0 %v2448
      %v3193 = vpop.f32.mrf.mxu0
      %v3194 = vadd.f32 0.0, %v3193
      %v3195 = vpop.f32.mrf.mxu0
      %v3196 = vpop.f32.mrf.mxu0
      %v3197 = vpop.f32.mrf.mxu0
      %3198 = vmatprep.mubr.bf16.mxu0 %v2694
      %3199 = vmatmul.mubr.bf16.gmra.mxu0 %v2449
      %v3200 = vpop.f32.mrf.mxu0
      %v3201 = vadd.f32 0.0, %v3200
      %v3202 = vpop.f32.mrf.mxu0
      %v3203 = vpop.f32.mrf.mxu0
      %v3204 = vadd.f32 0.0, %v3203
      %v3205 = vpop.f32.mrf.mxu0
      %3206 = vmatprep.mubr.bf16.mxu0 %v2702
      %3207 = vmatmul.mubr.bf16.gmra.mxu0 %v2450
      %v3208 = vpop.f32.mrf.mxu0
      %v3209 = vpop.f32.mrf.mxu0
      %v3210 = vpop.f32.mrf.mxu0
      %v3211 = vadd.f32 0.0, %v3210
      %v3212 = vpop.f32.mrf.mxu0
      %3213 = vmatprep.mubr.bf16.mxu0 %v2710
      %3214 = vmatmul.mubr.bf16.gmra.mxu0 %v2451
      %v3215 = vpop.f32.mrf.mxu0
      %v3216 = vadd.f32 0.0, %v3215
      %v3217 = vpop.f32.mrf.mxu0
      %v3218 = vpop.f32.mrf.mxu0
      %v3219 = vpop.f32.mrf.mxu0
      %3220 = vmatprep.mubr.bf16.mxu0 %v2718
      %3221 = vmatmul.mubr.bf16.gmra.mxu0 %v2452
      %v3222 = vpop.f32.mrf.mxu0
      %v3223 = vadd.f32 0.0, %v3222
      %v3224 = vpop.f32.mrf.mxu0
      %v3225 = vpop.f32.mrf.mxu0
      %v3226 = vadd.f32 0.0, %v3225
      %v3227 = vpop.f32.mrf.mxu0
      %3228 = vmatprep.mubr.bf16.mxu0 %v2726
      %3229 = vmatmul.mubr.bf16.gmra.mxu0 %v2453
      %v3230 = vpop.f32.mrf.mxu0
      %v3231 = vpop.f32.mrf.mxu0
      %v3232 = vpop.f32.mrf.mxu0
      %v3233 = vadd.f32 0.0, %v3232
      %v3234 = vpop.f32.mrf.mxu0
      %3235 = vmatprep.mubr.bf16.mxu0 %v2734
      %3236 = vmatmul.mubr.bf16.gmra.mxu0 %v2454
      %v3237 = vpop.f32.mrf.mxu0
      %v3238 = vadd.f32 0.0, %v3237
      %v3239 = vpop.f32.mrf.mxu0
      %v3240 = vpop.f32.mrf.mxu0
      %v3241 = vpop.f32.mrf.mxu0
      %3242 = vmatprep.mubr.bf16.mxu0 %v2742
      %3243 = vmatmul.mubr.bf16.gmra.mxu0 %v2455
      %v3244 = vpop.f32.mrf.mxu0
      %v3245 = vadd.f32 0.0, %v3244
      %v3246 = vpop.f32.mrf.mxu0
      %v3247 = vpop.f32.mrf.mxu0
      %v3248 = vadd.f32 0.0, %v3247
      %v3249 = vpop.f32.mrf.mxu0
      %3250 = vmatprep.mubr.bf16.mxu0 %v2750
      %3251 = vmatmul.mubr.bf16.gmra.mxu0 %v2456
      %v3252 = vpop.f32.mrf.mxu0
      %v3253 = vpop.f32.mrf.mxu0
      %v3254 = vpop.f32.mrf.mxu0
      %v3255 = vadd.f32 0.0, %v3254
      %v3256 = vpop.f32.mrf.mxu0
      %3257 = vmatprep.mubr.bf16.mxu0 %v2758
      %3258 = vmatmul.mubr.bf16.gmra.mxu0 %v2457
      %v3259 = vpop.f32.mrf.mxu0
      %v3260 = vadd.f32 0.0, %v3259
      %v3261 = vpop.f32.mrf.mxu0
      %v3262 = vpop.f32.mrf.mxu0
      %v3263 = vpop.f32.mrf.mxu0
      %3264 = vmatprep.mubr.bf16.mxu0 %v2766
      %3265 = vmatmul.mubr.bf16.gmra.mxu0 %v2458
      %v3266 = vpop.f32.mrf.mxu0
      %v3267 = vadd.f32 0.0, %v3266
      %v3268 = vpop.f32.mrf.mxu0
      %v3269 = vpop.f32.mrf.mxu0
      %v3270 = vadd.f32 0.0, %v3269
      %v3271 = vpop.f32.mrf.mxu0
      %3272 = vmatprep.mubr.bf16.mxu0 %v2774
      %3273 = vmatmul.mubr.bf16.gmra.mxu0 %v2459
      %v3274 = vpop.f32.mrf.mxu0
      %v3275 = vpop.f32.mrf.mxu0
      %v3276 = vpop.f32.mrf.mxu0
      %v3277 = vadd.f32 0.0, %v3276
      %v3278 = vpop.f32.mrf.mxu0
      %3279 = vmatprep.mubr.bf16.mxu0 %v2782
      %3280 = vmatmul.mubr.bf16.gmra.mxu0 %v2460
      %v3281 = vpop.f32.mrf.mxu0
      %v3282 = vadd.f32 0.0, %v3281
      %v3283 = vpop.f32.mrf.mxu0
      %v3284 = vpop.f32.mrf.mxu0
      %v3285 = vpop.f32.mrf.mxu0
      %3286 = vmatprep.mubr.bf16.mxu0 %v2790
      %3287 = vmatmul.mubr.bf16.gmra.mxu0 %v2461
      %v3288 = vpop.f32.mrf.mxu0
      %v3289 = vadd.f32 0.0, %v3288
      %v3290 = vpop.f32.mrf.mxu0
      %v3291 = vpop.f32.mrf.mxu0
      %v3292 = vadd.f32 0.0, %v3291
      %v3293 = vpop.f32.mrf.mxu0
      %3294 = vmatprep.mubr.bf16.mxu0 %v2798
      %3295 = vmatmul.mubr.bf16.gmra.mxu0 %v2462
      %v3296 = vpop.f32.mrf.mxu0
      %v3297 = vpop.f32.mrf.mxu0
      %v3298 = vpop.f32.mrf.mxu0
      %v3299 = vadd.f32 0.0, %v3298
      %v3300 = vpop.f32.mrf.mxu0
      %3301 = vmatprep.mubr.bf16.mxu0 %v2806
      %3302 = vmatmul.mubr.bf16.gmra.mxu0 %v2463
      %v3303 = vpop.f32.mrf.mxu0
      %v3304 = vadd.f32 0.0, %v3303
      %v3305 = vpop.f32.mrf.mxu0
      %v3306 = vpop.f32.mrf.mxu0
      %v3307 = vpop.f32.mrf.mxu0
      %3308 = vdwg.mxu0
      %3309 = vmatprep.subr.bf16.mxu0 0
      %3310 = vmatpush1.bf16.msra.mxu0 %v3075
      %3311 = vmatprep.subr.bf16.mxu0 0
      %3312 = vmatpush1.bf16.msra.mxu0 %v3074
      %3313 = vmatprep.subr.bf16.mxu0 0
      %3314 = vmatpush1.bf16.msra.mxu0 %v3073
      %3315 = vmatprep.subr.bf16.mxu0 0
      %3316 = vmatpush1.bf16.msra.mxu0 %v3072
      %3317 = vmatprep.subr.bf16.mxu0 0
      %3318 = vmatpush1.bf16.msra.mxu0 %v3071
      %3319 = vmatprep.subr.bf16.mxu0 0
      %3320 = vmatpush1.bf16.msra.mxu0 %v3070
      %3321 = vmatprep.subr.bf16.mxu0 0
      %3322 = vmatpush1.bf16.msra.mxu0 %v3069
      %3323 = vmatprep.subr.bf16.mxu0 0
      %3324 = vmatpush1.bf16.msra.mxu0 %v3068
      %3325 = vmatprep.subr.bf16.mxu0 0
      %3326 = vmatpush2.bf16.msra.mxu0 0
      %3327 = vmatprep.subr.bf16.mxu0 0
      %3328 = vmatpush2.bf16.msra.mxu0 0
      %3329 = vmatprep.subr.bf16.mxu0 0
      %3330 = vmatpush2.bf16.msra.mxu0 0
      %3331 = vmatprep.subr.bf16.mxu0 0
      %3332 = vmatpush2.bf16.msra.mxu0 0
      %3333 = vmatprep.subr.bf16.mxu0 0
      %3334 = vmatpush2.bf16.msra.mxu0 0
      %3335 = vmatprep.subr.bf16.mxu0 0
      %3336 = vmatpush2.bf16.msra.mxu0 0
      %3337 = vmatprep.subr.bf16.mxu0 0
      %3338 = vmatpush2.bf16.msra.mxu0 0
      %3339 = vmatprep.subr.bf16.mxu0 0
      %3340 = vmatpush2.bf16.msra.mxu0 0
      %3341 = vmatprep.mubr.bf16.mxu0 0
      %3342 = vmatmul.mubr.bf16.gmra.mxu0 %v2836
      %v3343 = vpop.f32.mrf.mxu0
      %v3344 = vadd.f32 %v3135, %v3343
      %v3345 = vpop.f32.mrf.mxu0
      %v3346 = vpop.f32.mrf.mxu0
      %v3347 = vadd.f32 %v3138, %v3346
      %v3348 = vpop.f32.mrf.mxu0
      %3349 = vmatprep.mubr.bf16.mxu0 0
      %3350 = vmatmul.mubr.bf16.gmra.mxu0 %v2838
      %v3351 = vpop.f32.mrf.mxu0
      %v3352 = vpop.f32.mrf.mxu0
      %v3353 = vpop.f32.mrf.mxu0
      %v3354 = vadd.f32 %v3145, %v3353
      %v3355 = vpop.f32.mrf.mxu0
      %3356 = vmatprep.mubr.bf16.mxu0 0
      %3357 = vmatmul.mubr.bf16.gmra.mxu0 %v2840
      %v3358 = vpop.f32.mrf.mxu0
      %v3359 = vadd.f32 %v3150, %v3358
      %v3360 = vpop.f32.mrf.mxu0
      %v3361 = vpop.f32.mrf.mxu0
      %v3362 = vpop.f32.mrf.mxu0
      %3363 = vmatprep.mubr.bf16.mxu0 0
      %3364 = vmatmul.mubr.bf16.gmra.mxu0 %v2842
      %v3365 = vpop.f32.mrf.mxu0
      %v3366 = vadd.f32 %v3157, %v3365
      %v3367 = vpop.f32.mrf.mxu0
      %v3368 = vpop.f32.mrf.mxu0
      %v3369 = vadd.f32 %v3160, %v3368
      %v3370 = vpop.f32.mrf.mxu0
      %3371 = vmatprep.mubr.bf16.mxu0 0
      %3372 = vmatmul.mubr.bf16.gmra.mxu0 %v2844
      %v3373 = vpop.f32.mrf.mxu0
      %v3374 = vpop.f32.mrf.mxu0
      %v3375 = vpop.f32.mrf.mxu0
      %v3376 = vadd.f32 %v3167, %v3375
      %v3377 = vpop.f32.mrf.mxu0
      %3378 = vmatprep.mubr.bf16.mxu0 0
      %3379 = vmatmul.mubr.bf16.gmra.mxu0 %v2846
      %v3380 = vpop.f32.mrf.mxu0
      %v3381 = vadd.f32 %v3172, %v3380
      %v3382 = vpop.f32.mrf.mxu0
      %v3383 = vpop.f32.mrf.mxu0
      %v3384 = vpop.f32.mrf.mxu0
      %3385 = vmatprep.mubr.bf16.mxu0 0
      %3386 = vmatmul.mubr.bf16.gmra.mxu0 %v2848
      %v3387 = vpop.f32.mrf.mxu0
      %v3388 = vadd.f32 %v3179, %v3387
      %v3389 = vpop.f32.mrf.mxu0
      %v3390 = vpop.f32.mrf.mxu0
      %v3391 = vadd.f32 %v3182, %v3390
      %v3392 = vpop.f32.mrf.mxu0
      %3393 = vmatprep.mubr.bf16.mxu0 0
      %3394 = vmatmul.mubr.bf16.gmra.mxu0 %v2850
      %v3395 = vpop.f32.mrf.mxu0
      %v3396 = vpop.f32.mrf.mxu0
      %v3397 = vpop.f32.mrf.mxu0
      %v3398 = vadd.f32 %v3189, %v3397
      %v3399 = vpop.f32.mrf.mxu0
      %3400 = vmatprep.mubr.bf16.mxu0 0
      %3401 = vmatmul.mubr.bf16.gmra.mxu0 %v2852
      %v3402 = vpop.f32.mrf.mxu0
      %v3403 = vadd.f32 %v3194, %v3402
      %v3404 = vpop.f32.mrf.mxu0
      %v3405 = vpop.f32.mrf.mxu0
      %v3406 = vpop.f32.mrf.mxu0
      %3407 = vmatprep.mubr.bf16.mxu0 0
      %3408 = vmatmul.mubr.bf16.gmra.mxu0 %v2854
      %v3409 = vpop.f32.mrf.mxu0
      %v3410 = vadd.f32 %v3201, %v3409
      %v3411 = vpop.f32.mrf.mxu0
      %v3412 = vpop.f32.mrf.mxu0
      %v3413 = vadd.f32 %v3204, %v3412
      %v3414 = vpop.f32.mrf.mxu0
      %3415 = vmatprep.mubr.bf16.mxu0 0
      %3416 = vmatmul.mubr.bf16.gmra.mxu0 %v2856
      %v3417 = vpop.f32.mrf.mxu0
      %v3418 = vpop.f32.mrf.mxu0
      %v3419 = vpop.f32.mrf.mxu0
      %v3420 = vadd.f32 %v3211, %v3419
      %v3421 = vpop.f32.mrf.mxu0
      %3422 = vmatprep.mubr.bf16.mxu0 0
      %3423 = vmatmul.mubr.bf16.gmra.mxu0 %v2858
      %v3424 = vpop.f32.mrf.mxu0
      %v3425 = vadd.f32 %v3216, %v3424
      %v3426 = vpop.f32.mrf.mxu0
      %v3427 = vpop.f32.mrf.mxu0
      %v3428 = vpop.f32.mrf.mxu0
      %3429 = vmatprep.mubr.bf16.mxu0 0
      %3430 = vmatmul.mubr.bf16.gmra.mxu0 %v2860
      %v3431 = vpop.f32.mrf.mxu0
      %v3432 = vadd.f32 %v3223, %v3431
      %v3433 = vpop.f32.mrf.mxu0
      %v3434 = vpop.f32.mrf.mxu0
      %v3435 = vadd.f32 %v3226, %v3434
      %v3436 = vpop.f32.mrf.mxu0
      %3437 = vmatprep.mubr.bf16.mxu0 0
      %3438 = vmatmul.mubr.bf16.gmra.mxu0 %v2862
      %v3439 = vpop.f32.mrf.mxu0
      %v3440 = vpop.f32.mrf.mxu0
      %v3441 = vpop.f32.mrf.mxu0
      %v3442 = vadd.f32 %v3233, %v3441
      %v3443 = vpop.f32.mrf.mxu0
      %3444 = vmatprep.mubr.bf16.mxu0 0
      %3445 = vmatmul.mubr.bf16.gmra.mxu0 %v2864
      %v3446 = vpop.f32.mrf.mxu0
      %v3447 = vadd.f32 %v3238, %v3446
      %v3448 = vpop.f32.mrf.mxu0
      %v3449 = vpop.f32.mrf.mxu0
      %v3450 = vpop.f32.mrf.mxu0
      %3451 = vmatprep.mubr.bf16.mxu0 0
      %3452 = vmatmul.mubr.bf16.gmra.mxu0 %v2866
      %v3453 = vpop.f32.mrf.mxu0
      %v3454 = vadd.f32 %v3245, %v3453
      %v3455 = vpop.f32.mrf.mxu0
      %v3456 = vpop.f32.mrf.mxu0
      %v3457 = vadd.f32 %v3248, %v3456
      %v3458 = vpop.f32.mrf.mxu0
      %3459 = vmatprep.mubr.bf16.mxu0 0
      %3460 = vmatmul.mubr.bf16.gmra.mxu0 %v2868
      %v3461 = vpop.f32.mrf.mxu0
      %v3462 = vpop.f32.mrf.mxu0
      %v3463 = vpop.f32.mrf.mxu0
      %v3464 = vadd.f32 %v3255, %v3463
      %v3465 = vpop.f32.mrf.mxu0
      %3466 = vmatprep.mubr.bf16.mxu0 0
      %3467 = vmatmul.mubr.bf16.gmra.mxu0 %v2870
      %v3468 = vpop.f32.mrf.mxu0
      %v3469 = vadd.f32 %v3260, %v3468
      %v3470 = vpop.f32.mrf.mxu0
      %v3471 = vpop.f32.mrf.mxu0
      %v3472 = vpop.f32.mrf.mxu0
      %3473 = vmatprep.mubr.bf16.mxu0 0
      %3474 = vmatmul.mubr.bf16.gmra.mxu0 %v2872
      %v3475 = vpop.f32.mrf.mxu0
      %v3476 = vadd.f32 %v3267, %v3475
      %v3477 = vpop.f32.mrf.mxu0
      %v3478 = vpop.f32.mrf.mxu0
      %v3479 = vadd.f32 %v3270, %v3478
      %v3480 = vpop.f32.mrf.mxu0
      %3481 = vmatprep.mubr.bf16.mxu0 0
      %3482 = vmatmul.mubr.bf16.gmra.mxu0 %v2874
      %v3483 = vpop.f32.mrf.mxu0
      %v3484 = vpop.f32.mrf.mxu0
      %v3485 = vpop.f32.mrf.mxu0
      %v3486 = vadd.f32 %v3277, %v3485
      %v3487 = vpop.f32.mrf.mxu0
      %3488 = vmatprep.mubr.bf16.mxu0 0
      %3489 = vmatmul.mubr.bf16.gmra.mxu0 %v2876
      %v3490 = vpop.f32.mrf.mxu0
      %v3491 = vadd.f32 %v3282, %v3490
      %v3492 = vpop.f32.mrf.mxu0
      %v3493 = vpop.f32.mrf.mxu0
      %v3494 = vpop.f32.mrf.mxu0
      %3495 = vmatprep.mubr.bf16.mxu0 0
      %3496 = vmatmul.mubr.bf16.gmra.mxu0 %v2878
      %v3497 = vpop.f32.mrf.mxu0
      %v3498 = vadd.f32 %v3289, %v3497
      %v3499 = vpop.f32.mrf.mxu0
      %v3500 = vpop.f32.mrf.mxu0
      %v3501 = vadd.f32 %v3292, %v3500
      %v3502 = vpop.f32.mrf.mxu0
      %3503 = vmatprep.mubr.bf16.mxu0 0
      %3504 = vmatmul.mubr.bf16.gmra.mxu0 %v2880
      %v3505 = vpop.f32.mrf.mxu0
      %v3506 = vpop.f32.mrf.mxu0
      %v3507 = vpop.f32.mrf.mxu0
      %v3508 = vadd.f32 %v3299, %v3507
      %v3509 = vpop.f32.mrf.mxu0
      %3510 = vmatprep.mubr.bf16.mxu0 0
      %3511 = vmatmul.mubr.bf16.gmra.mxu0 %v2882
      %v3512 = vpop.f32.mrf.mxu0
      %v3513 = vadd.f32 %v3304, %v3512
      %v3514 = vpop.f32.mrf.mxu0
      %v3515 = vpop.f32.mrf.mxu0
      %v3516 = vpop.f32.mrf.mxu0
      %3517 = vdwg.mxu0
      %v3518 = vadd.f32 %v2072, %v3344
      %v3519 = vadd.f32 %v2075, %v3347
      %v3520 = vadd.f32 %v2082, %v3354
      %v3521 = vadd.f32 %v2087, %v3359
      %v3522 = vadd.f32 %v2094, %v3366
      %v3523 = vadd.f32 %v2097, %v3369
      %v3524 = vadd.f32 %v2104, %v3376
      %v3525 = vadd.f32 %v2109, %v3381
      %v3526 = vadd.f32 %v2116, %v3388
      %v3527 = vadd.f32 %v2119, %v3391
      %v3528 = vadd.f32 %v2126, %v3398
      %v3529 = vadd.f32 %v2131, %v3403
      %v3530 = vadd.f32 %v2138, %v3410
      %v3531 = vadd.f32 %v2141, %v3413
      %v3532 = vadd.f32 %v2148, %v3420
      %v3533 = vadd.f32 %v2153, %v3425
      %v3534 = vadd.f32 %v2160, %v3432
      %v3535 = vadd.f32 %v2163, %v3435
      %v3536 = vadd.f32 %v2170, %v3442
      %v3537 = vadd.f32 %v2175, %v3447
      %v3538 = vadd.f32 %v2182, %v3454
      %v3539 = vadd.f32 %v2185, %v3457
      %v3540 = vadd.f32 %v2192, %v3464
      %v3541 = vadd.f32 %v2197, %v3469
      %v3542 = vadd.f32 %v2204, %v3476
      %v3543 = vadd.f32 %v2207, %v3479
      %v3544 = vadd.f32 %v2214, %v3486
      %v3545 = vadd.f32 %v2219, %v3491
      %v3546 = vadd.f32 %v2226, %v3498
      %v3547 = vadd.f32 %v2229, %v3501
      %v3548 = vadd.f32 %v2236, %v3508
      %v3549 = vadd.f32 %v2241, %v3513
      %v3550 = vld [vmem:[%s2] sm:$0x1]
      %v3552 = vlaneseq
      %v3553 = vshrl.u32 %v3552, 7
      %v3554 = vsub.s32 0, %v3553
      %v3555 = vrot.slane %v3550, %v3554
      %v3557 = vadd.f32 %v3518, %v3555
      %v3558 = vadd.f32 %v3519, %v3555
      %v3559 = vadd.f32 %v3520, %v3555
      %v3560 = vadd.f32 %v3521, %v3555
      %v3561 = vadd.f32 %v3522, %v3555
      %v3562 = vadd.f32 %v3523, %v3555
      %v3563 = vadd.f32 %v3524, %v3555
      %v3564 = vadd.f32 %v3525, %v3555
      %v3565 = vadd.f32 %v3526, %v3555
      %v3566 = vadd.f32 %v3527, %v3555
      %v3567 = vadd.f32 %v3528, %v3555
      %v3568 = vadd.f32 %v3529, %v3555
      %v3569 = vadd.f32 %v3530, %v3555
      %v3570 = vadd.f32 %v3531, %v3555
      %v3571 = vadd.f32 %v3532, %v3555
      %v3572 = vadd.f32 %v3533, %v3555
      %v3573 = vadd.f32 %v3534, %v3555
      %v3574 = vadd.f32 %v3535, %v3555
      %v3575 = vadd.f32 %v3536, %v3555
      %v3576 = vadd.f32 %v3537, %v3555
      %v3577 = vadd.f32 %v3538, %v3555
      %v3578 = vadd.f32 %v3539, %v3555
      %v3579 = vadd.f32 %v3540, %v3555
      %v3580 = vadd.f32 %v3541, %v3555
      %v3581 = vadd.f32 %v3542, %v3555
      %v3582 = vadd.f32 %v3543, %v3555
      %v3583 = vadd.f32 %v3544, %v3555
      %v3584 = vadd.f32 %v3545, %v3555
      %v3585 = vadd.f32 %v3546, %v3555
      %v3586 = vadd.f32 %v3547, %v3555
      %v3587 = vadd.f32 %v3548, %v3555
      %v3588 = vadd.f32 %v3549, %v3555
      %v3589 = vmax.f32 %v3557, 0.0
      %v3590 = vmax.f32 %v3558, 0.0
      %v3591 = vmax.f32 %v3559, 0.0
      %v3592 = vmax.f32 %v3560, 0.0
      %v3593 = vmax.f32 %v3561, 0.0
      %v3594 = vmax.f32 %v3562, 0.0
      %v3595 = vmax.f32 %v3563, 0.0
      %v3596 = vmax.f32 %v3564, 0.0
      %v3597 = vmax.f32 %v3565, 0.0
      %v3598 = vmax.f32 %v3566, 0.0
      %v3599 = vmax.f32 %v3567, 0.0
      %v3600 = vmax.f32 %v3568, 0.0
      %v3601 = vmax.f32 %v3569, 0.0
      %v3602 = vmax.f32 %v3570, 0.0
      %v3603 = vmax.f32 %v3571, 0.0
      %v3604 = vmax.f32 %v3572, 0.0
      %v3605 = vmax.f32 %v3573, 0.0
      %v3606 = vmax.f32 %v3574, 0.0
      %v3607 = vmax.f32 %v3575, 0.0
      %v3608 = vmax.f32 %v3576, 0.0
      %v3609 = vmax.f32 %v3577, 0.0
      %v3610 = vmax.f32 %v3578, 0.0
      %v3611 = vmax.f32 %v3579, 0.0
      %v3612 = vmax.f32 %v3580, 0.0
      %v3613 = vmax.f32 %v3581, 0.0
      %v3614 = vmax.f32 %v3582, 0.0
      %v3615 = vmax.f32 %v3583, 0.0
      %v3616 = vmax.f32 %v3584, 0.0
      %v3617 = vmax.f32 %v3585, 0.0
      %v3618 = vmax.f32 %v3586, 0.0
      %v3619 = vmax.f32 %v3587, 0.0
      %v3620 = vmax.f32 %v3588, 0.0
      %v3621 = vpack.c.bf16 %v3590, %v3589
      %v3622 = vpack.c.bf16 %v3592, %v3591
      %v3623 = vpack.c.bf16 %v3594, %v3593
      %v3624 = vpack.c.bf16 %v3596, %v3595
      %v3625 = vpack.c.bf16 %v3598, %v3597
      %v3626 = vpack.c.bf16 %v3600, %v3599
      %v3627 = vpack.c.bf16 %v3602, %v3601
      %v3628 = vpack.c.bf16 %v3604, %v3603
      %v3629 = vpack.c.bf16 %v3606, %v3605
      %v3630 = vpack.c.bf16 %v3608, %v3607
      %v3631 = vpack.c.bf16 %v3610, %v3609
      %v3632 = vpack.c.bf16 %v3612, %v3611
      %v3633 = vpack.c.bf16 %v3614, %v3613
      %v3634 = vpack.c.bf16 %v3616, %v3615
      %v3635 = vpack.c.bf16 %v3618, %v3617
      %v3636 = vpack.c.bf16 %v3620, %v3619
      %v3653 = vunpack.c.l.b16 %v3621
      %v3654 = vunpack.c.h.b16 %v3621
      %v3655 = vunpack.c.l.b16 %v3622
      %v3656 = vunpack.c.h.b16 %v3622
      %v3657 = vunpack.c.l.b16 %v3623
      %v3658 = vunpack.c.h.b16 %v3623
      %v3659 = vunpack.c.l.b16 %v3624
      %v3660 = vunpack.c.h.b16 %v3624
      %v3661 = vunpack.c.l.b16 %v3625
      %v3662 = vunpack.c.h.b16 %v3625
      %v3663 = vunpack.c.l.b16 %v3626
      %v3664 = vunpack.c.h.b16 %v3626
      %v3665 = vunpack.c.l.b16 %v3627
      %v3666 = vunpack.c.h.b16 %v3627
      %v3667 = vunpack.c.l.b16 %v3628
      %v3668 = vunpack.c.h.b16 %v3628
      %v3669 = vunpack.c.l.b16 %v3629
      %v3670 = vunpack.c.h.b16 %v3629
      %v3671 = vunpack.c.l.b16 %v3630
      %v3672 = vunpack.c.h.b16 %v3630
      %v3673 = vunpack.c.l.b16 %v3631
      %v3674 = vunpack.c.h.b16 %v3631
      %v3675 = vunpack.c.l.b16 %v3632
      %v3676 = vunpack.c.h.b16 %v3632
      %v3677 = vunpack.c.l.b16 %v3633
      %v3678 = vunpack.c.h.b16 %v3633
      %v3679 = vunpack.c.l.b16 %v3634
      %v3680 = vunpack.c.h.b16 %v3634
      %v3681 = vunpack.c.l.b16 %v3635
      %v3682 = vunpack.c.h.b16 %v3635
      %v3683 = vunpack.c.l.b16 %v3636
      %v3684 = vunpack.c.h.b16 %v3636
      %v3685 = vpack.c.b16 %v3653, %v3653
      %v3686 = vpack.c.b16 %v3654, %v3654
      %v3687 = vpack.c.b16 %v3655, %v3655
      %v3688 = vpack.c.b16 %v3656, %v3656
      %v3689 = vpack.c.b16 %v3657, %v3657
      %v3690 = vpack.c.b16 %v3658, %v3658
      %v3691 = vpack.c.b16 %v3659, %v3659
      %v3692 = vpack.c.b16 %v3660, %v3660
      %v3693 = vpack.c.b16 %v3661, %v3661
      %v3694 = vpack.c.b16 %v3662, %v3662
      %v3695 = vpack.c.b16 %v3663, %v3663
      %v3696 = vpack.c.b16 %v3664, %v3664
      %v3697 = vpack.c.b16 %v3665, %v3665
      %v3698 = vpack.c.b16 %v3666, %v3666
      %v3699 = vpack.c.b16 %v3667, %v3667
      %v3700 = vpack.c.b16 %v3668, %v3668
      %v3701 = vpack.c.b16 %v3669, %v3669
      %v3702 = vpack.c.b16 %v3670, %v3670
      %v3703 = vpack.c.b16 %v3671, %v3671
      %v3704 = vpack.c.b16 %v3672, %v3672
      %v3705 = vpack.c.b16 %v3673, %v3673
      %v3706 = vpack.c.b16 %v3674, %v3674
      %v3707 = vpack.c.b16 %v3675, %v3675
      %v3708 = vpack.c.b16 %v3676, %v3676
      %v3709 = vpack.c.b16 %v3677, %v3677
      %v3710 = vpack.c.b16 %v3678, %v3678
      %v3711 = vpack.c.b16 %v3679, %v3679
      %v3712 = vpack.c.b16 %v3680, %v3680
      %v3713 = vpack.c.b16 %v3681, %v3681
      %v3714 = vpack.c.b16 %v3682, %v3682
      %v3715 = vpack.c.b16 %v3683, %v3683
      %v3716 = vpack.c.b16 %v3684, %v3684
      %3749 = vst [vmem:[%s170] sm:$0xf] %v3685
      %3750 = vst [vmem:[%s170 + $0x4] sm:$0xf] %v3686
      %3751 = vst [vmem:[%s170 + $0x8] sm:$0xf] %v3687
      %3752 = vst [vmem:[%s170 + $0xc] sm:$0xf] %v3688
      %3753 = vst [vmem:[%s170 + $0x10] sm:$0xf] %v3689
      %3754 = vst [vmem:[%s170 + $0x14] sm:$0xf] %v3690
      %3755 = vst [vmem:[%s170 + $0x18] sm:$0xf] %v3691
      %3756 = vst [vmem:[%s170 + $0x1c] sm:$0xf] %v3692
      %3757 = vst [vmem:[%s170 + $0x20] sm:$0xf] %v3693
      %3758 = vst [vmem:[%s170 + $0x24] sm:$0xf] %v3694
      %3759 = vst [vmem:[%s170 + $0x28] sm:$0xf] %v3695
      %3760 = vst [vmem:[%s170 + $0x2c] sm:$0xf] %v3696
      %3761 = vst [vmem:[%s170 + $0x30] sm:$0xf] %v3697
      %3762 = vst [vmem:[%s170 + $0x34] sm:$0xf] %v3698
      %3763 = vst [vmem:[%s170 + $0x38] sm:$0xf] %v3699
      %3764 = vst [vmem:[%s170 + $0x3c] sm:$0xf] %v3700
      %3765 = vst [vmem:[%s170 + $0x40] sm:$0xf] %v3701
      %3766 = vst [vmem:[%s170 + $0x44] sm:$0xf] %v3702
      %3767 = vst [vmem:[%s170 + $0x48] sm:$0xf] %v3703
      %3768 = vst [vmem:[%s170 + $0x4c] sm:$0xf] %v3704
      %3769 = vst [vmem:[%s170 + $0x50] sm:$0xf] %v3705
      %3770 = vst [vmem:[%s170 + $0x54] sm:$0xf] %v3706
      %3771 = vst [vmem:[%s170 + $0x58] sm:$0xf] %v3707
      %3772 = vst [vmem:[%s170 + $0x5c] sm:$0xf] %v3708
      %3773 = vst [vmem:[%s170 + $0x60] sm:$0xf] %v3709
      %3774 = vst [vmem:[%s170 + $0x64] sm:$0xf] %v3710
      %3775 = vst [vmem:[%s170 + $0x68] sm:$0xf] %v3711
      %3776 = vst [vmem:[%s170 + $0x6c] sm:$0xf] %v3712
      %3777 = vst [vmem:[%s170 + $0x70] sm:$0xf] %v3713
      %3778 = vst [vmem:[%s170 + $0x74] sm:$0xf] %v3714
      %3779 = vst [vmem:[%s170 + $0x78] sm:$0xf] %v3715
      %3780 = vst [vmem:[%s170 + $0x7c] sm:$0xf] %v3716
      %p3781 = scmp.lt.s32.totalorder %s14, 1
      %s3782 = scalar_select %p3781, %s14, 1
      %s3783 = smul.addr %s3782, 32
      %s3784 = smul.addr %s3783, 4
      %s3785 = scalar_lea.vmem %s3, %s3784
      // Predicated region
      $region33: #{bottleneck_forward.4} parent=31 // pred_check
        %p3786 = pneg %p100
      $region34: #{bottleneck_forward.4} parent=31 // pred_check_branch
        %3788 = sbr.rel (%p3786) target = $region36
      $region35: #{bottleneck_forward.4} parent=31 // pred_region
        _
      $region36: #{bottleneck_forward.4} parent=31 // pred_fallthru
        _
    $region32: #{bottleneck_forward.4} parent=5 // pred_fallthru
      _
    %p3789 = scmp.le.s32.totalorder 2, %s9
    // Predicated region
    $region37: #{bottleneck_forward.4} parent=5 // pred_check
      %p3790 = pneg %p3789
    $region38: #{bottleneck_forward.4} parent=5 // pred_check_branch
      %3792 = sbr.rel (%p3790) target = $region40
    $region39: #{bottleneck_forward.4} parent=5 // pred_region
      %s3793 = ssub.s32 %s9, 2
      // Predicated region
      $region41: #{bottleneck_forward.4} parent=39 // pred_check
        %p3794 = pneg %p106
      $region42: #{bottleneck_forward.4} parent=39 // pred_check_branch
        %3796 = sbr.rel (%p3794) target = $region44
      $region43: #{bottleneck_forward.4} parent=39 // pred_region
        %p3797 = scmp.lt.s32.totalorder %s15, 1
        %s3798 = scalar_select %p3797, %s15, 1
        %s3799 = smul.addr %s3798, 32
        %s3800 = smul.addr %s3799, 4
        %s3801 = scalar_lea.vmem %s3, %s3800
      $region44: #{bottleneck_forward.4} parent=39 // pred_fallthru
        _
    $region40: #{bottleneck_forward.4} parent=5 // pred_fallthru
      _
  $region6: #{bottleneck_forward.4} parent=0 // loop_footer
    %s13 = sadd.s32 1, %s9
  $region7: #{bottleneck_forward.4} parent=0 // loop_footer_branch
    %8 = sbr.rel target = $region3
  $region8: #{bottleneck_forward.4} parent=0 // loop_exit
    _

</llo_original>
